<compile_context>
chip_gen: v7x
topology: tpu7x:2x2x1
jax: 0.10.0
libtpu: 0.0.40
codegen_flags: <defaults>
</compile_context>

<pallas_src>
import jax
import jax.numpy as jnp
from jax.experimental import pallas as pl
from jax.experimental.pallas import tpu as pltpu


_VMEM_LIMIT = 48 * 1024 * 1024  # > 16/32 MiB scoped defaults, < v7x 64 MiB phys.


# ----------------------------------------------------------------------------
# Kernels
# ----------------------------------------------------------------------------
def _conv3x3_bias_relu(xpad_ref, w_ref, b_ref, H, W):
    """3x3 conv (stride 1, halo pre-padded) + bias + ReLU for one image.

    xpad_ref: (1, H+2, W+2, C) f32 ref (VMEM scratch, halo already zeroed)
    w_ref   : (9*C, Co)        bf16 ref, BN scale folded, tap-major (dy,dx,ci)
    b_ref   : (1, Co)          f32 ref, folded BN bias
    returns : (H*W, Co)        f32 value (post-ReLU)
    """
    C = xpad_ref.shape[-1]
    # im2col: one dense K = 9*C MXU contraction instead of 9 tiny K = C dots.
    patches = jnp.concatenate(
        [xpad_ref[:, dy:dy + H, dx:dx + W, :]
         for dy in range(3) for dx in range(3)],
        axis=-1,
    ).reshape(H * W, 9 * C)
    acc = jnp.dot(patches.astype(jnp.bfloat16), w_ref[...],
                  preferred_element_type=jnp.float32)
    return jnp.maximum(acc + b_ref[...], 0.0)


def _double_conv_kernel(x_ref, w1_ref, b1_ref, w2_ref, b2_ref,
                        h_ref, xpad_ref, h1pad_ref):
    """Fused DoubleConv2d (conv+BN+ReLU twice) for one batch image.

    x_ref    : (1, H, W, Cin)      f32  NHWC input block (unpadded)
    w1_ref   : (9*Cin, Cmid)       bf16
    b1_ref   : (1, Cmid)           f32
    w2_ref   : (9*Cmid, Cout)      bf16
    b2_ref   : (1, Cout)           f32
    h_ref    : (1, H, W, Cout)     f32  output (pre-pool skip activation)
    xpad_ref : (1, H+2, W+2, Cin)  f32  VMEM scratch (input + zero halo)
    h1pad_ref: (1, H+2, W+2, Cmid) f32  VMEM scratch (intermediate + zero halo)
    """
    _, H, W, _ = x_ref.shape
    Cmid = w1_ref.shape[-1]
    Cout = w2_ref.shape[-1]

    # Stage the input with a zero 1-pixel halo entirely in VMEM (no XLA pad
    # pass, no extra HBM traffic).  Scratch is reused across grid iterations
    # and cores, so it is (cheaply) re-zeroed every step.
    xpad_ref[...] = jnp.zeros(xpad_ref.shape, xpad_ref.dtype)
    xpad_ref[:, 1:H + 1, 1:W + 1, :] = x_ref[...]

    # conv1 + folded-BN + ReLU
    h1 = _conv3x3_bias_relu(xpad_ref, w1_ref, b1_ref, H, W)       # (H*W, Cmid)

    # Intermediate + zero halo, also VMEM-resident (never touches HBM).
    h1pad_ref[...] = jnp.zeros(h1pad_ref.shape, h1pad_ref.dtype)
    h1pad_ref[:, 1:H + 1, 1:W + 1, :] = h1.reshape(1, H, W, Cmid)

    # conv2 + folded-BN + ReLU, consuming the intermediate directly from VMEM
    h2 = _conv3x3_bias_relu(h1pad_ref, w2_ref, b2_ref, H, W)      # (H*W, Cout)
    h_ref[...] = h2.reshape(1, H, W, Cout)


def _maxpool2x2_kernel(x_ref, o_ref):
    """2x2 max pool, stride 2, for one batch image.

    x_ref: (1, Ho, 2, Wo, 2*C) f32 -- conv output regrouped in the wrapper so
           the pooled W-pairs sit side by side on the lane (channel) axis
           (pure row-major regroup, free in XLA).
    o_ref: (1, Ho, Wo, C)      f32
    """
    C = o_ref.shape[-1]
    x = x_ref[...]
    row_max = jnp.maximum(x[:, :, 0, :, :], x[:, :, 1, :, :])     # H-pairs
    o_ref[...] = jnp.maximum(row_max[..., :C], row_max[..., C:])  # W-pairs


# ----------------------------------------------------------------------------
# Wrappers (grid/BlockSpec plumbing; layout-only reshapes/transposes)
# ----------------------------------------------------------------------------
def double_conv(x_nhwc, w1, b1, w2, b2):
    """[Conv3x3 + BN(folded) + ReLU] x 2 for a full NHWC batch."""
    N, H, W, Cin = x_nhwc.shape
    Cmid = w1.shape[-1]
    Cout = w2.shape[-1]
    return pl.pallas_call(
        _double_conv_kernel,
        out_shape=jax.ShapeDtypeStruct((N, H, W, Cout), jnp.float32),
        grid=(N,),
        in_specs=[
            pl.BlockSpec((1, H, W, Cin), lambda n: (n, 0, 0, 0)),
            pl.BlockSpec(w1.shape, lambda n: (0, 0)),   # resident across steps
            pl.BlockSpec(b1.shape, lambda n: (0, 0)),
            pl.BlockSpec(w2.shape, lambda n: (0, 0)),
            pl.BlockSpec(b2.shape, lambda n: (0, 0)),
        ],
        out_specs=pl.BlockSpec((1, H, W, Cout), lambda n: (n, 0, 0, 0)),
        scratch_shapes=[
            pltpu.VMEM((1, H + 2, W + 2, Cin), jnp.float32),
            pltpu.VMEM((1, H + 2, W + 2, Cmid), jnp.float32),
        ],
        compiler_params=pltpu.CompilerParams(
            dimension_semantics=("parallel",),
            vmem_limit_bytes=_VMEM_LIMIT,
        ),
    )(x_nhwc, w1, b1, w2, b2)


def maxpool2x2(x_nhwc):
    """MaxPool2d(2, 2) for a full NHWC batch (assumes even H, W)."""
    N, H, W, C = x_nhwc.shape
    Ho, Wo = H // 2, W // 2
    x_r = x_nhwc.reshape(N, Ho, 2, Wo, 2 * C)  # free row-major regroup
    return pl.pallas_call(
        _maxpool2x2_kernel,
        out_shape=jax.ShapeDtypeStruct((N, Ho, Wo, C), jnp.float32),
        grid=(N,),
        in_specs=[pl.BlockSpec((1, Ho, 2, Wo, 2 * C),
                               lambda n: (n, 0, 0, 0, 0))],
        out_specs=pl.BlockSpec((1, Ho, Wo, C), lambda n: (n, 0, 0, 0)),
        compiler_params=pltpu.CompilerParams(
            dimension_semantics=("parallel",),
            vmem_limit_bytes=_VMEM_LIMIT,
        ),
    )(x_r)


# ----------------------------------------------------------------------------
# Parameters (deterministic, synthetic) and forward pass
# ----------------------------------------------------------------------------
def init_encoder_params(key, channels, filters):
    """One dict per EncoderBlock (for filters[:-1]), mirroring torch shapes:
    Conv2d(ci, co, 3, bias=False) weight (co,ci,3,3) and BatchNorm2d(co)
    running stats, folded to:
      w: (9*ci, co) bf16  (HWIO tap-major, BN scale folded in)
      b: (1, co)    f32   (beta - mean * scale)
    """
    eps = 1e-5
    params = []
    in_c = channels
    for out_c in filters[:-1]:
        block = {}
        for tag, (ci, co) in (("1", (in_c, out_c)), ("2", (out_c, out_c))):
            key, kw, kg, kb, km, kv = jax.random.split(key, 6)
            w_oihw = jax.random.normal(kw, (co, ci, 3, 3), jnp.float32)
            w_oihw = w_oihw * (1.0 / (ci * 9) ** 0.5)
            gamma = 1.0 + 0.1 * jax.random.normal(kg, (co,), jnp.float32)
            beta = 0.1 * jax.random.normal(kb, (co,), jnp.float32)
            mean = 0.1 * jax.random.normal(km, (co,), jnp.float32)
            var = jax.random.uniform(kv, (co,), jnp.float32, 0.5, 1.5)
            scale = gamma / jnp.sqrt(var + eps)
            bias = beta - mean * scale
            w_hwio = jnp.transpose(w_oihw, (2, 3, 1, 0))           # (3,3,ci,co)
            w_folded = (w_hwio * scale).reshape(9 * ci, co)        # fold BN
            block["w" + tag] = w_folded.astype(jnp.bfloat16)
            block["b" + tag] = bias.reshape(1, co)
        params.append(block)
        in_c = out_c
    return params


def encoder_blocks_forward(x_nchw, params):
    """Matches EncoderBlocks.forward (backbone=None):
    returns ([x_1, ..., x_k] pre-pool conv outputs, e_out = last pooled), NCHW.
    """
    p = jnp.transpose(x_nchw, (0, 2, 3, 1)).astype(jnp.float32)  # NCHW -> NHWC
    x_out = []
    e_out = p
    for blk in params:
        h = double_conv(p, blk["w1"], blk["b1"], blk["w2"], blk["b2"])
        pooled = maxpool2x2(h)                    # Dropout(p=0.0) == identity
        x_out.append(jnp.transpose(h, (0, 3, 1, 2)))  # skip connection, NCHW
        p = pooled
        e_out = pooled
    return x_out, jnp.transpose(e_out, (0, 3, 1, 2))


if __name__ == "__main__":
    key = jax.random.PRNGKey(0)
    k_x, k_p = jax.random.split(key)

    channels = 4
    filters = [8, 16, 32]  # -> two EncoderBlocks (filters[:-1] = [8, 16])
    x = jax.random.normal(k_x, (2, channels, 16, 16), jnp.float32)  # NCHW

    params = init_encoder_params(k_p, channels, filters)
    fwd = jax.jit(encoder_blocks_forward)
    x_out, e_out = fwd(x, params)

    for t in x_out:
        jax.block_until_ready(t)
    jax.block_until_ready(e_out)

    # Shape sanity: x_out = [(2,8,16,16), (2,16,8,8)], e_out = (2,16,4,4)
    assert x_out[0].shape == (2, 8, 16, 16)
    assert x_out[1].shape == (2, 16, 8, 8)
    assert e_out.shape == (2, 16, 4, 4)
    print("KERNEL_OK")
</pallas_src>

<mosaic_0001>
module attributes {stable_mosaic.version = 11 : i64} {
  func.func @_maxpool2x2_kernel(%arg0: i32, %arg1: memref<1x8x2x8x16xf32, #tpu.memory_space<vmem>>, %arg2: memref<1x8x8x8xf32, #tpu.memory_space<vmem>>) attributes {dimension_semantics = [#tpu.dimension_semantics<parallel>], iteration_bounds = array<i64: 2>, scalar_prefetch = 0 : i64, scratch_operands = 0 : i64, tpu.core_type = #tpu.core_type<tc>, window_params = [{transform_indices = @transform_0, window_bounds = array<i64: 1, 8, 2, 8, 16>}, {transform_indices = @transform_1, window_bounds = array<i64: 1, 8, 8, 8>}]} {
    %c0 = arith.constant 0 : index
    %c0_0 = arith.constant 0 : index
    %c0_1 = arith.constant 0 : index
    %c0_2 = arith.constant 0 : index
    %c0_3 = arith.constant 0 : index
    %0 = vector.load %arg1[%c0, %c0_0, %c0_1, %c0_2, %c0_3] : memref<1x8x2x8x16xf32, #tpu.memory_space<vmem>>, vector<1x8x2x8x16xf32>
    %1 = vector.extract_strided_slice %0 {offsets = [0, 0, 0, 0, 0], sizes = [1, 8, 1, 8, 16], strides = [1, 1, 1, 1, 1]} : vector<1x8x2x8x16xf32> to vector<1x8x1x8x16xf32>
    %2 = vector.shape_cast %1 : vector<1x8x1x8x16xf32> to vector<1x8x8x16xf32>
    %3 = vector.extract_strided_slice %0 {offsets = [0, 0, 1, 0, 0], sizes = [1, 8, 1, 8, 16], strides = [1, 1, 1, 1, 1]} : vector<1x8x2x8x16xf32> to vector<1x8x1x8x16xf32>
    %4 = vector.shape_cast %3 : vector<1x8x1x8x16xf32> to vector<1x8x8x16xf32>
    %5 = arith.maximumf %2, %4 : vector<1x8x8x16xf32>
    %6 = vector.extract_strided_slice %5 {offsets = [0, 0, 0, 0], sizes = [1, 8, 8, 8], strides = [1, 1, 1, 1]} : vector<1x8x8x16xf32> to vector<1x8x8x8xf32>
    %7 = vector.extract_strided_slice %5 {offsets = [0, 0, 0, 8], sizes = [1, 8, 8, 8], strides = [1, 1, 1, 1]} : vector<1x8x8x16xf32> to vector<1x8x8x8xf32>
    %8 = arith.maximumf %6, %7 : vector<1x8x8x8xf32>
    %c0_4 = arith.constant 0 : index
    %c0_5 = arith.constant 0 : index
    %c0_6 = arith.constant 0 : index
    %c0_7 = arith.constant 0 : index
    %9 = vector.load %arg2[%c0_4, %c0_5, %c0_6, %c0_7] : memref<1x8x8x8xf32, #tpu.memory_space<vmem>>, vector<1x8x8x8xf32>
    tpu.vector_store %arg2[%c0_4, %c0_5, %c0_6, %c0_7], %8 {strides = array<i32>} : memref<1x8x8x8xf32, #tpu.memory_space<vmem>>, vector<1x8x8x8xf32>,
    return
  }
  func.func @transform_0(%arg0: i32) -> (i32, i32, i32, i32, i32) {
    %c0_i32 = arith.constant 0 : i32
    %c0_i32_0 = arith.constant 0 : i32
    %c0_i32_1 = arith.constant 0 : i32
    %c0_i32_2 = arith.constant 0 : i32
    %c0_i32_3 = arith.constant 0 : i32
    return %arg0, %c0_i32, %c0_i32_0, %c0_i32_1, %c0_i32_2 : i32, i32, i32, i32, i32
  }
  func.func @transform_1(%arg0: i32) -> (i32, i32, i32, i32) {
    %c0_i32 = arith.constant 0 : i32
    %c0_i32_0 = arith.constant 0 : i32
    %c0_i32_1 = arith.constant 0 : i32
    %c0_i32_2 = arith.constant 0 : i32
    return %arg0, %c0_i32, %c0_i32_0, %c0_i32_1 : i32, i32, i32, i32
  }
}

module attributes {stable_mosaic.version = 11 : i64} {
  func.func @_double_conv_kernel(%arg0: i32, %arg1: memref<1x16x16x4xf32, #tpu.memory_space<vmem>>, %arg2: memref<36x8xbf16, #tpu.memory_space<vmem>>, %arg3: memref<1x8xf32, #tpu.memory_space<vmem>>, %arg4: memref<72x8xbf16, #tpu.memory_space<vmem>>, %arg5: memref<1x8xf32, #tpu.memory_space<vmem>>, %arg6: memref<1x16x16x8xf32, #tpu.memory_space<vmem>>, %arg7: memref<1x18x18x4xf32, #tpu.memory_space<vmem>>, %arg8: memref<1x18x18x8xf32, #tpu.memory_space<vmem>>) attributes {dimension_semantics = [#tpu.dimension_semantics<parallel>], iteration_bounds = array<i64: 2>, scalar_prefetch = 0 : i64, scratch_operands = 2 : i64, tpu.core_type = #tpu.core_type<tc>, window_params = [{transform_indices = @transform_0, window_bounds = array<i64: 1, 16, 16, 4>}, {pipeline_mode = #tpu.pipeline_mode<synchronous>, transform_indices = @transform_1, window_bounds = array<i64: 36, 8>}, {pipeline_mode = #tpu.pipeline_mode<synchronous>, transform_indices = @transform_2, window_bounds = array<i64: 1, 8>}, {pipeline_mode = #tpu.pipeline_mode<synchronous>, transform_indices = @transform_3, window_bounds = array<i64: 72, 8>}, {pipeline_mode = #tpu.pipeline_mode<synchronous>, transform_indices = @transform_4, window_bounds = array<i64: 1, 8>}, {transform_indices = @transform_5, window_bounds = array<i64: 1, 16, 16, 8>}]} {
    %cst = arith.constant 0.000000e+00 : f32
    %0 = vector.broadcast %cst : f32 to vector<1x18x18x4xf32>
    %c0 = arith.constant 0 : index
    %c0_0 = arith.constant 0 : index
    %c0_1 = arith.constant 0 : index
    %c0_2 = arith.constant 0 : index
    %1 = vector.load %arg7[%c0, %c0_0, %c0_1, %c0_2] : memref<1x18x18x4xf32, #tpu.memory_space<vmem>>, vector<1x18x18x4xf32>
    tpu.vector_store %arg7[%c0, %c0_0, %c0_1, %c0_2], %0 {strides = array<i32>} : memref<1x18x18x4xf32, #tpu.memory_space<vmem>>, vector<1x18x18x4xf32>,
    %c0_3 = arith.constant 0 : index
    %c0_4 = arith.constant 0 : index
    %c0_5 = arith.constant 0 : index
    %c0_6 = arith.constant 0 : index
    %2 = vector.load %arg1[%c0_3, %c0_4, %c0_5, %c0_6] : memref<1x16x16x4xf32, #tpu.memory_space<vmem>>, vector<1x16x16x4xf32>
    %c0_7 = arith.constant 0 : index
    %c1 = arith.constant 1 : index
    %c1_8 = arith.constant 1 : index
    %c0_9 = arith.constant 0 : index
    %3 = vector.load %arg7[%c0_7, %c1, %c1_8, %c0_9] : memref<1x18x18x4xf32, #tpu.memory_space<vmem>>, vector<1x16x16x4xf32>
    tpu.vector_store %arg7[%c0_7, %c1, %c1_8, %c0_9], %2 {strides = array<i32>} : memref<1x18x18x4xf32, #tpu.memory_space<vmem>>, vector<1x16x16x4xf32>,
    %c0_10 = arith.constant 0 : index
    %c0_11 = arith.constant 0 : index
    %c0_12 = arith.constant 0 : index
    %c0_13 = arith.constant 0 : index
    %4 = vector.load %arg7[%c0_10, %c0_11, %c0_12, %c0_13] : memref<1x18x18x4xf32, #tpu.memory_space<vmem>>, vector<1x16x16x4xf32>
    %c0_14 = arith.constant 0 : index
    %c0_15 = arith.constant 0 : index
    %c1_16 = arith.constant 1 : index
    %c0_17 = arith.constant 0 : index
    %5 = vector.load %arg7[%c0_14, %c0_15, %c1_16, %c0_17] : memref<1x18x18x4xf32, #tpu.memory_space<vmem>>, vector<1x16x16x4xf32>
    %c0_18 = arith.constant 0 : index
    %c0_19 = arith.constant 0 : index
    %c2 = arith.constant 2 : index
    %c0_20 = arith.constant 0 : index
    %6 = vector.load %arg7[%c0_18, %c0_19, %c2, %c0_20] : memref<1x18x18x4xf32, #tpu.memory_space<vmem>>, vector<1x16x16x4xf32>
    %c0_21 = arith.constant 0 : index
    %c1_22 = arith.constant 1 : index
    %c0_23 = arith.constant 0 : index
    %c0_24 = arith.constant 0 : index
    %7 = vector.load %arg7[%c0_21, %c1_22, %c0_23, %c0_24] : memref<1x18x18x4xf32, #tpu.memory_space<vmem>>, vector<1x16x16x4xf32>
    %c0_25 = arith.constant 0 : index
    %c1_26 = arith.constant 1 : index
    %c1_27 = arith.constant 1 : index
    %c0_28 = arith.constant 0 : index
    %8 = vector.load %arg7[%c0_25, %c1_26, %c1_27, %c0_28] : memref<1x18x18x4xf32, #tpu.memory_space<vmem>>, vector<1x16x16x4xf32>
    %c0_29 = arith.constant 0 : index
    %c1_30 = arith.constant 1 : index
    %c2_31 = arith.constant 2 : index
    %c0_32 = arith.constant 0 : index
    %9 = vector.load %arg7[%c0_29, %c1_30, %c2_31, %c0_32] : memref<1x18x18x4xf32, #tpu.memory_space<vmem>>, vector<1x16x16x4xf32>
    %c0_33 = arith.constant 0 : index
    %c2_34 = arith.constant 2 : index
    %c0_35 = arith.constant 0 : index
    %c0_36 = arith.constant 0 : index
    %10 = vector.load %arg7[%c0_33, %c2_34, %c0_35, %c0_36] : memref<1x18x18x4xf32, #tpu.memory_space<vmem>>, vector<1x16x16x4xf32>
    %c0_37 = arith.constant 0 : index
    %c2_38 = arith.constant 2 : index
    %c1_39 = arith.constant 1 : index
    %c0_40 = arith.constant 0 : index
    %11 = vector.load %arg7[%c0_37, %c2_38, %c1_39, %c0_40] : memref<1x18x18x4xf32, #tpu.memory_space<vmem>>, vector<1x16x16x4xf32>
    %c0_41 = arith.constant 0 : index
    %c2_42 = arith.constant 2 : index
    %c2_43 = arith.constant 2 : index
    %c0_44 = arith.constant 0 : index
    %12 = vector.load %arg7[%c0_41, %c2_42, %c2_43, %c0_44] : memref<1x18x18x4xf32, #tpu.memory_space<vmem>>, vector<1x16x16x4xf32>
    %13 = tpu.concatenate %4, %5, %6, %7, %8, %9, %10, %11, %12 in 3 : vector<1x16x16x4xf32>, vector<1x16x16x4xf32>, vector<1x16x16x4xf32>, vector<1x16x16x4xf32>, vector<1x16x16x4xf32>, vector<1x16x16x4xf32>, vector<1x16x16x4xf32>, vector<1x16x16x4xf32>, vector<1x16x16x4xf32> -> vector<1x16x16x36xf32>
    %14 = vector.shape_cast %13 : vector<1x16x16x36xf32> to vector<256x36xf32>
    %15 = arith.truncf %14 : vector<256x36xf32> to vector<256x36xbf16>
    %c0_45 = arith.constant 0 : index
    %c0_46 = arith.constant 0 : index
    %16 = vector.load %arg2[%c0_45, %c0_46] : memref<36x8xbf16, #tpu.memory_space<vmem>>, vector<36x8xbf16>
    %cst_47 = arith.constant dense<0.000000e+00> : vector<256x8xf32>
    %17 = tpu.matmul %15, %16, %cst_47 {dimension_numbers = #tpu.dot_dimension_numbers<[1], [0], [0], [1], [0, 0, 1, 1], [], []>} : vector<256x36xbf16>, vector<36x8xbf16>, vector<256x8xf32> -> vector<256x8xf32>
    %c0_48 = arith.constant 0 : index
    %c0_49 = arith.constant 0 : index
    %18 = vector.load %arg3[%c0_48, %c0_49] : memref<1x8xf32, #tpu.memory_space<vmem>>, vector<1x8xf32>
    %19 = vector.broadcast %18 : vector<1x8xf32> to vector<256x8xf32>
    %20 = arith.addf %17, %19 : vector<256x8xf32>
    %cst_50 = arith.constant 0.000000e+00 : f32
    %21 = vector.broadcast %cst_50 : f32 to vector<256x8xf32>
    %22 = arith.maximumf %20, %21 : vector<256x8xf32>
    %cst_51 = arith.constant 0.000000e+00 : f32
    %23 = vector.broadcast %cst_51 : f32 to vector<1x18x18x8xf32>
    %c0_52 = arith.constant 0 : index
    %c0_53 = arith.constant 0 : index
    %c0_54 = arith.constant 0 : index
    %c0_55 = arith.constant 0 : index
    %24 = vector.load %arg8[%c0_52, %c0_53, %c0_54, %c0_55] : memref<1x18x18x8xf32, #tpu.memory_space<vmem>>, vector<1x18x18x8xf32>
    tpu.vector_store %arg8[%c0_52, %c0_53, %c0_54, %c0_55], %23 {strides = array<i32>} : memref<1x18x18x8xf32, #tpu.memory_space<vmem>>, vector<1x18x18x8xf32>,
    %25 = vector.shape_cast %22 : vector<256x8xf32> to vector<1x16x16x8xf32>
    %c0_56 = arith.constant 0 : index
    %c1_57 = arith.constant 1 : index
    %c1_58 = arith.constant 1 : index
    %c0_59 = arith.constant 0 : index
    %26 = vector.load %arg8[%c0_56, %c1_57, %c1_58, %c0_59] : memref<1x18x18x8xf32, #tpu.memory_space<vmem>>, vector<1x16x16x8xf32>
    tpu.vector_store %arg8[%c0_56, %c1_57, %c1_58, %c0_59], %25 {strides = array<i32>} : memref<1x18x18x8xf32, #tpu.memory_space<vmem>>, vector<1x16x16x8xf32>,
    %c0_60 = arith.constant 0 : index
    %c0_61 = arith.constant 0 : index
    %c0_62 = arith.constant 0 : index
    %c0_63 = arith.constant 0 : index
    %27 = vector.load %arg8[%c0_60, %c0_61, %c0_62, %c0_63] : memref<1x18x18x8xf32, #tpu.memory_space<vmem>>, vector<1x16x16x8xf32>
    %c0_64 = arith.constant 0 : index
    %c0_65 = arith.constant 0 : index
    %c1_66 = arith.constant 1 : index
    %c0_67 = arith.constant 0 : index
    %28 = vector.load %arg8[%c0_64, %c0_65, %c1_66, %c0_67] : memref<1x18x18x8xf32, #tpu.memory_space<vmem>>, vector<1x16x16x8xf32>
    %c0_68 = arith.constant 0 : index
    %c0_69 = arith.constant 0 : index
    %c2_70 = arith.constant 2 : index
    %c0_71 = arith.constant 0 : index
    %29 = vector.load %arg8[%c0_68, %c0_69, %c2_70, %c0_71] : memref<1x18x18x8xf32, #tpu.memory_space<vmem>>, vector<1x16x16x8xf32>
    %c0_72 = arith.constant 0 : index
    %c1_73 = arith.constant 1 : index
    %c0_74 = arith.constant 0 : index
    %c0_75 = arith.constant 0 : index
    %30 = vector.load %arg8[%c0_72, %c1_73, %c0_74, %c0_75] : memref<1x18x18x8xf32, #tpu.memory_space<vmem>>, vector<1x16x16x8xf32>
    %c0_76 = arith.constant 0 : index
    %c1_77 = arith.constant 1 : index
    %c1_78 = arith.constant 1 : index
    %c0_79 = arith.constant 0 : index
    %31 = vector.load %arg8[%c0_76, %c1_77, %c1_78, %c0_79] : memref<1x18x18x8xf32, #tpu.memory_space<vmem>>, vector<1x16x16x8xf32>
    %c0_80 = arith.constant 0 : index
    %c1_81 = arith.constant 1 : index
    %c2_82 = arith.constant 2 : index
    %c0_83 = arith.constant 0 : index
    %32 = vector.load %arg8[%c0_80, %c1_81, %c2_82, %c0_83] : memref<1x18x18x8xf32, #tpu.memory_space<vmem>>, vector<1x16x16x8xf32>
    %c0_84 = arith.constant 0 : index
    %c2_85 = arith.constant 2 : index
    %c0_86 = arith.constant 0 : index
    %c0_87 = arith.constant 0 : index
    %33 = vector.load %arg8[%c0_84, %c2_85, %c0_86, %c0_87] : memref<1x18x18x8xf32, #tpu.memory_space<vmem>>, vector<1x16x16x8xf32>
    %c0_88 = arith.constant 0 : index
    %c2_89 = arith.constant 2 : index
    %c1_90 = arith.constant 1 : index
    %c0_91 = arith.constant 0 : index
    %34 = vector.load %arg8[%c0_88, %c2_89, %c1_90, %c0_91] : memref<1x18x18x8xf32, #tpu.memory_space<vmem>>, vector<1x16x16x8xf32>
    %c0_92 = arith.constant 0 : index
    %c2_93 = arith.constant 2 : index
    %c2_94 = arith.constant 2 : index
    %c0_95 = arith.constant 0 : index
    %35 = vector.load %arg8[%c0_92, %c2_93, %c2_94, %c0_95] : memref<1x18x18x8xf32, #tpu.memory_space<vmem>>, vector<1x16x16x8xf32>
    %36 = tpu.concatenate %27, %28, %29, %30, %31, %32, %33, %34, %35 in 3 : vector<1x16x16x8xf32>, vector<1x16x16x8xf32>, vector<1x16x16x8xf32>, vector<1x16x16x8xf32>, vector<1x16x16x8xf32>, vector<1x16x16x8xf32>, vector<1x16x16x8xf32>, vector<1x16x16x8xf32>, vector<1x16x16x8xf32> -> vector<1x16x16x72xf32>
    %37 = vector.shape_cast %36 : vector<1x16x16x72xf32> to vector<256x72xf32>
    %38 = arith.truncf %37 : vector<256x72xf32> to vector<256x72xbf16>
    %c0_96 = arith.constant 0 : index
    %c0_97 = arith.constant 0 : index
    %39 = vector.load %arg4[%c0_96, %c0_97] : memref<72x8xbf16, #tpu.memory_space<vmem>>, vector<72x8xbf16>
    %cst_98 = arith.constant dense<0.000000e+00> : vector<256x8xf32>
    %40 = tpu.matmul %38, %39, %cst_98 {dimension_numbers = #tpu.dot_dimension_numbers<[1], [0], [0], [1], [0, 0, 1, 1], [], []>} : vector<256x72xbf16>, vector<72x8xbf16>, vector<256x8xf32> -> vector<256x8xf32>
    %c0_99 = arith.constant 0 : index
    %c0_100 = arith.constant 0 : index
    %41 = vector.load %arg5[%c0_99, %c0_100] : memref<1x8xf32, #tpu.memory_space<vmem>>, vector<1x8xf32>
    %42 = vector.broadcast %41 : vector<1x8xf32> to vector<256x8xf32>
    %43 = arith.addf %40, %42 : vector<256x8xf32>
    %cst_101 = arith.constant 0.000000e+00 : f32
    %44 = vector.broadcast %cst_101 : f32 to vector<256x8xf32>
    %45 = arith.maximumf %43, %44 : vector<256x8xf32>
    %46 = vector.shape_cast %45 : vector<256x8xf32> to vector<1x16x16x8xf32>
    %c0_102 = arith.constant 0 : index
    %c0_103 = arith.constant 0 : index
    %c0_104 = arith.constant 0 : index
    %c0_105 = arith.constant 0 : index
    %47 = vector.load %arg6[%c0_102, %c0_103, %c0_104, %c0_105] : memref<1x16x16x8xf32, #tpu.memory_space<vmem>>, vector<1x16x16x8xf32>
    tpu.vector_store %arg6[%c0_102, %c0_103, %c0_104, %c0_105], %46 {strides = array<i32>} : memref<1x16x16x8xf32, #tpu.memory_space<vmem>>, vector<1x16x16x8xf32>,
    return
  }
  func.func @transform_0(%arg0: i32) -> (i32, i32, i32, i32) {
    %c0_i32 = arith.constant 0 : i32
    %c0_i32_0 = arith.constant 0 : i32
    %c0_i32_1 = arith.constant 0 : i32
    %c0_i32_2 = arith.constant 0 : i32
    return %arg0, %c0_i32, %c0_i32_0, %c0_i32_1 : i32, i32, i32, i32
  }
  func.func @transform_1(%arg0: i32) -> (i32, i32) {
    %c0_i32 = arith.constant 0 : i32
    %c0_i32_0 = arith.constant 0 : i32
    %c0_i32_1 = arith.constant 0 : i32
    return %c0_i32, %c0_i32_0 : i32, i32
  }
  func.func @transform_2(%arg0: i32) -> (i32, i32) {
    %c0_i32 = arith.constant 0 : i32
    %c0_i32_0 = arith.constant 0 : i32
    %c0_i32_1 = arith.constant 0 : i32
    return %c0_i32, %c0_i32_0 : i32, i32
  }
  func.func @transform_3(%arg0: i32) -> (i32, i32) {
    %c0_i32 = arith.constant 0 : i32
    %c0_i32_0 = arith.constant 0 : i32
    %c0_i32_1 = arith.constant 0 : i32
    return %c0_i32, %c0_i32_0 : i32, i32
  }
  func.func @transform_4(%arg0: i32) -> (i32, i32) {
    %c0_i32 = arith.constant 0 : i32
    %c0_i32_0 = arith.constant 0 : i32
    %c0_i32_1 = arith.constant 0 : i32
    return %c0_i32, %c0_i32_0 : i32, i32
  }
  func.func @transform_5(%arg0: i32) -> (i32, i32, i32, i32) {
    %c0_i32 = arith.constant 0 : i32
    %c0_i32_0 = arith.constant 0 : i32
    %c0_i32_1 = arith.constant 0 : i32
    %c0_i32_2 = arith.constant 0 : i32
    return %arg0, %c0_i32, %c0_i32_0, %c0_i32_1 : i32, i32, i32, i32
  }
}

module attributes {stable_mosaic.version = 11 : i64} {
  func.func @_double_conv_kernel(%arg0: i32, %arg1: memref<1x8x8x8xf32, #tpu.memory_space<vmem>>, %arg2: memref<72x16xbf16, #tpu.memory_space<vmem>>, %arg3: memref<1x16xf32, #tpu.memory_space<vmem>>, %arg4: memref<144x16xbf16, #tpu.memory_space<vmem>>, %arg5: memref<1x16xf32, #tpu.memory_space<vmem>>, %arg6: memref<1x8x8x16xf32, #tpu.memory_space<vmem>>, %arg7: memref<1x10x10x8xf32, #tpu.memory_space<vmem>>, %arg8: memref<1x10x10x16xf32, #tpu.memory_space<vmem>>) attributes {dimension_semantics = [#tpu.dimension_semantics<parallel>], iteration_bounds = array<i64: 2>, scalar_prefetch = 0 : i64, scratch_operands = 2 : i64, tpu.core_type = #tpu.core_type<tc>, window_params = [{transform_indices = @transform_0, window_bounds = array<i64: 1, 8, 8, 8>}, {pipeline_mode = #tpu.pipeline_mode<synchronous>, transform_indices = @transform_1, window_bounds = array<i64: 72, 16>}, {pipeline_mode = #tpu.pipeline_mode<synchronous>, transform_indices = @transform_2, window_bounds = array<i64: 1, 16>}, {pipeline_mode = #tpu.pipeline_mode<synchronous>, transform_indices = @transform_3, window_bounds = array<i64: 144, 16>}, {pipeline_mode = #tpu.pipeline_mode<synchronous>, transform_indices = @transform_4, window_bounds = array<i64: 1, 16>}, {transform_indices = @transform_5, window_bounds = array<i64: 1, 8, 8, 16>}]} {
    %cst = arith.constant 0.000000e+00 : f32
    %0 = vector.broadcast %cst : f32 to vector<1x10x10x8xf32>
    %c0 = arith.constant 0 : index
    %c0_0 = arith.constant 0 : index
    %c0_1 = arith.constant 0 : index
    %c0_2 = arith.constant 0 : index
    %1 = vector.load %arg7[%c0, %c0_0, %c0_1, %c0_2] : memref<1x10x10x8xf32, #tpu.memory_space<vmem>>, vector<1x10x10x8xf32>
    tpu.vector_store %arg7[%c0, %c0_0, %c0_1, %c0_2], %0 {strides = array<i32>} : memref<1x10x10x8xf32, #tpu.memory_space<vmem>>, vector<1x10x10x8xf32>,
    %c0_3 = arith.constant 0 : index
    %c0_4 = arith.constant 0 : index
    %c0_5 = arith.constant 0 : index
    %c0_6 = arith.constant 0 : index
    %2 = vector.load %arg1[%c0_3, %c0_4, %c0_5, %c0_6] : memref<1x8x8x8xf32, #tpu.memory_space<vmem>>, vector<1x8x8x8xf32>
    %c0_7 = arith.constant 0 : index
    %c1 = arith.constant 1 : index
    %c1_8 = arith.constant 1 : index
    %c0_9 = arith.constant 0 : index
    %3 = vector.load %arg7[%c0_7, %c1, %c1_8, %c0_9] : memref<1x10x10x8xf32, #tpu.memory_space<vmem>>, vector<1x8x8x8xf32>
    tpu.vector_store %arg7[%c0_7, %c1, %c1_8, %c0_9], %2 {strides = array<i32>} : memref<1x10x10x8xf32, #tpu.memory_space<vmem>>, vector<1x8x8x8xf32>,
    %c0_10 = arith.constant 0 : index
    %c0_11 = arith.constant 0 : index
    %c0_12 = arith.constant 0 : index
    %c0_13 = arith.constant 0 : index
    %4 = vector.load %arg7[%c0_10, %c0_11, %c0_12, %c0_13] : memref<1x10x10x8xf32, #tpu.memory_space<vmem>>, vector<1x8x8x8xf32>
    %c0_14 = arith.constant 0 : index
    %c0_15 = arith.constant 0 : index
    %c1_16 = arith.constant 1 : index
    %c0_17 = arith.constant 0 : index
    %5 = vector.load %arg7[%c0_14, %c0_15, %c1_16, %c0_17] : memref<1x10x10x8xf32, #tpu.memory_space<vmem>>, vector<1x8x8x8xf32>
    %c0_18 = arith.constant 0 : index
    %c0_19 = arith.constant 0 : index
    %c2 = arith.constant 2 : index
    %c0_20 = arith.constant 0 : index
    %6 = vector.load %arg7[%c0_18, %c0_19, %c2, %c0_20] : memref<1x10x10x8xf32, #tpu.memory_space<vmem>>, vector<1x8x8x8xf32>
    %c0_21 = arith.constant 0 : index
    %c1_22 = arith.constant 1 : index
    %c0_23 = arith.constant 0 : index
    %c0_24 = arith.constant 0 : index
    %7 = vector.load %arg7[%c0_21, %c1_22, %c0_23, %c0_24] : memref<1x10x10x8xf32, #tpu.memory_space<vmem>>, vector<1x8x8x8xf32>
    %c0_25 = arith.constant 0 : index
    %c1_26 = arith.constant 1 : index
    %c1_27 = arith.constant 1 : index
    %c0_28 = arith.constant 0 : index
    %8 = vector.load %arg7[%c0_25, %c1_26, %c1_27, %c0_28] : memref<1x10x10x8xf32, #tpu.memory_space<vmem>>, vector<1x8x8x8xf32>
    %c0_29 = arith.constant 0 : index
    %c1_30 = arith.constant 1 : index
    %c2_31 = arith.constant 2 : index
    %c0_32 = arith.constant 0 : index
    %9 = vector.load %arg7[%c0_29, %c1_30, %c2_31, %c0_32] : memref<1x10x10x8xf32, #tpu.memory_space<vmem>>, vector<1x8x8x8xf32>
    %c0_33 = arith.constant 0 : index
    %c2_34 = arith.constant 2 : index
    %c0_35 = arith.constant 0 : index
    %c0_36 = arith.constant 0 : index
    %10 = vector.load %arg7[%c0_33, %c2_34, %c0_35, %c0_36] : memref<1x10x10x8xf32, #tpu.memory_space<vmem>>, vector<1x8x8x8xf32>
    %c0_37 = arith.constant 0 : index
    %c2_38 = arith.constant 2 : index
    %c1_39 = arith.constant 1 : index
    %c0_40 = arith.constant 0 : index
    %11 = vector.load %arg7[%c0_37, %c2_38, %c1_39, %c0_40] : memref<1x10x10x8xf32, #tpu.memory_space<vmem>>, vector<1x8x8x8xf32>
    %c0_41 = arith.constant 0 : index
    %c2_42 = arith.constant 2 : index
    %c2_43 = arith.constant 2 : index
    %c0_44 = arith.constant 0 : index
    %12 = vector.load %arg7[%c0_41, %c2_42, %c2_43, %c0_44] : memref<1x10x10x8xf32, #tpu.memory_space<vmem>>, vector<1x8x8x8xf32>
    %13 = tpu.concatenate %4, %5, %6, %7, %8, %9, %10, %11, %12 in 3 : vector<1x8x8x8xf32>, vector<1x8x8x8xf32>, vector<1x8x8x8xf32>, vector<1x8x8x8xf32>, vector<1x8x8x8xf32>, vector<1x8x8x8xf32>, vector<1x8x8x8xf32>, vector<1x8x8x8xf32>, vector<1x8x8x8xf32> -> vector<1x8x8x72xf32>
    %14 = vector.shape_cast %13 : vector<1x8x8x72xf32> to vector<64x72xf32>
    %15 = arith.truncf %14 : vector<64x72xf32> to vector<64x72xbf16>
    %c0_45 = arith.constant 0 : index
    %c0_46 = arith.constant 0 : index
    %16 = vector.load %arg2[%c0_45, %c0_46] : memref<72x16xbf16, #tpu.memory_space<vmem>>, vector<72x16xbf16>
    %cst_47 = arith.constant dense<0.000000e+00> : vector<64x16xf32>
    %17 = tpu.matmul %15, %16, %cst_47 {dimension_numbers = #tpu.dot_dimension_numbers<[1], [0], [0], [1], [0, 0, 1, 1], [], []>} : vector<64x72xbf16>, vector<72x16xbf16>, vector<64x16xf32> -> vector<64x16xf32>
    %c0_48 = arith.constant 0 : index
    %c0_49 = arith.constant 0 : index
    %18 = vector.load %arg3[%c0_48, %c0_49] : memref<1x16xf32, #tpu.memory_space<vmem>>, vector<1x16xf32>
    %19 = vector.broadcast %18 : vector<1x16xf32> to vector<64x16xf32>
    %20 = arith.addf %17, %19 : vector<64x16xf32>
    %cst_50 = arith.constant 0.000000e+00 : f32
    %21 = vector.broadcast %cst_50 : f32 to vector<64x16xf32>
    %22 = arith.maximumf %20, %21 : vector<64x16xf32>
    %cst_51 = arith.constant 0.000000e+00 : f32
    %23 = vector.broadcast %cst_51 : f32 to vector<1x10x10x16xf32>
    %c0_52 = arith.constant 0 : index
    %c0_53 = arith.constant 0 : index
    %c0_54 = arith.constant 0 : index
    %c0_55 = arith.constant 0 : index
    %24 = vector.load %arg8[%c0_52, %c0_53, %c0_54, %c0_55] : memref<1x10x10x16xf32, #tpu.memory_space<vmem>>, vector<1x10x10x16xf32>
    tpu.vector_store %arg8[%c0_52, %c0_53, %c0_54, %c0_55], %23 {strides = array<i32>} : memref<1x10x10x16xf32, #tpu.memory_space<vmem>>, vector<1x10x10x16xf32>,
    %25 = vector.shape_cast %22 : vector<64x16xf32> to vector<1x8x8x16xf32>
    %c0_56 = arith.constant 0 : index
    %c1_57 = arith.constant 1 : index
    %c1_58 = arith.constant 1 : index
    %c0_59 = arith.constant 0 : index
    %26 = vector.load %arg8[%c0_56, %c1_57, %c1_58, %c0_59] : memref<1x10x10x16xf32, #tpu.memory_space<vmem>>, vector<1x8x8x16xf32>
    tpu.vector_store %arg8[%c0_56, %c1_57, %c1_58, %c0_59], %25 {strides = array<i32>} : memref<1x10x10x16xf32, #tpu.memory_space<vmem>>, vector<1x8x8x16xf32>,
    %c0_60 = arith.constant 0 : index
    %c0_61 = arith.constant 0 : index
    %c0_62 = arith.constant 0 : index
    %c0_63 = arith.constant 0 : index
    %27 = vector.load %arg8[%c0_60, %c0_61, %c0_62, %c0_63] : memref<1x10x10x16xf32, #tpu.memory_space<vmem>>, vector<1x8x8x16xf32>
    %c0_64 = arith.constant 0 : index
    %c0_65 = arith.constant 0 : index
    %c1_66 = arith.constant 1 : index
    %c0_67 = arith.constant 0 : index
    %28 = vector.load %arg8[%c0_64, %c0_65, %c1_66, %c0_67] : memref<1x10x10x16xf32, #tpu.memory_space<vmem>>, vector<1x8x8x16xf32>
    %c0_68 = arith.constant 0 : index
    %c0_69 = arith.constant 0 : index
    %c2_70 = arith.constant 2 : index
    %c0_71 = arith.constant 0 : index
    %29 = vector.load %arg8[%c0_68, %c0_69, %c2_70, %c0_71] : memref<1x10x10x16xf32, #tpu.memory_space<vmem>>, vector<1x8x8x16xf32>
    %c0_72 = arith.constant 0 : index
    %c1_73 = arith.constant 1 : index
    %c0_74 = arith.constant 0 : index
    %c0_75 = arith.constant 0 : index
    %30 = vector.load %arg8[%c0_72, %c1_73, %c0_74, %c0_75] : memref<1x10x10x16xf32, #tpu.memory_space<vmem>>, vector<1x8x8x16xf32>
    %c0_76 = arith.constant 0 : index
    %c1_77 = arith.constant 1 : index
    %c1_78 = arith.constant 1 : index
    %c0_79 = arith.constant 0 : index
    %31 = vector.load %arg8[%c0_76, %c1_77, %c1_78, %c0_79] : memref<1x10x10x16xf32, #tpu.memory_space<vmem>>, vector<1x8x8x16xf32>
    %c0_80 = arith.constant 0 : index
    %c1_81 = arith.constant 1 : index
    %c2_82 = arith.constant 2 : index
    %c0_83 = arith.constant 0 : index
    %32 = vector.load %arg8[%c0_80, %c1_81, %c2_82, %c0_83] : memref<1x10x10x16xf32, #tpu.memory_space<vmem>>, vector<1x8x8x16xf32>
    %c0_84 = arith.constant 0 : index
    %c2_85 = arith.constant 2 : index
    %c0_86 = arith.constant 0 : index
    %c0_87 = arith.constant 0 : index
    %33 = vector.load %arg8[%c0_84, %c2_85, %c0_86, %c0_87] : memref<1x10x10x16xf32, #tpu.memory_space<vmem>>, vector<1x8x8x16xf32>
    %c0_88 = arith.constant 0 : index
    %c2_89 = arith.constant 2 : index
    %c1_90 = arith.constant 1 : index
    %c0_91 = arith.constant 0 : index
    %34 = vector.load %arg8[%c0_88, %c2_89, %c1_90, %c0_91] : memref<1x10x10x16xf32, #tpu.memory_space<vmem>>, vector<1x8x8x16xf32>
    %c0_92 = arith.constant 0 : index
    %c2_93 = arith.constant 2 : index
    %c2_94 = arith.constant 2 : index
    %c0_95 = arith.constant 0 : index
    %35 = vector.load %arg8[%c0_92, %c2_93, %c2_94, %c0_95] : memref<1x10x10x16xf32, #tpu.memory_space<vmem>>, vector<1x8x8x16xf32>
    %36 = tpu.concatenate %27, %28, %29, %30, %31, %32, %33, %34, %35 in 3 : vector<1x8x8x16xf32>, vector<1x8x8x16xf32>, vector<1x8x8x16xf32>, vector<1x8x8x16xf32>, vector<1x8x8x16xf32>, vector<1x8x8x16xf32>, vector<1x8x8x16xf32>, vector<1x8x8x16xf32>, vector<1x8x8x16xf32> -> vector<1x8x8x144xf32>
    %37 = vector.shape_cast %36 : vector<1x8x8x144xf32> to vector<64x144xf32>
    %38 = arith.truncf %37 : vector<64x144xf32> to vector<64x144xbf16>
    %c0_96 = arith.constant 0 : index
    %c0_97 = arith.constant 0 : index
    %39 = vector.load %arg4[%c0_96, %c0_97] : memref<144x16xbf16, #tpu.memory_space<vmem>>, vector<144x16xbf16>
    %cst_98 = arith.constant dense<0.000000e+00> : vector<64x16xf32>
    %40 = tpu.matmul %38, %39, %cst_98 {dimension_numbers = #tpu.dot_dimension_numbers<[1], [0], [0], [1], [0, 0, 1, 1], [], []>} : vector<64x144xbf16>, vector<144x16xbf16>, vector<64x16xf32> -> vector<64x16xf32>
    %c0_99 = arith.constant 0 : index
    %c0_100 = arith.constant 0 : index
    %41 = vector.load %arg5[%c0_99, %c0_100] : memref<1x16xf32, #tpu.memory_space<vmem>>, vector<1x16xf32>
    %42 = vector.broadcast %41 : vector<1x16xf32> to vector<64x16xf32>
    %43 = arith.addf %40, %42 : vector<64x16xf32>
    %cst_101 = arith.constant 0.000000e+00 : f32
    %44 = vector.broadcast %cst_101 : f32 to vector<64x16xf32>
    %45 = arith.maximumf %43, %44 : vector<64x16xf32>
    %46 = vector.shape_cast %45 : vector<64x16xf32> to vector<1x8x8x16xf32>
    %c0_102 = arith.constant 0 : index
    %c0_103 = arith.constant 0 : index
    %c0_104 = arith.constant 0 : index
    %c0_105 = arith.constant 0 : index
    %47 = vector.load %arg6[%c0_102, %c0_103, %c0_104, %c0_105] : memref<1x8x8x16xf32, #tpu.memory_space<vmem>>, vector<1x8x8x16xf32>
    tpu.vector_store %arg6[%c0_102, %c0_103, %c0_104, %c0_105], %46 {strides = array<i32>} : memref<1x8x8x16xf32, #tpu.memory_space<vmem>>, vector<1x8x8x16xf32>,
    return
  }
  func.func @transform_0(%arg0: i32) -> (i32, i32, i32, i32) {
    %c0_i32 = arith.constant 0 : i32
    %c0_i32_0 = arith.constant 0 : i32
    %c0_i32_1 = arith.constant 0 : i32
    %c0_i32_2 = arith.constant 0 : i32
    return %arg0, %c0_i32, %c0_i32_0, %c0_i32_1 : i32, i32, i32, i32
  }
  func.func @transform_1(%arg0: i32) -> (i32, i32) {
    %c0_i32 = arith.constant 0 : i32
    %c0_i32_0 = arith.constant 0 : i32
    %c0_i32_1 = arith.constant 0 : i32
    return %c0_i32, %c0_i32_0 : i32, i32
  }
  func.func @transform_2(%arg0: i32) -> (i32, i32) {
    %c0_i32 = arith.constant 0 : i32
    %c0_i32_0 = arith.constant 0 : i32
    %c0_i32_1 = arith.constant 0 : i32
    return %c0_i32, %c0_i32_0 : i32, i32
  }
  func.func @transform_3(%arg0: i32) -> (i32, i32) {
    %c0_i32 = arith.constant 0 : i32
    %c0_i32_0 = arith.constant 0 : i32
    %c0_i32_1 = arith.constant 0 : i32
    return %c0_i32, %c0_i32_0 : i32, i32
  }
  func.func @transform_4(%arg0: i32) -> (i32, i32) {
    %c0_i32 = arith.constant 0 : i32
    %c0_i32_0 = arith.constant 0 : i32
    %c0_i32_1 = arith.constant 0 : i32
    return %c0_i32, %c0_i32_0 : i32, i32
  }
  func.func @transform_5(%arg0: i32) -> (i32, i32, i32, i32) {
    %c0_i32 = arith.constant 0 : i32
    %c0_i32_0 = arith.constant 0 : i32
    %c0_i32_1 = arith.constant 0 : i32
    %c0_i32_2 = arith.constant 0 : i32
    return %arg0, %c0_i32, %c0_i32_0, %c0_i32_1 : i32, i32, i32, i32
  }
}

module attributes {stable_mosaic.version = 11 : i64} {
  func.func @_maxpool2x2_kernel(%arg0: i32, %arg1: memref<1x4x2x4x32xf32, #tpu.memory_space<vmem>>, %arg2: memref<1x4x4x16xf32, #tpu.memory_space<vmem>>) attributes {dimension_semantics = [#tpu.dimension_semantics<parallel>], iteration_bounds = array<i64: 2>, scalar_prefetch = 0 : i64, scratch_operands = 0 : i64, tpu.core_type = #tpu.core_type<tc>, window_params = [{transform_indices = @transform_0, window_bounds = array<i64: 1, 4, 2, 4, 32>}, {transform_indices = @transform_1, window_bounds = array<i64: 1, 4, 4, 16>}]} {
    %c0 = arith.constant 0 : index
    %c0_0 = arith.constant 0 : index
    %c0_1 = arith.constant 0 : index
    %c0_2 = arith.constant 0 : index
    %c0_3 = arith.constant 0 : index
    %0 = vector.load %arg1[%c0, %c0_0, %c0_1, %c0_2, %c0_3] : memref<1x4x2x4x32xf32, #tpu.memory_space<vmem>>, vector<1x4x2x4x32xf32>
    %1 = vector.extract_strided_slice %0 {offsets = [0, 0, 0, 0, 0], sizes = [1, 4, 1, 4, 32], strides = [1, 1, 1, 1, 1]} : vector<1x4x2x4x32xf32> to vector<1x4x1x4x32xf32>
    %2 = vector.shape_cast %1 : vector<1x4x1x4x32xf32> to vector<1x4x4x32xf32>
    %3 = vector.extract_strided_slice %0 {offsets = [0, 0, 1, 0, 0], sizes = [1, 4, 1, 4, 32], strides = [1, 1, 1, 1, 1]} : vector<1x4x2x4x32xf32> to vector<1x4x1x4x32xf32>
    %4 = vector.shape_cast %3 : vector<1x4x1x4x32xf32> to vector<1x4x4x32xf32>
    %5 = arith.maximumf %2, %4 : vector<1x4x4x32xf32>
    %6 = vector.extract_strided_slice %5 {offsets = [0, 0, 0, 0], sizes = [1, 4, 4, 16], strides = [1, 1, 1, 1]} : vector<1x4x4x32xf32> to vector<1x4x4x16xf32>
    %7 = vector.extract_strided_slice %5 {offsets = [0, 0, 0, 16], sizes = [1, 4, 4, 16], strides = [1, 1, 1, 1]} : vector<1x4x4x32xf32> to vector<1x4x4x16xf32>
    %8 = arith.maximumf %6, %7 : vector<1x4x4x16xf32>
    %c0_4 = arith.constant 0 : index
    %c0_5 = arith.constant 0 : index
    %c0_6 = arith.constant 0 : index
    %c0_7 = arith.constant 0 : index
    %9 = vector.load %arg2[%c0_4, %c0_5, %c0_6, %c0_7] : memref<1x4x4x16xf32, #tpu.memory_space<vmem>>, vector<1x4x4x16xf32>
    tpu.vector_store %arg2[%c0_4, %c0_5, %c0_6, %c0_7], %8 {strides = array<i32>} : memref<1x4x4x16xf32, #tpu.memory_space<vmem>>, vector<1x4x4x16xf32>,
    return
  }
  func.func @transform_0(%arg0: i32) -> (i32, i32, i32, i32, i32) {
    %c0_i32 = arith.constant 0 : i32
    %c0_i32_0 = arith.constant 0 : i32
    %c0_i32_1 = arith.constant 0 : i32
    %c0_i32_2 = arith.constant 0 : i32
    %c0_i32_3 = arith.constant 0 : i32
    return %arg0, %c0_i32, %c0_i32_0, %c0_i32_1, %c0_i32_2 : i32, i32, i32, i32, i32
  }
  func.func @transform_1(%arg0: i32) -> (i32, i32, i32, i32) {
    %c0_i32 = arith.constant 0 : i32
    %c0_i32_0 = arith.constant 0 : i32
    %c0_i32_1 = arith.constant 0 : i32
    %c0_i32_2 = arith.constant 0 : i32
    return %arg0, %c0_i32, %c0_i32_0, %c0_i32_1 : i32, i32, i32, i32
  }
}

</mosaic_0001>

<llo_original>
// kernel: encoder_blocks_forward.5
$region0: #{encoder_blocks_forward.5}
  #allocation0 [shape = 'u32[]', space=smem, size = 0x4, offset = 0x4, fixed_abs, tag = 'smem constant byte address 0x4 - core index']
  #allocation1 [shape = 'u32[144,128]{1,0:T(1,128)}', space=vmem, size = 0x12000, scoped, tag = 'internal scratch']
  %s0 = inlined_call_operand.vmem [shape: f32[2,8,2,8,16], index: 0, kind: input, shape index: {}]
  %s1 = inlined_call_operand.vmem [shape: f32[2,8,8,8], index: 1, kind: output, shape index: {}]
  %s2 = sld [smem:[#allocation0]]
  $region37: #{encoder_blocks_forward.5} parent=0
    _
  %s4 = ssub.s32 1, %s2
  %s5 = scalar_select 0, %s4, %s2
  loop: start=0, step=1, limit=4
  $region2: #{encoder_blocks_forward.5} parent=0 // loop_pre_header
    _
  $region3: #{encoder_blocks_forward.5} parent=0 // loop_header
    %s7 = sphi 0, %s11
    %p8 = scmp.ge.s32.totalorder %s7, 4
    %s17 = sphi 0, %s19
    %s20 = sphi 0, %s17
    %s21 = sphi 0, %s20
    %s37 = sphi 0, %s21
    %s43 = sphi 0, %s45
    %s46 = sphi 0, %s43
    %s47 = sphi 0, %s46
    %s63 = sphi 0, %s47
  $region4: #{encoder_blocks_forward.5} parent=0 // loop_header_branch
    %10 = sbr.rel (%p8) target = $region8
  $region5: #{encoder_blocks_forward.5} parent=0 // loop_body
    %s12 = ssub.s32 %s7, 1
    %s13 = ssub.s32 %s7, 2
    %s14 = sadd.s32 %s7, 1
    %s15 = ssub.s32 %s7, %s14
    %p16 = scmp.eq.s32.totalorder %s15, 0
    %s18 = sadd.s32 %s17, 1
    %s19 = scalar_select %p16, %s17, %s18
    %p22 = pneg %p16
    %p23 = scmp.eq.s32.totalorder %s7, 1
    %p24 = por %p22, %p23
    %p25 = scmp.ne.s32.totalorder %s17, %s20
    %p26 = scmp.eq.s32.totalorder %s7, 0
    %p27 = por %p25, %p26
    %p28 = scmp.ne.s32.totalorder %s17, %s20
    %p29 = scmp.eq.s32.totalorder %s12, 1
    %p30 = por %p28, %p29
    %p31 = scmp.ne.s32.totalorder %s20, %s21
    %p32 = scmp.eq.s32.totalorder %s12, 0
    %p33 = por %p31, %p32
    %p34 = scmp.ne.s32.totalorder %s20, %s21
    %p35 = scmp.eq.s32.totalorder %s13, 1
    %p36 = por %p34, %p35
    %p38 = scmp.ne.s32.totalorder %s21, %s37
    %p39 = scmp.eq.s32.totalorder %s13, 0
    %p40 = por %p38, %p39
    %s41 = ssub.s32 %s7, %s14
    %p42 = scmp.eq.s32.totalorder %s41, 0
    %s44 = sadd.s32 %s43, 1
    %s45 = scalar_select %p42, %s43, %s44
    %p48 = pneg %p42
    %p49 = scmp.eq.s32.totalorder %s7, 1
    %p50 = por %p48, %p49
    %p51 = scmp.ne.s32.totalorder %s43, %s46
    %p52 = scmp.eq.s32.totalorder %s7, 0
    %p53 = por %p51, %p52
    %p54 = scmp.ne.s32.totalorder %s43, %s46
    %p55 = scmp.eq.s32.totalorder %s12, 1
    %p56 = por %p54, %p55
    %p57 = scmp.ne.s32.totalorder %s46, %s47
    %p58 = scmp.eq.s32.totalorder %s12, 0
    %p59 = por %p57, %p58
    %p60 = scmp.ne.s32.totalorder %s46, %s47
    %p61 = scmp.eq.s32.totalorder %s13, 1
    %p62 = por %p60, %p61
    %p64 = scmp.ne.s32.totalorder %s47, %s63
    %p65 = scmp.eq.s32.totalorder %s13, 0
    %p66 = por %p64, %p65
    %p67 = scmp.le.s32.totalorder 1, %s7
    %p68 = scmp.lt.s32.totalorder %s7, 3
    %p69 = pnand %p67, %p68
    %p70 = pneg %p69
    // Predicated region
    $region9: #{encoder_blocks_forward.5} parent=5 // pred_check
      _
    $region10: #{encoder_blocks_forward.5} parent=5 // pred_check_branch
      %72 = sbr.rel (%p69) target = $region12
    $region11: #{encoder_blocks_forward.5} parent=5 // pred_region
      %s73 = ssub.s32 %s7, 1
    $region12: #{encoder_blocks_forward.5} parent=5 // pred_fallthru
      _
    %p74 = scmp.lt.s32.totalorder %s7, 2
    // Predicated region
    $region13: #{encoder_blocks_forward.5} parent=5 // pred_check
      %p75 = pneg %p74
    $region14: #{encoder_blocks_forward.5} parent=5 // pred_check_branch
      %77 = sbr.rel (%p75) target = $region16
    $region15: #{encoder_blocks_forward.5} parent=5 // pred_region
      // Predicated region
      $region17: #{encoder_blocks_forward.5} parent=15 // pred_check
        %p78 = pneg %p27
      $region18: #{encoder_blocks_forward.5} parent=15 // pred_check_branch
        %80 = sbr.rel (%p78) target = $region20
      $region19: #{encoder_blocks_forward.5} parent=15 // pred_region
        %p81 = scmp.lt.s32.totalorder %s7, 1
        %s82 = scalar_select %p81, %s7, 1
        %s83 = smul.addr %s82, 16
        %s84 = smul.addr %s83, 8
        %s85 = scalar_lea.vmem %s0, %s84
      $region20: #{encoder_blocks_forward.5} parent=15 // pred_fallthru
        _
    $region16: #{encoder_blocks_forward.5} parent=5 // pred_fallthru
      _
    %p86 = scmp.le.s32.totalorder 1, %s7
    %p87 = scmp.lt.s32.totalorder %s7, 3
    %p88 = pnand %p86, %p87
    %p89 = pneg %p88
    // Predicated region
    $region21: #{encoder_blocks_forward.5} parent=5 // pred_check
      _
    $region22: #{encoder_blocks_forward.5} parent=5 // pred_check_branch
      %91 = sbr.rel (%p88) target = $region24
    $region23: #{encoder_blocks_forward.5} parent=5 // pred_region
      %s92 = ssub.s32 %s7, 1
      %p93 = scmp.lt.s32.totalorder %s12, 1
      %s94 = scalar_select %p93, %s12, 1
      %s95 = smul.addr %s94, 16
      %s96 = smul.addr %s95, 8
      %s97 = scalar_lea.vmem %s0, %s96
      %p98 = pneg %p33
      %p99 = pneg %p30
      %p100 = pneg %p59
      %p101 = pneg %p56
      %p102 = scmp.lt.s32.totalorder %s12, 1
      %s103 = scalar_select %p102, %s12, 1
      %s104 = smul.addr %s103, 8
      %s105 = smul.addr %s104, 8
      %s106 = scalar_lea.vmem %s1, %s105
      %p107 = scmp.lt.s32.totalorder %s12, 1
      %s108 = scalar_select %p107, %s12, 1
      %s109 = smul.addr %s108, 16
      %s110 = smul.addr %s109, 8
      %s111 = scalar_lea.vmem %s0, %s110
      %p112 = scmp.lt.s32.totalorder %s12, 1
      %s113 = scalar_select %p112, %s12, 1
      %s114 = smul.addr %s113, 8
      %s115 = smul.addr %s114, 8
      %s116 = scalar_lea.vmem %s1, %s115
      %v117 = vld [vmem:[%s111] sm:$0xff]
      %v118 = vld [vmem:[%s111 + $0x8] sm:$0xff]
      %v119 = vld [vmem:[%s111 + $0x10] sm:$0xff]
      %v120 = vld [vmem:[%s111 + $0x18] sm:$0xff]
      %v121 = vld [vmem:[%s111 + $0x20] sm:$0xff]
      %v122 = vld [vmem:[%s111 + $0x28] sm:$0xff]
      %v123 = vld [vmem:[%s111 + $0x30] sm:$0xff]
      %v124 = vld [vmem:[%s111 + $0x38] sm:$0xff]
      %v125 = vld [vmem:[%s111 + $0x40] sm:$0xff]
      %v126 = vld [vmem:[%s111 + $0x48] sm:$0xff]
      %v127 = vld [vmem:[%s111 + $0x50] sm:$0xff]
      %v128 = vld [vmem:[%s111 + $0x58] sm:$0xff]
      %v129 = vld [vmem:[%s111 + $0x60] sm:$0xff]
      %v130 = vld [vmem:[%s111 + $0x68] sm:$0xff]
      %v131 = vld [vmem:[%s111 + $0x70] sm:$0xff]
      %v132 = vld [vmem:[%s111 + $0x78] sm:$0xff]
      %v133 = vmax.f32 %v117, %v118
      %v134 = vmax.f32 %v119, %v120
      %v135 = vmax.f32 %v121, %v122
      %v136 = vmax.f32 %v123, %v124
      %v137 = vmax.f32 %v125, %v126
      %v138 = vmax.f32 %v127, %v128
      %v139 = vmax.f32 %v129, %v130
      %v140 = vmax.f32 %v131, %v132
      %149 = vrot.lane.b32.xlu0 %v133, 120
      %v150 = vpop.permute.xlu0 %149
      %151 = vrot.lane.b32.xlu0 %v134, 120
      %v152 = vpop.permute.xlu0 %151
      %153 = vrot.lane.b32.xlu0 %v135, 120
      %v154 = vpop.permute.xlu0 %153
      %155 = vrot.lane.b32.xlu0 %v136, 120
      %v156 = vpop.permute.xlu0 %155
      %157 = vrot.lane.b32.xlu0 %v137, 120
      %v158 = vpop.permute.xlu0 %157
      %159 = vrot.lane.b32.xlu0 %v138, 120
      %v160 = vpop.permute.xlu0 %159
      %161 = vrot.lane.b32.xlu0 %v139, 120
      %v162 = vpop.permute.xlu0 %161
      %163 = vrot.lane.b32.xlu0 %v140, 120
      %v164 = vpop.permute.xlu0 %163
      %v173 = vmax.f32 %v133, %v150
      %v174 = vmax.f32 %v134, %v152
      %v175 = vmax.f32 %v135, %v154
      %v176 = vmax.f32 %v136, %v156
      %v177 = vmax.f32 %v137, %v158
      %v178 = vmax.f32 %v138, %v160
      %v179 = vmax.f32 %v139, %v162
      %v180 = vmax.f32 %v140, %v164
      %vm181 = vcmask 64512
      %182 = vst.msk [vmem:[%s116] sm:$0xff] %vm181, %v173
      %183 = vst.msk [vmem:[%s116 + $0x8] sm:$0xff] %vm181, %v174
      %184 = vst.msk [vmem:[%s116 + $0x10] sm:$0xff] %vm181, %v175
      %185 = vst.msk [vmem:[%s116 + $0x18] sm:$0xff] %vm181, %v176
      %186 = vst.msk [vmem:[%s116 + $0x20] sm:$0xff] %vm181, %v177
      %187 = vst.msk [vmem:[%s116 + $0x28] sm:$0xff] %vm181, %v178
      %188 = vst.msk [vmem:[%s116 + $0x30] sm:$0xff] %vm181, %v179
      %189 = vst.msk [vmem:[%s116 + $0x38] sm:$0xff] %vm181, %v180
      %p190 = scmp.lt.s32.totalorder %s12, 1
      %s191 = scalar_select %p190, %s12, 1
      %s192 = smul.addr %s191, 8
      %s193 = smul.addr %s192, 8
      %s194 = scalar_lea.vmem %s1, %s193
      // Predicated region
      $region25: #{encoder_blocks_forward.5} parent=23 // pred_check
        %p195 = pneg %p56
      $region26: #{encoder_blocks_forward.5} parent=23 // pred_check_branch
        %197 = sbr.rel (%p195) target = $region28
      $region27: #{encoder_blocks_forward.5} parent=23 // pred_region
        _
      $region28: #{encoder_blocks_forward.5} parent=23 // pred_fallthru
        _
    $region24: #{encoder_blocks_forward.5} parent=5 // pred_fallthru
      _
    %p198 = scmp.le.s32.totalorder 2, %s7
    // Predicated region
    $region29: #{encoder_blocks_forward.5} parent=5 // pred_check
      %p199 = pneg %p198
    $region30: #{encoder_blocks_forward.5} parent=5 // pred_check_branch
      %201 = sbr.rel (%p199) target = $region32
    $region31: #{encoder_blocks_forward.5} parent=5 // pred_region
      %s202 = ssub.s32 %s7, 2
      // Predicated region
      $region33: #{encoder_blocks_forward.5} parent=31 // pred_check
        %p203 = pneg %p62
      $region34: #{encoder_blocks_forward.5} parent=31 // pred_check_branch
        %205 = sbr.rel (%p203) target = $region36
      $region35: #{encoder_blocks_forward.5} parent=31 // pred_region
        %p206 = scmp.lt.s32.totalorder %s13, 1
        %s207 = scalar_select %p206, %s13, 1
        %s208 = smul.addr %s207, 8
        %s209 = smul.addr %s208, 8
        %s210 = scalar_lea.vmem %s1, %s209
      $region36: #{encoder_blocks_forward.5} parent=31 // pred_fallthru
        _
    $region32: #{encoder_blocks_forward.5} parent=5 // pred_fallthru
      _
  $region6: #{encoder_blocks_forward.5} parent=0 // loop_footer
    %s11 = sadd.s32 1, %s7
  $region7: #{encoder_blocks_forward.5} parent=0 // loop_footer_branch
    %6 = sbr.rel target = $region3
  $region8: #{encoder_blocks_forward.5} parent=0 // loop_exit
    _

// kernel: encoder_blocks_forward.7
$region0: #{encoder_blocks_forward.7}
  #allocation0 [shape = 'u32[]', space=smem, size = 0x4, offset = 0x4, fixed_abs, tag = 'smem constant byte address 0x4 - core index']
  #allocation1 [shape = 'u32[144,128]{1,0:T(1,128)}', space=vmem, size = 0x12000, scoped, tag = 'internal scratch']
  %s0 = inlined_call_operand.vmem [shape: f32[2,4,2,4,32], index: 0, kind: input, shape index: {}]
  %s1 = inlined_call_operand.hbm [shape: f32[2,4,4,16], index: 1, kind: output, shape index: {}]
  %s2 = sld [smem:[#allocation0]]
  $region37: #{encoder_blocks_forward.7} parent=0
    _
  %s4 = ssub.s32 1, %s2
  %s5 = scalar_select 0, %s4, %s2
  $region1: #{encoder_blocks_forward.7} parent=0
    #allocation2 [shape = 'u8[16384]{0}', space=vmem, size = 0x4000, scoped, tag = 'output window, operand 0']
    #allocation3 [shape = 's32[2]{0}', space=sflag, size = 0x8, scoped, tag = 'scoped memory for encoder_blocks_forward.7']
    %6 = vsyncpa [#allocation3], 0
    %s7 = scalar_lea.sflag [#allocation3], 1
    %8 = vsyncpa %s7, 0
    loop: start=0, step=1, limit=4
    $region2: #{encoder_blocks_forward.7} parent=1 // loop_pre_header
      _
    $region3: #{encoder_blocks_forward.7} parent=1 // loop_header
      %s10 = sphi 0, %s14
      %p11 = scmp.ge.s32.totalorder %s10, 4
      %s20 = sphi 0, %s22
      %s23 = sphi 0, %s20
      %s24 = sphi 0, %s23
      %s40 = sphi 0, %s24
      %s46 = sphi 0, %s48
      %s49 = sphi 0, %s46
      %s50 = sphi 0, %s49
      %s66 = sphi 0, %s50
    $region4: #{encoder_blocks_forward.7} parent=1 // loop_header_branch
      %13 = sbr.rel (%p11) target = $region8
    $region5: #{encoder_blocks_forward.7} parent=1 // loop_body
      %s15 = ssub.s32 %s10, 1
      %s16 = ssub.s32 %s10, 2
      %s17 = sadd.s32 %s10, 1
      %s18 = ssub.s32 %s10, %s17
      %p19 = scmp.eq.s32.totalorder %s18, 0
      %s21 = sadd.s32 %s20, 1
      %s22 = scalar_select %p19, %s20, %s21
      %p25 = pneg %p19
      %p26 = scmp.eq.s32.totalorder %s10, 1
      %p27 = por %p25, %p26
      %p28 = scmp.ne.s32.totalorder %s20, %s23
      %p29 = scmp.eq.s32.totalorder %s10, 0
      %p30 = por %p28, %p29
      %p31 = scmp.ne.s32.totalorder %s20, %s23
      %p32 = scmp.eq.s32.totalorder %s15, 1
      %p33 = por %p31, %p32
      %p34 = scmp.ne.s32.totalorder %s23, %s24
      %p35 = scmp.eq.s32.totalorder %s15, 0
      %p36 = por %p34, %p35
      %p37 = scmp.ne.s32.totalorder %s23, %s24
      %p38 = scmp.eq.s32.totalorder %s16, 1
      %p39 = por %p37, %p38
      %p41 = scmp.ne.s32.totalorder %s24, %s40
      %p42 = scmp.eq.s32.totalorder %s16, 0
      %p43 = por %p41, %p42
      %s44 = ssub.s32 %s10, %s17
      %p45 = scmp.eq.s32.totalorder %s44, 0
      %s47 = sadd.s32 %s46, 1
      %s48 = scalar_select %p45, %s46, %s47
      %p51 = pneg %p45
      %p52 = scmp.eq.s32.totalorder %s10, 1
      %p53 = por %p51, %p52
      %p54 = scmp.ne.s32.totalorder %s46, %s49
      %p55 = scmp.eq.s32.totalorder %s10, 0
      %p56 = por %p54, %p55
      %p57 = scmp.ne.s32.totalorder %s46, %s49
      %p58 = scmp.eq.s32.totalorder %s15, 1
      %p59 = por %p57, %p58
      %p60 = scmp.ne.s32.totalorder %s49, %s50
      %p61 = scmp.eq.s32.totalorder %s15, 0
      %p62 = por %p60, %p61
      %p63 = scmp.ne.s32.totalorder %s49, %s50
      %p64 = scmp.eq.s32.totalorder %s16, 1
      %p65 = por %p63, %p64
      %p67 = scmp.ne.s32.totalorder %s50, %s66
      %p68 = scmp.eq.s32.totalorder %s16, 0
      %p69 = por %p67, %p68
      %p70 = scmp.le.s32.totalorder 1, %s10
      %p71 = scmp.lt.s32.totalorder %s10, 3
      %p72 = pnand %p70, %p71
      %p73 = pneg %p72
      // Predicated region
      $region9: #{encoder_blocks_forward.7} parent=5 // pred_check
        _
      $region10: #{encoder_blocks_forward.7} parent=5 // pred_check_branch
        %75 = sbr.rel (%p72) target = $region12
      $region11: #{encoder_blocks_forward.7} parent=5 // pred_region
        %s76 = ssub.s32 %s10, 1
      $region12: #{encoder_blocks_forward.7} parent=5 // pred_fallthru
        _
      %p77 = scmp.lt.s32.totalorder %s10, 2
      // Predicated region
      $region13: #{encoder_blocks_forward.7} parent=5 // pred_check
        %p78 = pneg %p77
      $region14: #{encoder_blocks_forward.7} parent=5 // pred_check_branch
        %80 = sbr.rel (%p78) target = $region16
      $region15: #{encoder_blocks_forward.7} parent=5 // pred_region
        // Predicated region
        $region17: #{encoder_blocks_forward.7} parent=15 // pred_check
          %p81 = pneg %p30
        $region18: #{encoder_blocks_forward.7} parent=15 // pred_check_branch
          %83 = sbr.rel (%p81) target = $region20
        $region19: #{encoder_blocks_forward.7} parent=15 // pred_region
          %p84 = scmp.lt.s32.totalorder %s10, 1
          %s85 = scalar_select %p84, %s10, 1
          %s86 = smul.addr %s85, 8
          %s87 = smul.addr %s86, 4
          %s88 = scalar_lea.vmem %s0, %s87
        $region20: #{encoder_blocks_forward.7} parent=15 // pred_fallthru
          _
      $region16: #{encoder_blocks_forward.7} parent=5 // pred_fallthru
        _
      %p89 = scmp.le.s32.totalorder 1, %s10
      %p90 = scmp.lt.s32.totalorder %s10, 3
      %p91 = pnand %p89, %p90
      %p92 = pneg %p91
      // Predicated region
      $region21: #{encoder_blocks_forward.7} parent=5 // pred_check
        _
      $region22: #{encoder_blocks_forward.7} parent=5 // pred_check_branch
        %94 = sbr.rel (%p91) target = $region24
      $region23: #{encoder_blocks_forward.7} parent=5 // pred_region
        %s95 = ssub.s32 %s10, 1
        %p96 = scmp.lt.s32.totalorder %s15, 1
        %s97 = scalar_select %p96, %s15, 1
        %s98 = smul.addr %s97, 8
        %s99 = smul.addr %s98, 4
        %s100 = scalar_lea.vmem %s0, %s99
        %p101 = pneg %p36
        %p102 = pneg %p33
        %p103 = pneg %p62
        %p104 = pneg %p59
        %s105 = sand.u32 %s49, 1
        %s106 = scalar_lea.sflag [#allocation3], %s105
        %s107 = sand.u32 %s49, 1
        %s108 = smul.addr %s107, 16
        %s109 = scalar_lea.vmem [#allocation2], %s108
        %p110 = scmp.lt.s32.totalorder %s15, 1
        %s111 = scalar_select %p110, %s15, 1
        %s112 = smul.addr %s111, 8
        %s113 = smul.addr %s112, 4
        %s114 = scalar_lea.vmem %s0, %s113
        %v115 = vld [vmem:[%s114] sm:$0xf]
        %v116 = vld [vmem:[%s114 + $0x4] sm:$0xf]
        %v117 = vld [vmem:[%s114 + $0x8] sm:$0xf]
        %v118 = vld [vmem:[%s114 + $0xc] sm:$0xf]
        %v119 = vld [vmem:[%s114 + $0x10] sm:$0xf]
        %v120 = vld [vmem:[%s114 + $0x14] sm:$0xf]
        %v121 = vld [vmem:[%s114 + $0x18] sm:$0xf]
        %v122 = vld [vmem:[%s114 + $0x1c] sm:$0xf]
        %v123 = vmax.f32 %v115, %v116
        %v124 = vmax.f32 %v117, %v118
        %v125 = vmax.f32 %v119, %v120
        %v126 = vmax.f32 %v121, %v122
        %131 = vrot.lane.b32.xlu0 %v123, 112
        %v132 = vpop.permute.xlu0 %131
        %133 = vrot.lane.b32.xlu0 %v124, 112
        %v134 = vpop.permute.xlu0 %133
        %135 = vrot.lane.b32.xlu0 %v125, 112
        %v136 = vpop.permute.xlu0 %135
        %137 = vrot.lane.b32.xlu0 %v126, 112
        %v138 = vpop.permute.xlu0 %137
        %v143 = vmax.f32 %v123, %v132
        %v144 = vmax.f32 %v124, %v134
        %v145 = vmax.f32 %v125, %v136
        %v146 = vmax.f32 %v126, %v138
        %vm147 = vcmask 125952
        %148 = vst.msk [vmem:[%s109] sm:$0xf] %vm147, %v143
        %149 = vst.msk [vmem:[%s109 + $0x4] sm:$0xf] %vm147, %v144
        %150 = vst.msk [vmem:[%s109 + $0x8] sm:$0xf] %vm147, %v145
        %151 = vst.msk [vmem:[%s109 + $0xc] sm:$0xf] %vm147, %v146
        %s152 = sand.u32 %s49, 1
        %s153 = scalar_lea.sflag [#allocation3], %s152
        %s154 = sand.u32 %s49, 1
        %s155 = smul.addr %s154, 16
        %s156 = scalar_lea.vmem [#allocation2], %s155
        // Predicated region
        $region25: #{encoder_blocks_forward.7} parent=23 // pred_check
          %p157 = pneg %p59
        $region26: #{encoder_blocks_forward.7} parent=23 // pred_check_branch
          %159 = sbr.rel (%p157) target = $region28
        $region27: #{encoder_blocks_forward.7} parent=23 // pred_region
          %s161 = ssub.s32 256, 256
          %162 = vsyncadd %s153, %s161
          %s163 = smul.addr %s15, 4
          %s164 = smul.addr %s163, 64
          %s165 = scalar_lea.hbm %s1, %s164
          %s166 = sshll.u32 %s156, 4
          %s167 = int_to_ptr.vmem [resolvable:$true] %s166
          %172 = dma.vmem_to_hbm [thread:$0]  %s167, 256, %s165, %s153, 64, 64, 4
        $region28: #{encoder_blocks_forward.7} parent=23 // pred_fallthru
          _
      $region24: #{encoder_blocks_forward.7} parent=5 // pred_fallthru
        _
      %p173 = scmp.le.s32.totalorder 2, %s10
      // Predicated region
      $region29: #{encoder_blocks_forward.7} parent=5 // pred_check
        %p174 = pneg %p173
      $region30: #{encoder_blocks_forward.7} parent=5 // pred_check_branch
        %176 = sbr.rel (%p174) target = $region32
      $region31: #{encoder_blocks_forward.7} parent=5 // pred_region
        %s177 = ssub.s32 %s10, 2
        // Predicated region
        $region33: #{encoder_blocks_forward.7} parent=31 // pred_check
          %p178 = pneg %p65
        $region34: #{encoder_blocks_forward.7} parent=31 // pred_check_branch
          %180 = sbr.rel (%p178) target = $region36
        $region35: #{encoder_blocks_forward.7} parent=31 // pred_region
          %s181 = sand.u32 %s50, 1
          %s182 = scalar_lea.sflag [#allocation3], %s181
          %s183 = sand.u32 %s50, 1
          %s184 = smul.addr %s183, 16
          %s185 = scalar_lea.vmem [#allocation2], %s184
          %186 = dma.done %s182, 256
        $region36: #{encoder_blocks_forward.7} parent=31 // pred_fallthru
          _
      $region32: #{encoder_blocks_forward.7} parent=5 // pred_fallthru
        _
    $region6: #{encoder_blocks_forward.7} parent=1 // loop_footer
      %s14 = sadd.s32 1, %s10
    $region7: #{encoder_blocks_forward.7} parent=1 // loop_footer_branch
      %9 = sbr.rel target = $region3
    $region8: #{encoder_blocks_forward.7} parent=1 // loop_exit
      _
    %187 = vsyncpa [#allocation3], 1
    %s188 = scalar_lea.sflag [#allocation3], 1
    %189 = vsyncpa %s188, 1

// kernel: encoder_blocks_forward.6
$region0: #{encoder_blocks_forward.6}
  #allocation0 [shape = 'u32[]', space=smem, size = 0x4, offset = 0x4, fixed_abs, tag = 'smem constant byte address 0x4 - core index']
  #allocation1 [shape = 'u32[144,128]{1,0:T(1,128)}', space=vmem, size = 0x12000, scoped, tag = 'internal scratch']
  #allocation2 [shape = 'f32[1,10,10,8]{3,2,1,0:T(8,128)}', space=vmem, size = 0x14000, scoped, tag = 'scratch operand']
  #allocation3 [shape = 'f32[1,10,10,16]{3,2,1,0:T(8,128)}', space=vmem, size = 0x14000, scoped, tag = 'scratch operand']
  %s0 = inlined_call_operand.vmem [shape: f32[2,8,8,8], index: 0, kind: input, shape index: {}]
  %s1 = inlined_call_operand.vmem [shape: bf16[72,16], index: 1, kind: input, shape index: {}]
  %s2 = inlined_call_operand.vmem [shape: f32[1,16], index: 2, kind: input, shape index: {}]
  %s3 = inlined_call_operand.vmem [shape: bf16[144,16], index: 3, kind: input, shape index: {}]
  %s4 = inlined_call_operand.vmem [shape: f32[1,16], index: 4, kind: input, shape index: {}]
  %s5 = inlined_call_operand.vmem [shape: f32[2,8,8,16], index: 5, kind: output, shape index: {}]
  %s6 = sld [smem:[#allocation0]]
  $region53: #{encoder_blocks_forward.6} parent=0
    _
  %s8 = ssub.s32 1, %s6
  %s9 = scalar_select 0, %s8, %s6
  loop: start=0, step=1, limit=4
  $region2: #{encoder_blocks_forward.6} parent=0 // loop_pre_header
    _
  $region3: #{encoder_blocks_forward.6} parent=0 // loop_header
    %s11 = sphi 0, %s15
    %p12 = scmp.ge.s32.totalorder %s11, 4
    %s21 = sphi 0, %s23
    %s24 = sphi 0, %s21
    %s25 = sphi 0, %s24
    %s41 = sphi 0, %s25
    %s45 = sphi 0, %s45
    %s47 = sphi 0, %s45
    %s48 = sphi 0, %s47
    %s62 = sphi 0, %s48
    %s66 = sphi 0, %s66
    %s68 = sphi 0, %s66
    %s69 = sphi 0, %s68
    %s83 = sphi 0, %s69
    %s87 = sphi 0, %s87
    %s89 = sphi 0, %s87
    %s90 = sphi 0, %s89
    %s104 = sphi 0, %s90
    %s108 = sphi 0, %s108
    %s110 = sphi 0, %s108
    %s111 = sphi 0, %s110
    %s125 = sphi 0, %s111
    %s131 = sphi 0, %s133
    %s134 = sphi 0, %s131
    %s135 = sphi 0, %s134
    %s151 = sphi 0, %s135
  $region4: #{encoder_blocks_forward.6} parent=0 // loop_header_branch
    %14 = sbr.rel (%p12) target = $region8
  $region5: #{encoder_blocks_forward.6} parent=0 // loop_body
    %s16 = ssub.s32 %s11, 1
    %s17 = ssub.s32 %s11, 2
    %s18 = sadd.s32 %s11, 1
    %s19 = ssub.s32 %s11, %s18
    %p20 = scmp.eq.s32.totalorder %s19, 0
    %s22 = sadd.s32 %s21, 1
    %s23 = scalar_select %p20, %s21, %s22
    %p26 = pneg %p20
    %p27 = scmp.eq.s32.totalorder %s11, 1
    %p28 = por %p26, %p27
    %p29 = scmp.ne.s32.totalorder %s21, %s24
    %p30 = scmp.eq.s32.totalorder %s11, 0
    %p31 = por %p29, %p30
    %p32 = scmp.ne.s32.totalorder %s21, %s24
    %p33 = scmp.eq.s32.totalorder %s16, 1
    %p34 = por %p32, %p33
    %p35 = scmp.ne.s32.totalorder %s24, %s25
    %p36 = scmp.eq.s32.totalorder %s16, 0
    %p37 = por %p35, %p36
    %p38 = scmp.ne.s32.totalorder %s24, %s25
    %p39 = scmp.eq.s32.totalorder %s17, 1
    %p40 = por %p38, %p39
    %p42 = scmp.ne.s32.totalorder %s25, %s41
    %p43 = scmp.eq.s32.totalorder %s17, 0
    %p44 = por %p42, %p43
    %s46 = sadd.s32 %s45, 1
    %p49 = scmp.eq.s32.totalorder %s11, 1
    %p50 = scmp.ne.s32.totalorder %s45, %s47
    %p51 = scmp.eq.s32.totalorder %s11, 0
    %p52 = por %p50, %p51
    %p53 = scmp.ne.s32.totalorder %s45, %s47
    %p54 = scmp.eq.s32.totalorder %s16, 1
    %p55 = por %p53, %p54
    %p56 = scmp.ne.s32.totalorder %s47, %s48
    %p57 = scmp.eq.s32.totalorder %s16, 0
    %p58 = por %p56, %p57
    %p59 = scmp.ne.s32.totalorder %s47, %s48
    %p60 = scmp.eq.s32.totalorder %s17, 1
    %p61 = por %p59, %p60
    %p63 = scmp.ne.s32.totalorder %s48, %s62
    %p64 = scmp.eq.s32.totalorder %s17, 0
    %p65 = por %p63, %p64
    %s67 = sadd.s32 %s66, 1
    %p70 = scmp.eq.s32.totalorder %s11, 1
    %p71 = scmp.ne.s32.totalorder %s66, %s68
    %p72 = scmp.eq.s32.totalorder %s11, 0
    %p73 = por %p71, %p72
    %p74 = scmp.ne.s32.totalorder %s66, %s68
    %p75 = scmp.eq.s32.totalorder %s16, 1
    %p76 = por %p74, %p75
    %p77 = scmp.ne.s32.totalorder %s68, %s69
    %p78 = scmp.eq.s32.totalorder %s16, 0
    %p79 = por %p77, %p78
    %p80 = scmp.ne.s32.totalorder %s68, %s69
    %p81 = scmp.eq.s32.totalorder %s17, 1
    %p82 = por %p80, %p81
    %p84 = scmp.ne.s32.totalorder %s69, %s83
    %p85 = scmp.eq.s32.totalorder %s17, 0
    %p86 = por %p84, %p85
    %s88 = sadd.s32 %s87, 1
    %p91 = scmp.eq.s32.totalorder %s11, 1
    %p92 = scmp.ne.s32.totalorder %s87, %s89
    %p93 = scmp.eq.s32.totalorder %s11, 0
    %p94 = por %p92, %p93
    %p95 = scmp.ne.s32.totalorder %s87, %s89
    %p96 = scmp.eq.s32.totalorder %s16, 1
    %p97 = por %p95, %p96
    %p98 = scmp.ne.s32.totalorder %s89, %s90
    %p99 = scmp.eq.s32.totalorder %s16, 0
    %p100 = por %p98, %p99
    %p101 = scmp.ne.s32.totalorder %s89, %s90
    %p102 = scmp.eq.s32.totalorder %s17, 1
    %p103 = por %p101, %p102
    %p105 = scmp.ne.s32.totalorder %s90, %s104
    %p106 = scmp.eq.s32.totalorder %s17, 0
    %p107 = por %p105, %p106
    %s109 = sadd.s32 %s108, 1
    %p112 = scmp.eq.s32.totalorder %s11, 1
    %p113 = scmp.ne.s32.totalorder %s108, %s110
    %p114 = scmp.eq.s32.totalorder %s11, 0
    %p115 = por %p113, %p114
    %p116 = scmp.ne.s32.totalorder %s108, %s110
    %p117 = scmp.eq.s32.totalorder %s16, 1
    %p118 = por %p116, %p117
    %p119 = scmp.ne.s32.totalorder %s110, %s111
    %p120 = scmp.eq.s32.totalorder %s16, 0
    %p121 = por %p119, %p120
    %p122 = scmp.ne.s32.totalorder %s110, %s111
    %p123 = scmp.eq.s32.totalorder %s17, 1
    %p124 = por %p122, %p123
    %p126 = scmp.ne.s32.totalorder %s111, %s125
    %p127 = scmp.eq.s32.totalorder %s17, 0
    %p128 = por %p126, %p127
    %s129 = ssub.s32 %s11, %s18
    %p130 = scmp.eq.s32.totalorder %s129, 0
    %s132 = sadd.s32 %s131, 1
    %s133 = scalar_select %p130, %s131, %s132
    %p136 = pneg %p130
    %p137 = scmp.eq.s32.totalorder %s11, 1
    %p138 = por %p136, %p137
    %p139 = scmp.ne.s32.totalorder %s131, %s134
    %p140 = scmp.eq.s32.totalorder %s11, 0
    %p141 = por %p139, %p140
    %p142 = scmp.ne.s32.totalorder %s131, %s134
    %p143 = scmp.eq.s32.totalorder %s16, 1
    %p144 = por %p142, %p143
    %p145 = scmp.ne.s32.totalorder %s134, %s135
    %p146 = scmp.eq.s32.totalorder %s16, 0
    %p147 = por %p145, %p146
    %p148 = scmp.ne.s32.totalorder %s134, %s135
    %p149 = scmp.eq.s32.totalorder %s17, 1
    %p150 = por %p148, %p149
    %p152 = scmp.ne.s32.totalorder %s135, %s151
    %p153 = scmp.eq.s32.totalorder %s17, 0
    %p154 = por %p152, %p153
    %p155 = scmp.le.s32.totalorder 1, %s11
    %p156 = scmp.lt.s32.totalorder %s11, 3
    %p157 = pnand %p155, %p156
    %p158 = pneg %p157
    // Predicated region
    $region9: #{encoder_blocks_forward.6} parent=5 // pred_check
      _
    $region10: #{encoder_blocks_forward.6} parent=5 // pred_check_branch
      %160 = sbr.rel (%p157) target = $region12
    $region11: #{encoder_blocks_forward.6} parent=5 // pred_region
      %s161 = ssub.s32 %s11, 1
      // Predicated region
      $region13: #{encoder_blocks_forward.6} parent=11 // pred_check
        %p162 = pneg %p58
      $region14: #{encoder_blocks_forward.6} parent=11 // pred_check_branch
        %164 = sbr.rel (%p162) target = $region16
      $region15: #{encoder_blocks_forward.6} parent=11 // pred_region
        _
      $region16: #{encoder_blocks_forward.6} parent=11 // pred_fallthru
        _
      // Predicated region
      $region17: #{encoder_blocks_forward.6} parent=11 // pred_check
        %p165 = pneg %p79
      $region18: #{encoder_blocks_forward.6} parent=11 // pred_check_branch
        %167 = sbr.rel (%p165) target = $region20
      $region19: #{encoder_blocks_forward.6} parent=11 // pred_region
        _
      $region20: #{encoder_blocks_forward.6} parent=11 // pred_fallthru
        _
      // Predicated region
      $region21: #{encoder_blocks_forward.6} parent=11 // pred_check
        %p168 = pneg %p100
      $region22: #{encoder_blocks_forward.6} parent=11 // pred_check_branch
        %170 = sbr.rel (%p168) target = $region24
      $region23: #{encoder_blocks_forward.6} parent=11 // pred_region
        _
      $region24: #{encoder_blocks_forward.6} parent=11 // pred_fallthru
        _
      // Predicated region
      $region25: #{encoder_blocks_forward.6} parent=11 // pred_check
        %p171 = pneg %p121
      $region26: #{encoder_blocks_forward.6} parent=11 // pred_check_branch
        %173 = sbr.rel (%p171) target = $region28
      $region27: #{encoder_blocks_forward.6} parent=11 // pred_region
        _
      $region28: #{encoder_blocks_forward.6} parent=11 // pred_fallthru
        _
    $region12: #{encoder_blocks_forward.6} parent=5 // pred_fallthru
      _
    %p174 = scmp.lt.s32.totalorder %s11, 2
    // Predicated region
    $region29: #{encoder_blocks_forward.6} parent=5 // pred_check
      %p175 = pneg %p174
    $region30: #{encoder_blocks_forward.6} parent=5 // pred_check_branch
      %177 = sbr.rel (%p175) target = $region32
    $region31: #{encoder_blocks_forward.6} parent=5 // pred_region
      // Predicated region
      $region33: #{encoder_blocks_forward.6} parent=31 // pred_check
        %p178 = pneg %p31
      $region34: #{encoder_blocks_forward.6} parent=31 // pred_check_branch
        %180 = sbr.rel (%p178) target = $region36
      $region35: #{encoder_blocks_forward.6} parent=31 // pred_region
        %p181 = scmp.lt.s32.totalorder %s11, 1
        %s182 = scalar_select %p181, %s11, 1
        %s183 = smul.addr %s182, 8
        %s184 = smul.addr %s183, 8
        %s185 = scalar_lea.vmem %s0, %s184
      $region36: #{encoder_blocks_forward.6} parent=31 // pred_fallthru
        _
    $region32: #{encoder_blocks_forward.6} parent=5 // pred_fallthru
      _
    %p186 = scmp.le.s32.totalorder 1, %s11
    %p187 = scmp.lt.s32.totalorder %s11, 3
    %p188 = pnand %p186, %p187
    %p189 = pneg %p188
    // Predicated region
    $region37: #{encoder_blocks_forward.6} parent=5 // pred_check
      _
    $region38: #{encoder_blocks_forward.6} parent=5 // pred_check_branch
      %191 = sbr.rel (%p188) target = $region40
    $region39: #{encoder_blocks_forward.6} parent=5 // pred_region
      %s192 = ssub.s32 %s11, 1
      %p193 = scmp.lt.s32.totalorder %s16, 1
      %s194 = scalar_select %p193, %s16, 1
      %s195 = smul.addr %s194, 8
      %s196 = smul.addr %s195, 8
      %s197 = scalar_lea.vmem %s0, %s196
      %p198 = pneg %p37
      %p199 = pneg %p34
      %p200 = pneg %p58
      %p201 = pneg %p55
      %p202 = pneg %p79
      %p203 = pneg %p76
      %p204 = pneg %p100
      %p205 = pneg %p97
      %p206 = pneg %p121
      %p207 = pneg %p118
      %p208 = pneg %p147
      %p209 = pneg %p144
      %p210 = scmp.lt.s32.totalorder %s16, 1
      %s211 = scalar_select %p210, %s16, 1
      %s212 = smul.addr %s211, 8
      %s213 = smul.addr %s212, 8
      %s214 = scalar_lea.vmem %s5, %s213
      %p215 = scmp.lt.s32.totalorder %s16, 1
      %s216 = scalar_select %p215, %s16, 1
      %s217 = smul.addr %s216, 8
      %s218 = smul.addr %s217, 8
      %s219 = scalar_lea.vmem %s0, %s218
      %p220 = scmp.lt.s32.totalorder %s16, 1
      %s221 = scalar_select %p220, %s16, 1
      %s222 = smul.addr %s221, 8
      %s223 = smul.addr %s222, 8
      %s224 = scalar_lea.vmem %s5, %s223
      %vm226 = vcmask 64512
      %227 = vst.msk [vmem:[#allocation2] sm:$0xff] %vm226, 0.0
      %vm228 = vcmask 58368
      %229 = vst.msk [vmem:[#allocation2 + $0x8] sm:$0x3] %vm228, 0.0
      %230 = vst.msk [vmem:[#allocation2 + $0x10] sm:$0xff] %vm226, 0.0
      %231 = vst.msk [vmem:[#allocation2 + $0x18] sm:$0x3] %vm228, 0.0
      %232 = vst.msk [vmem:[#allocation2 + $0x20] sm:$0xff] %vm226, 0.0
      %233 = vst.msk [vmem:[#allocation2 + $0x28] sm:$0x3] %vm228, 0.0
      %234 = vst.msk [vmem:[#allocation2 + $0x30] sm:$0xff] %vm226, 0.0
      %235 = vst.msk [vmem:[#allocation2 + $0x38] sm:$0x3] %vm228, 0.0
      %236 = vst.msk [vmem:[#allocation2 + $0x40] sm:$0xff] %vm226, 0.0
      %237 = vst.msk [vmem:[#allocation2 + $0x48] sm:$0x3] %vm228, 0.0
      %238 = vst.msk [vmem:[#allocation2 + $0x50] sm:$0xff] %vm226, 0.0
      %239 = vst.msk [vmem:[#allocation2 + $0x58] sm:$0x3] %vm228, 0.0
      %240 = vst.msk [vmem:[#allocation2 + $0x60] sm:$0xff] %vm226, 0.0
      %241 = vst.msk [vmem:[#allocation2 + $0x68] sm:$0x3] %vm228, 0.0
      %242 = vst.msk [vmem:[#allocation2 + $0x70] sm:$0xff] %vm226, 0.0
      %243 = vst.msk [vmem:[#allocation2 + $0x78] sm:$0x3] %vm228, 0.0
      %244 = vst.msk [vmem:[#allocation2 + $0x80] sm:$0xff] %vm226, 0.0
      %245 = vst.msk [vmem:[#allocation2 + $0x88] sm:$0x3] %vm228, 0.0
      %246 = vst.msk [vmem:[#allocation2 + $0x90] sm:$0xff] %vm226, 0.0
      %247 = vst.msk [vmem:[#allocation2 + $0x98] sm:$0x3] %vm228, 0.0
      %v248 = vld [vmem:[%s219] sm:$0xff]
      %v249 = vld [vmem:[%s219 + $0x8] sm:$0xff]
      %v250 = vld [vmem:[%s219 + $0x10] sm:$0xff]
      %v251 = vld [vmem:[%s219 + $0x18] sm:$0xff]
      %v252 = vld [vmem:[%s219 + $0x20] sm:$0xff]
      %v253 = vld [vmem:[%s219 + $0x28] sm:$0xff]
      %v254 = vld [vmem:[%s219 + $0x30] sm:$0xff]
      %v255 = vld [vmem:[%s219 + $0x38] sm:$0xff]
      %s256 = scalar_lea.vmem [#allocation2], 16
      %257 = vst.msk [vmem:[%s256 + $0x1] sm:$0xff] %vm226, %v248
      %258 = vst.msk [vmem:[%s256 + $0x11] sm:$0xff] %vm226, %v249
      %259 = vst.msk [vmem:[%s256 + $0x21] sm:$0xff] %vm226, %v250
      %260 = vst.msk [vmem:[%s256 + $0x31] sm:$0xff] %vm226, %v251
      %261 = vst.msk [vmem:[%s256 + $0x41] sm:$0xff] %vm226, %v252
      %262 = vst.msk [vmem:[%s256 + $0x51] sm:$0xff] %vm226, %v253
      %263 = vst.msk [vmem:[%s256 + $0x61] sm:$0xff] %vm226, %v254
      %264 = vst.msk [vmem:[%s256 + $0x71] sm:$0xff] %vm226, %v255
      %v265 = vld [vmem:[#allocation2] sm:$0xff]
      %v266 = vld [vmem:[#allocation2 + $0x10] sm:$0xff]
      %v267 = vld [vmem:[#allocation2 + $0x20] sm:$0xff]
      %v268 = vld [vmem:[#allocation2 + $0x30] sm:$0xff]
      %v269 = vld [vmem:[#allocation2 + $0x40] sm:$0xff]
      %v270 = vld [vmem:[#allocation2 + $0x50] sm:$0xff]
      %v271 = vld [vmem:[#allocation2 + $0x60] sm:$0xff]
      %v272 = vld [vmem:[#allocation2 + $0x70] sm:$0xff]
      %v273 = vld [vmem:[#allocation2 + $0x1] sm:$0xff]
      %v274 = vld [vmem:[#allocation2 + $0x11] sm:$0xff]
      %v275 = vld [vmem:[#allocation2 + $0x21] sm:$0xff]
      %v276 = vld [vmem:[#allocation2 + $0x31] sm:$0xff]
      %v277 = vld [vmem:[#allocation2 + $0x41] sm:$0xff]
      %v278 = vld [vmem:[#allocation2 + $0x51] sm:$0xff]
      %v279 = vld [vmem:[#allocation2 + $0x61] sm:$0xff]
      %v280 = vld [vmem:[#allocation2 + $0x71] sm:$0xff]
      %v281 = vld [vmem:[#allocation2 + $0x2] sm:$0xff]
      %v282 = vld [vmem:[#allocation2 + $0x12] sm:$0xff]
      %v283 = vld [vmem:[#allocation2 + $0x22] sm:$0xff]
      %v284 = vld [vmem:[#allocation2 + $0x32] sm:$0xff]
      %v285 = vld [vmem:[#allocation2 + $0x42] sm:$0xff]
      %v286 = vld [vmem:[#allocation2 + $0x52] sm:$0xff]
      %v287 = vld [vmem:[#allocation2 + $0x62] sm:$0xff]
      %v288 = vld [vmem:[#allocation2 + $0x72] sm:$0xff]
      %v289 = vld [vmem:[%s256] sm:$0xff]
      %v290 = vld [vmem:[%s256 + $0x10] sm:$0xff]
      %v291 = vld [vmem:[%s256 + $0x20] sm:$0xff]
      %v292 = vld [vmem:[%s256 + $0x30] sm:$0xff]
      %v293 = vld [vmem:[%s256 + $0x40] sm:$0xff]
      %v294 = vld [vmem:[%s256 + $0x50] sm:$0xff]
      %v295 = vld [vmem:[%s256 + $0x60] sm:$0xff]
      %v296 = vld [vmem:[%s256 + $0x70] sm:$0xff]
      %v297 = vld [vmem:[%s256 + $0x1] sm:$0xff]
      %v298 = vld [vmem:[%s256 + $0x11] sm:$0xff]
      %v299 = vld [vmem:[%s256 + $0x21] sm:$0xff]
      %v300 = vld [vmem:[%s256 + $0x31] sm:$0xff]
      %v301 = vld [vmem:[%s256 + $0x41] sm:$0xff]
      %v302 = vld [vmem:[%s256 + $0x51] sm:$0xff]
      %v303 = vld [vmem:[%s256 + $0x61] sm:$0xff]
      %v304 = vld [vmem:[%s256 + $0x71] sm:$0xff]
      %v305 = vld [vmem:[%s256 + $0x2] sm:$0xff]
      %v306 = vld [vmem:[%s256 + $0x12] sm:$0xff]
      %v307 = vld [vmem:[%s256 + $0x22] sm:$0xff]
      %v308 = vld [vmem:[%s256 + $0x32] sm:$0xff]
      %v309 = vld [vmem:[%s256 + $0x42] sm:$0xff]
      %v310 = vld [vmem:[%s256 + $0x52] sm:$0xff]
      %v311 = vld [vmem:[%s256 + $0x62] sm:$0xff]
      %v312 = vld [vmem:[%s256 + $0x72] sm:$0xff]
      %s313 = scalar_lea.vmem [#allocation2], 32
      %v314 = vld [vmem:[%s313] sm:$0xff]
      %v315 = vld [vmem:[%s313 + $0x10] sm:$0xff]
      %v316 = vld [vmem:[%s313 + $0x20] sm:$0xff]
      %v317 = vld [vmem:[%s313 + $0x30] sm:$0xff]
      %v318 = vld [vmem:[%s313 + $0x40] sm:$0xff]
      %v319 = vld [vmem:[%s313 + $0x50] sm:$0xff]
      %v320 = vld [vmem:[%s313 + $0x60] sm:$0xff]
      %v321 = vld [vmem:[%s313 + $0x70] sm:$0xff]
      %v322 = vld [vmem:[%s313 + $0x1] sm:$0xff]
      %v323 = vld [vmem:[%s313 + $0x11] sm:$0xff]
      %v324 = vld [vmem:[%s313 + $0x21] sm:$0xff]
      %v325 = vld [vmem:[%s313 + $0x31] sm:$0xff]
      %v326 = vld [vmem:[%s313 + $0x41] sm:$0xff]
      %v327 = vld [vmem:[%s313 + $0x51] sm:$0xff]
      %v328 = vld [vmem:[%s313 + $0x61] sm:$0xff]
      %v329 = vld [vmem:[%s313 + $0x71] sm:$0xff]
      %v330 = vld [vmem:[%s313 + $0x2] sm:$0xff]
      %v331 = vld [vmem:[%s313 + $0x12] sm:$0xff]
      %v332 = vld [vmem:[%s313 + $0x22] sm:$0xff]
      %v333 = vld [vmem:[%s313 + $0x32] sm:$0xff]
      %v334 = vld [vmem:[%s313 + $0x42] sm:$0xff]
      %v335 = vld [vmem:[%s313 + $0x52] sm:$0xff]
      %v336 = vld [vmem:[%s313 + $0x62] sm:$0xff]
      %v337 = vld [vmem:[%s313 + $0x72] sm:$0xff]
      %346 = vrot.lane.b32.xlu0 %v273, 8
      %v347 = vpop.permute.xlu0 %346
      %348 = vrot.lane.b32.xlu0 %v274, 8
      %v349 = vpop.permute.xlu0 %348
      %350 = vrot.lane.b32.xlu0 %v275, 8
      %v351 = vpop.permute.xlu0 %350
      %352 = vrot.lane.b32.xlu0 %v276, 8
      %v353 = vpop.permute.xlu0 %352
      %354 = vrot.lane.b32.xlu0 %v277, 8
      %v355 = vpop.permute.xlu0 %354
      %356 = vrot.lane.b32.xlu0 %v278, 8
      %v357 = vpop.permute.xlu0 %356
      %358 = vrot.lane.b32.xlu0 %v279, 8
      %v359 = vpop.permute.xlu0 %358
      %360 = vrot.lane.b32.xlu0 %v280, 8
      %v361 = vpop.permute.xlu0 %360
      %378 = vrot.lane.b32.xlu0 %v281, 16
      %v379 = vpop.permute.xlu0 %378
      %380 = vrot.lane.b32.xlu0 %v282, 16
      %v381 = vpop.permute.xlu0 %380
      %382 = vrot.lane.b32.xlu0 %v283, 16
      %v383 = vpop.permute.xlu0 %382
      %384 = vrot.lane.b32.xlu0 %v284, 16
      %v385 = vpop.permute.xlu0 %384
      %386 = vrot.lane.b32.xlu0 %v285, 16
      %v387 = vpop.permute.xlu0 %386
      %388 = vrot.lane.b32.xlu0 %v286, 16
      %v389 = vpop.permute.xlu0 %388
      %390 = vrot.lane.b32.xlu0 %v287, 16
      %v391 = vpop.permute.xlu0 %390
      %392 = vrot.lane.b32.xlu0 %v288, 16
      %v393 = vpop.permute.xlu0 %392
      %410 = vrot.lane.b32.xlu0 %v289, 24
      %v411 = vpop.permute.xlu0 %410
      %412 = vrot.lane.b32.xlu0 %v290, 24
      %v413 = vpop.permute.xlu0 %412
      %414 = vrot.lane.b32.xlu0 %v291, 24
      %v415 = vpop.permute.xlu0 %414
      %416 = vrot.lane.b32.xlu0 %v292, 24
      %v417 = vpop.permute.xlu0 %416
      %418 = vrot.lane.b32.xlu0 %v293, 24
      %v419 = vpop.permute.xlu0 %418
      %420 = vrot.lane.b32.xlu0 %v294, 24
      %v421 = vpop.permute.xlu0 %420
      %422 = vrot.lane.b32.xlu0 %v295, 24
      %v423 = vpop.permute.xlu0 %422
      %424 = vrot.lane.b32.xlu0 %v296, 24
      %v425 = vpop.permute.xlu0 %424
      %442 = vrot.lane.b32.xlu0 %v297, 32
      %v443 = vpop.permute.xlu0 %442
      %444 = vrot.lane.b32.xlu0 %v298, 32
      %v445 = vpop.permute.xlu0 %444
      %446 = vrot.lane.b32.xlu0 %v299, 32
      %v447 = vpop.permute.xlu0 %446
      %448 = vrot.lane.b32.xlu0 %v300, 32
      %v449 = vpop.permute.xlu0 %448
      %450 = vrot.lane.b32.xlu0 %v301, 32
      %v451 = vpop.permute.xlu0 %450
      %452 = vrot.lane.b32.xlu0 %v302, 32
      %v453 = vpop.permute.xlu0 %452
      %454 = vrot.lane.b32.xlu0 %v303, 32
      %v455 = vpop.permute.xlu0 %454
      %456 = vrot.lane.b32.xlu0 %v304, 32
      %v457 = vpop.permute.xlu0 %456
      %474 = vrot.lane.b32.xlu0 %v305, 40
      %v475 = vpop.permute.xlu0 %474
      %476 = vrot.lane.b32.xlu0 %v306, 40
      %v477 = vpop.permute.xlu0 %476
      %478 = vrot.lane.b32.xlu0 %v307, 40
      %v479 = vpop.permute.xlu0 %478
      %480 = vrot.lane.b32.xlu0 %v308, 40
      %v481 = vpop.permute.xlu0 %480
      %482 = vrot.lane.b32.xlu0 %v309, 40
      %v483 = vpop.permute.xlu0 %482
      %484 = vrot.lane.b32.xlu0 %v310, 40
      %v485 = vpop.permute.xlu0 %484
      %486 = vrot.lane.b32.xlu0 %v311, 40
      %v487 = vpop.permute.xlu0 %486
      %488 = vrot.lane.b32.xlu0 %v312, 40
      %v489 = vpop.permute.xlu0 %488
      %506 = vrot.lane.b32.xlu0 %v314, 48
      %v507 = vpop.permute.xlu0 %506
      %508 = vrot.lane.b32.xlu0 %v315, 48
      %v509 = vpop.permute.xlu0 %508
      %510 = vrot.lane.b32.xlu0 %v316, 48
      %v511 = vpop.permute.xlu0 %510
      %512 = vrot.lane.b32.xlu0 %v317, 48
      %v513 = vpop.permute.xlu0 %512
      %514 = vrot.lane.b32.xlu0 %v318, 48
      %v515 = vpop.permute.xlu0 %514
      %516 = vrot.lane.b32.xlu0 %v319, 48
      %v517 = vpop.permute.xlu0 %516
      %518 = vrot.lane.b32.xlu0 %v320, 48
      %v519 = vpop.permute.xlu0 %518
      %520 = vrot.lane.b32.xlu0 %v321, 48
      %v521 = vpop.permute.xlu0 %520
      %538 = vrot.lane.b32.xlu0 %v322, 56
      %v539 = vpop.permute.xlu0 %538
      %540 = vrot.lane.b32.xlu0 %v323, 56
      %v541 = vpop.permute.xlu0 %540
      %542 = vrot.lane.b32.xlu0 %v324, 56
      %v543 = vpop.permute.xlu0 %542
      %544 = vrot.lane.b32.xlu0 %v325, 56
      %v545 = vpop.permute.xlu0 %544
      %546 = vrot.lane.b32.xlu0 %v326, 56
      %v547 = vpop.permute.xlu0 %546
      %548 = vrot.lane.b32.xlu0 %v327, 56
      %v549 = vpop.permute.xlu0 %548
      %550 = vrot.lane.b32.xlu0 %v328, 56
      %v551 = vpop.permute.xlu0 %550
      %552 = vrot.lane.b32.xlu0 %v329, 56
      %v553 = vpop.permute.xlu0 %552
      %570 = vrot.lane.b32.xlu0 %v330, 64
      %v571 = vpop.permute.xlu0 %570
      %572 = vrot.lane.b32.xlu0 %v331, 64
      %v573 = vpop.permute.xlu0 %572
      %574 = vrot.lane.b32.xlu0 %v332, 64
      %v575 = vpop.permute.xlu0 %574
      %576 = vrot.lane.b32.xlu0 %v333, 64
      %v577 = vpop.permute.xlu0 %576
      %578 = vrot.lane.b32.xlu0 %v334, 64
      %v579 = vpop.permute.xlu0 %578
      %580 = vrot.lane.b32.xlu0 %v335, 64
      %v581 = vpop.permute.xlu0 %580
      %582 = vrot.lane.b32.xlu0 %v336, 64
      %v583 = vpop.permute.xlu0 %582
      %584 = vrot.lane.b32.xlu0 %v337, 64
      %v585 = vpop.permute.xlu0 %584
      %v594 = vsel %vm226, %v265, %v347
      %v595 = vsel %vm226, %v266, %v349
      %v596 = vsel %vm226, %v267, %v351
      %v597 = vsel %vm226, %v268, %v353
      %v598 = vsel %vm226, %v269, %v355
      %v599 = vsel %vm226, %v270, %v357
      %v600 = vsel %vm226, %v271, %v359
      %v601 = vsel %vm226, %v272, %v361
      %vm602 = vcmask 130048
      %v603 = vsel %vm602, %v594, %v379
      %v604 = vsel %vm602, %v595, %v381
      %v605 = vsel %vm602, %v596, %v383
      %v606 = vsel %vm602, %v597, %v385
      %v607 = vsel %vm602, %v598, %v387
      %v608 = vsel %vm602, %v599, %v389
      %v609 = vsel %vm602, %v600, %v391
      %v610 = vsel %vm602, %v601, %v393
      %vm611 = vcmask 195584
      %v612 = vsel %vm611, %v603, %v411
      %v613 = vsel %vm611, %v604, %v413
      %v614 = vsel %vm611, %v605, %v415
      %v615 = vsel %vm611, %v606, %v417
      %v616 = vsel %vm611, %v607, %v419
      %v617 = vsel %vm611, %v608, %v421
      %v618 = vsel %vm611, %v609, %v423
      %v619 = vsel %vm611, %v610, %v425
      %vm620 = vcmask 261120
      %v621 = vsel %vm620, %v612, %v443
      %v622 = vsel %vm620, %v613, %v445
      %v623 = vsel %vm620, %v614, %v447
      %v624 = vsel %vm620, %v615, %v449
      %v625 = vsel %vm620, %v616, %v451
      %v626 = vsel %vm620, %v617, %v453
      %v627 = vsel %vm620, %v618, %v455
      %v628 = vsel %vm620, %v619, %v457
      %vm629 = vcmask 326656
      %v630 = vsel %vm629, %v621, %v475
      %v631 = vsel %vm629, %v622, %v477
      %v632 = vsel %vm629, %v623, %v479
      %v633 = vsel %vm629, %v624, %v481
      %v634 = vsel %vm629, %v625, %v483
      %v635 = vsel %vm629, %v626, %v485
      %v636 = vsel %vm629, %v627, %v487
      %v637 = vsel %vm629, %v628, %v489
      %vm638 = vcmask 392192
      %v639 = vsel %vm638, %v630, %v507
      %v640 = vsel %vm638, %v631, %v509
      %v641 = vsel %vm638, %v632, %v511
      %v642 = vsel %vm638, %v633, %v513
      %v643 = vsel %vm638, %v634, %v515
      %v644 = vsel %vm638, %v635, %v517
      %v645 = vsel %vm638, %v636, %v519
      %v646 = vsel %vm638, %v637, %v521
      %vm647 = vcmask 457728
      %v648 = vsel %vm647, %v639, %v539
      %v649 = vsel %vm647, %v640, %v541
      %v650 = vsel %vm647, %v641, %v543
      %v651 = vsel %vm647, %v642, %v545
      %v652 = vsel %vm647, %v643, %v547
      %v653 = vsel %vm647, %v644, %v549
      %v654 = vsel %vm647, %v645, %v551
      %v655 = vsel %vm647, %v646, %v553
      %vm656 = vcmask 523264
      %v657 = vsel %vm656, %v648, %v571
      %v658 = vsel %vm656, %v649, %v573
      %v659 = vsel %vm656, %v650, %v575
      %v660 = vsel %vm656, %v651, %v577
      %v661 = vsel %vm656, %v652, %v579
      %v662 = vsel %vm656, %v653, %v581
      %v663 = vsel %vm656, %v654, %v583
      %v664 = vsel %vm656, %v655, %v585
      %v665 = vpack.c.bf16 %v658, %v657
      %v666 = vpack.c.bf16 %v660, %v659
      %v667 = vpack.c.bf16 %v662, %v661
      %v668 = vpack.c.bf16 %v664, %v663
      %v669 = vld [vmem:[%s1] sm:$0xf]
      %v670 = vld [vmem:[%s1 + $0x4] sm:$0xf]
      %v671 = vld [vmem:[%s1 + $0x8] sm:$0xf]
      %v672 = vld [vmem:[%s1 + $0xc] sm:$0xf]
      %v673 = vld [vmem:[%s1 + $0x10] sm:$0xf]
      %v674 = vld [vmem:[%s1 + $0x14] sm:$0xf]
      %v675 = vld [vmem:[%s1 + $0x18] sm:$0xf]
      %v676 = vld [vmem:[%s1 + $0x1c] sm:$0xf]
      %v677 = vld [vmem:[%s1 + $0x20] sm:$0xf]
      %v678 = vld [vmem:[%s2] sm:$0x1]
      %v680 = vlaneseq
      %v681 = vshrl.u32 %v680, 7
      %v682 = vsub.s32 0, %v681
      %v683 = vrot.slane %v678, %v682
      %v694 = vunpack.c.l.b16 %v669
      %v695 = vunpack.c.l.b16 %v670
      %v696 = vunpack.c.l.b16 %v671
      %v697 = vunpack.c.l.b16 %v672
      %v698 = vunpack.c.l.b16 %v673
      %v699 = vunpack.c.l.b16 %v674
      %v700 = vunpack.c.l.b16 %v675
      %v701 = vunpack.c.l.b16 %v676
      %v702 = vunpack.c.l.b16 %v677
      %v703 = vpack.c.b16 %v695, %v694
      %v704 = vpack.c.b16 %v697, %v696
      %v705 = vpack.c.b16 %v699, %v698
      %v706 = vpack.c.b16 %v701, %v700
      %v707 = vpack.c.b16 %v702, %v702
      %vm712 = vcmask 588800
      %v714 = vsel %vm712, %v665, 0
      %v717 = vsel %vm712, %v666, 0
      %v720 = vsel %vm712, %v667, 0
      %v723 = vsel %vm712, %v668, 0
      %vm725 = vcmask 1043456
      %v727 = vsel %vm725, %v707, 0
      %729 = vmatprep.subr.bf16.mxu0 0
      %730 = vmatpush1.bf16.msra.mxu0 %v703
      %731 = vmatprep.subr.bf16.mxu0 0
      %732 = vmatpush1.bf16.msra.mxu0 %v704
      %733 = vmatprep.subr.bf16.mxu0 0
      %734 = vmatpush1.bf16.msra.mxu0 %v705
      %735 = vmatprep.subr.bf16.mxu0 0
      %736 = vmatpush1.bf16.msra.mxu0 %v706
      %737 = vmatprep.subr.bf16.mxu0 0
      %738 = vmatpush1.bf16.msra.mxu0 %v727
      %739 = vmatprep.subr.bf16.mxu0 0
      %740 = vmatpush1.bf16.msra.mxu0 0
      %741 = vmatprep.subr.bf16.mxu0 0
      %742 = vmatpush1.bf16.msra.mxu0 0
      %743 = vmatprep.subr.bf16.mxu0 0
      %744 = vmatpush1.bf16.msra.mxu0 0
      %745 = vmatprep.subr.bf16.mxu0 0
      %746 = vmatpush1.bf16.msra.mxu0 0
      %747 = vmatprep.subr.bf16.mxu0 0
      %748 = vmatpush1.bf16.msra.mxu0 0
      %749 = vmatprep.subr.bf16.mxu0 0
      %750 = vmatpush1.bf16.msra.mxu0 0
      %751 = vmatprep.subr.bf16.mxu0 0
      %752 = vmatpush1.bf16.msra.mxu0 0
      %753 = vmatprep.subr.bf16.mxu0 0
      %754 = vmatpush1.bf16.msra.mxu0 0
      %755 = vmatprep.subr.bf16.mxu0 0
      %756 = vmatpush1.bf16.msra.mxu0 0
      %757 = vmatprep.subr.bf16.mxu0 0
      %758 = vmatpush1.bf16.msra.mxu0 0
      %759 = vmatprep.subr.bf16.mxu0 0
      %760 = vmatpush1.bf16.msra.mxu0 0
      %761 = vmatprep.mubr.bf16.mxu0 0
      %762 = vmatmul.mubr.bf16.gmra.mrb[0].mxu0 %v714
      %v763 = vpop.f32.mrb[0].mxu0
      %v764 = vadd.f32 %v683, %v763
      %v765 = vpop.f32.mrb[0].mxu0
      %v766 = vpop.f32.mrb[0].mxu0
      %v767 = vadd.f32 %v683, %v766
      %v768 = vpop.f32.mrb[0].mxu0
      %769 = vmatprep.mubr.bf16.mxu0 0
      %770 = vmatmul.mubr.bf16.gmra.mrb[0].mxu0 %v717
      %v771 = vpop.f32.mrb[0].mxu0
      %v772 = vadd.f32 %v683, %v771
      %v773 = vpop.f32.mrb[0].mxu0
      %v774 = vpop.f32.mrb[0].mxu0
      %v775 = vadd.f32 %v683, %v774
      %v776 = vpop.f32.mrb[0].mxu0
      %777 = vmatprep.mubr.bf16.mxu0 0
      %778 = vmatmul.mubr.bf16.gmra.mrb[0].mxu0 %v720
      %v779 = vpop.f32.mrb[0].mxu0
      %v780 = vadd.f32 %v683, %v779
      %v781 = vpop.f32.mrb[0].mxu0
      %v782 = vpop.f32.mrb[0].mxu0
      %v783 = vadd.f32 %v683, %v782
      %v784 = vpop.f32.mrb[0].mxu0
      %785 = vmatprep.mubr.bf16.mxu0 0
      %786 = vmatmul.mubr.bf16.gmra.mrb[0].mxu0 %v723
      %v787 = vpop.f32.mrb[0].mxu0
      %v788 = vadd.f32 %v683, %v787
      %v789 = vpop.f32.mrb[0].mxu0
      %v790 = vpop.f32.mrb[0].mxu0
      %v791 = vadd.f32 %v683, %v790
      %v792 = vpop.f32.mrb[0].mxu0
      %793 = vdwg.mxu0
      %v794 = vmax.f32 %v764, 0.0
      %v795 = vmax.f32 %v767, 0.0
      %v796 = vmax.f32 %v772, 0.0
      %v797 = vmax.f32 %v775, 0.0
      %v798 = vmax.f32 %v780, 0.0
      %v799 = vmax.f32 %v783, 0.0
      %v800 = vmax.f32 %v788, 0.0
      %v801 = vmax.f32 %v791, 0.0
      %802 = vst.msk [vmem:[#allocation3] sm:$0xff] %vm602, 0.0
      %vm803 = vcmask 123904
      %804 = vst.msk [vmem:[#allocation3 + $0x8] sm:$0x3] %vm803, 0.0
      %805 = vst.msk [vmem:[#allocation3 + $0x10] sm:$0xff] %vm602, 0.0
      %806 = vst.msk [vmem:[#allocation3 + $0x18] sm:$0x3] %vm803, 0.0
      %807 = vst.msk [vmem:[#allocation3 + $0x20] sm:$0xff] %vm602, 0.0
      %808 = vst.msk [vmem:[#allocation3 + $0x28] sm:$0x3] %vm803, 0.0
      %809 = vst.msk [vmem:[#allocation3 + $0x30] sm:$0xff] %vm602, 0.0
      %810 = vst.msk [vmem:[#allocation3 + $0x38] sm:$0x3] %vm803, 0.0
      %811 = vst.msk [vmem:[#allocation3 + $0x40] sm:$0xff] %vm602, 0.0
      %812 = vst.msk [vmem:[#allocation3 + $0x48] sm:$0x3] %vm803, 0.0
      %813 = vst.msk [vmem:[#allocation3 + $0x50] sm:$0xff] %vm602, 0.0
      %814 = vst.msk [vmem:[#allocation3 + $0x58] sm:$0x3] %vm803, 0.0
      %815 = vst.msk [vmem:[#allocation3 + $0x60] sm:$0xff] %vm602, 0.0
      %816 = vst.msk [vmem:[#allocation3 + $0x68] sm:$0x3] %vm803, 0.0
      %817 = vst.msk [vmem:[#allocation3 + $0x70] sm:$0xff] %vm602, 0.0
      %818 = vst.msk [vmem:[#allocation3 + $0x78] sm:$0x3] %vm803, 0.0
      %819 = vst.msk [vmem:[#allocation3 + $0x80] sm:$0xff] %vm602, 0.0
      %820 = vst.msk [vmem:[#allocation3 + $0x88] sm:$0x3] %vm803, 0.0
      %821 = vst.msk [vmem:[#allocation3 + $0x90] sm:$0xff] %vm602, 0.0
      %822 = vst.msk [vmem:[#allocation3 + $0x98] sm:$0x3] %vm803, 0.0
      %s823 = scalar_lea.vmem [#allocation3], 16
      %824 = vst.msk [vmem:[%s823 + $0x1] sm:$0xff] %vm602, %v794
      %825 = vst.msk [vmem:[%s823 + $0x11] sm:$0xff] %vm602, %v795
      %826 = vst.msk [vmem:[%s823 + $0x21] sm:$0xff] %vm602, %v796
      %827 = vst.msk [vmem:[%s823 + $0x31] sm:$0xff] %vm602, %v797
      %828 = vst.msk [vmem:[%s823 + $0x41] sm:$0xff] %vm602, %v798
      %829 = vst.msk [vmem:[%s823 + $0x51] sm:$0xff] %vm602, %v799
      %830 = vst.msk [vmem:[%s823 + $0x61] sm:$0xff] %vm602, %v800
      %831 = vst.msk [vmem:[%s823 + $0x71] sm:$0xff] %vm602, %v801
      %v832 = vld [vmem:[#allocation3] sm:$0xff]
      %v833 = vld [vmem:[#allocation3 + $0x10] sm:$0xff]
      %v834 = vld [vmem:[#allocation3 + $0x20] sm:$0xff]
      %v835 = vld [vmem:[#allocation3 + $0x30] sm:$0xff]
      %v836 = vld [vmem:[#allocation3 + $0x40] sm:$0xff]
      %v837 = vld [vmem:[#allocation3 + $0x50] sm:$0xff]
      %v838 = vld [vmem:[#allocation3 + $0x60] sm:$0xff]
      %v839 = vld [vmem:[#allocation3 + $0x70] sm:$0xff]
      %v840 = vld [vmem:[#allocation3 + $0x1] sm:$0xff]
      %v841 = vld [vmem:[#allocation3 + $0x11] sm:$0xff]
      %v842 = vld [vmem:[#allocation3 + $0x21] sm:$0xff]
      %v843 = vld [vmem:[#allocation3 + $0x31] sm:$0xff]
      %v844 = vld [vmem:[#allocation3 + $0x41] sm:$0xff]
      %v845 = vld [vmem:[#allocation3 + $0x51] sm:$0xff]
      %v846 = vld [vmem:[#allocation3 + $0x61] sm:$0xff]
      %v847 = vld [vmem:[#allocation3 + $0x71] sm:$0xff]
      %v848 = vld [vmem:[#allocation3 + $0x2] sm:$0xff]
      %v849 = vld [vmem:[#allocation3 + $0x12] sm:$0xff]
      %v850 = vld [vmem:[#allocation3 + $0x22] sm:$0xff]
      %v851 = vld [vmem:[#allocation3 + $0x32] sm:$0xff]
      %v852 = vld [vmem:[#allocation3 + $0x42] sm:$0xff]
      %v853 = vld [vmem:[#allocation3 + $0x52] sm:$0xff]
      %v854 = vld [vmem:[#allocation3 + $0x62] sm:$0xff]
      %v855 = vld [vmem:[#allocation3 + $0x72] sm:$0xff]
      %v856 = vld [vmem:[%s823] sm:$0xff]
      %v857 = vld [vmem:[%s823 + $0x10] sm:$0xff]
      %v858 = vld [vmem:[%s823 + $0x20] sm:$0xff]
      %v859 = vld [vmem:[%s823 + $0x30] sm:$0xff]
      %v860 = vld [vmem:[%s823 + $0x40] sm:$0xff]
      %v861 = vld [vmem:[%s823 + $0x50] sm:$0xff]
      %v862 = vld [vmem:[%s823 + $0x60] sm:$0xff]
      %v863 = vld [vmem:[%s823 + $0x70] sm:$0xff]
      %v864 = vld [vmem:[%s823 + $0x1] sm:$0xff]
      %v865 = vld [vmem:[%s823 + $0x11] sm:$0xff]
      %v866 = vld [vmem:[%s823 + $0x21] sm:$0xff]
      %v867 = vld [vmem:[%s823 + $0x31] sm:$0xff]
      %v868 = vld [vmem:[%s823 + $0x41] sm:$0xff]
      %v869 = vld [vmem:[%s823 + $0x51] sm:$0xff]
      %v870 = vld [vmem:[%s823 + $0x61] sm:$0xff]
      %v871 = vld [vmem:[%s823 + $0x71] sm:$0xff]
      %v872 = vld [vmem:[%s823 + $0x2] sm:$0xff]
      %v873 = vld [vmem:[%s823 + $0x12] sm:$0xff]
      %v874 = vld [vmem:[%s823 + $0x22] sm:$0xff]
      %v875 = vld [vmem:[%s823 + $0x32] sm:$0xff]
      %v876 = vld [vmem:[%s823 + $0x42] sm:$0xff]
      %v877 = vld [vmem:[%s823 + $0x52] sm:$0xff]
      %v878 = vld [vmem:[%s823 + $0x62] sm:$0xff]
      %v879 = vld [vmem:[%s823 + $0x72] sm:$0xff]
      %s880 = scalar_lea.vmem [#allocation3], 32
      %v881 = vld [vmem:[%s880] sm:$0xff]
      %v882 = vld [vmem:[%s880 + $0x10] sm:$0xff]
      %v883 = vld [vmem:[%s880 + $0x20] sm:$0xff]
      %v884 = vld [vmem:[%s880 + $0x30] sm:$0xff]
      %v885 = vld [vmem:[%s880 + $0x40] sm:$0xff]
      %v886 = vld [vmem:[%s880 + $0x50] sm:$0xff]
      %v887 = vld [vmem:[%s880 + $0x60] sm:$0xff]
      %v888 = vld [vmem:[%s880 + $0x70] sm:$0xff]
      %v889 = vld [vmem:[%s880 + $0x1] sm:$0xff]
      %v890 = vld [vmem:[%s880 + $0x11] sm:$0xff]
      %v891 = vld [vmem:[%s880 + $0x21] sm:$0xff]
      %v892 = vld [vmem:[%s880 + $0x31] sm:$0xff]
      %v893 = vld [vmem:[%s880 + $0x41] sm:$0xff]
      %v894 = vld [vmem:[%s880 + $0x51] sm:$0xff]
      %v895 = vld [vmem:[%s880 + $0x61] sm:$0xff]
      %v896 = vld [vmem:[%s880 + $0x71] sm:$0xff]
      %v897 = vld [vmem:[%s880 + $0x2] sm:$0xff]
      %v898 = vld [vmem:[%s880 + $0x12] sm:$0xff]
      %v899 = vld [vmem:[%s880 + $0x22] sm:$0xff]
      %v900 = vld [vmem:[%s880 + $0x32] sm:$0xff]
      %v901 = vld [vmem:[%s880 + $0x42] sm:$0xff]
      %v902 = vld [vmem:[%s880 + $0x52] sm:$0xff]
      %v903 = vld [vmem:[%s880 + $0x62] sm:$0xff]
      %v904 = vld [vmem:[%s880 + $0x72] sm:$0xff]
      %913 = vrot.lane.b32.xlu0 %v840, 16
      %v914 = vpop.permute.xlu0 %913
      %915 = vrot.lane.b32.xlu0 %v841, 16
      %v916 = vpop.permute.xlu0 %915
      %917 = vrot.lane.b32.xlu0 %v842, 16
      %v918 = vpop.permute.xlu0 %917
      %919 = vrot.lane.b32.xlu0 %v843, 16
      %v920 = vpop.permute.xlu0 %919
      %921 = vrot.lane.b32.xlu0 %v844, 16
      %v922 = vpop.permute.xlu0 %921
      %923 = vrot.lane.b32.xlu0 %v845, 16
      %v924 = vpop.permute.xlu0 %923
      %925 = vrot.lane.b32.xlu0 %v846, 16
      %v926 = vpop.permute.xlu0 %925
      %927 = vrot.lane.b32.xlu0 %v847, 16
      %v928 = vpop.permute.xlu0 %927
      %945 = vrot.lane.b32.xlu0 %v848, 32
      %v946 = vpop.permute.xlu0 %945
      %947 = vrot.lane.b32.xlu0 %v849, 32
      %v948 = vpop.permute.xlu0 %947
      %949 = vrot.lane.b32.xlu0 %v850, 32
      %v950 = vpop.permute.xlu0 %949
      %951 = vrot.lane.b32.xlu0 %v851, 32
      %v952 = vpop.permute.xlu0 %951
      %953 = vrot.lane.b32.xlu0 %v852, 32
      %v954 = vpop.permute.xlu0 %953
      %955 = vrot.lane.b32.xlu0 %v853, 32
      %v956 = vpop.permute.xlu0 %955
      %957 = vrot.lane.b32.xlu0 %v854, 32
      %v958 = vpop.permute.xlu0 %957
      %959 = vrot.lane.b32.xlu0 %v855, 32
      %v960 = vpop.permute.xlu0 %959
      %977 = vrot.lane.b32.xlu0 %v856, 48
      %v978 = vpop.permute.xlu0 %977
      %979 = vrot.lane.b32.xlu0 %v857, 48
      %v980 = vpop.permute.xlu0 %979
      %981 = vrot.lane.b32.xlu0 %v858, 48
      %v982 = vpop.permute.xlu0 %981
      %983 = vrot.lane.b32.xlu0 %v859, 48
      %v984 = vpop.permute.xlu0 %983
      %985 = vrot.lane.b32.xlu0 %v860, 48
      %v986 = vpop.permute.xlu0 %985
      %987 = vrot.lane.b32.xlu0 %v861, 48
      %v988 = vpop.permute.xlu0 %987
      %989 = vrot.lane.b32.xlu0 %v862, 48
      %v990 = vpop.permute.xlu0 %989
      %991 = vrot.lane.b32.xlu0 %v863, 48
      %v992 = vpop.permute.xlu0 %991
      %1009 = vrot.lane.b32.xlu0 %v864, 64
      %v1010 = vpop.permute.xlu0 %1009
      %1011 = vrot.lane.b32.xlu0 %v865, 64
      %v1012 = vpop.permute.xlu0 %1011
      %1013 = vrot.lane.b32.xlu0 %v866, 64
      %v1014 = vpop.permute.xlu0 %1013
      %1015 = vrot.lane.b32.xlu0 %v867, 64
      %v1016 = vpop.permute.xlu0 %1015
      %1017 = vrot.lane.b32.xlu0 %v868, 64
      %v1018 = vpop.permute.xlu0 %1017
      %1019 = vrot.lane.b32.xlu0 %v869, 64
      %v1020 = vpop.permute.xlu0 %1019
      %1021 = vrot.lane.b32.xlu0 %v870, 64
      %v1022 = vpop.permute.xlu0 %1021
      %1023 = vrot.lane.b32.xlu0 %v871, 64
      %v1024 = vpop.permute.xlu0 %1023
      %1041 = vrot.lane.b32.xlu0 %v872, 80
      %v1042 = vpop.permute.xlu0 %1041
      %1043 = vrot.lane.b32.xlu0 %v873, 80
      %v1044 = vpop.permute.xlu0 %1043
      %1045 = vrot.lane.b32.xlu0 %v874, 80
      %v1046 = vpop.permute.xlu0 %1045
      %1047 = vrot.lane.b32.xlu0 %v875, 80
      %v1048 = vpop.permute.xlu0 %1047
      %1049 = vrot.lane.b32.xlu0 %v876, 80
      %v1050 = vpop.permute.xlu0 %1049
      %1051 = vrot.lane.b32.xlu0 %v877, 80
      %v1052 = vpop.permute.xlu0 %1051
      %1053 = vrot.lane.b32.xlu0 %v878, 80
      %v1054 = vpop.permute.xlu0 %1053
      %1055 = vrot.lane.b32.xlu0 %v879, 80
      %v1056 = vpop.permute.xlu0 %1055
      %1073 = vrot.lane.b32.xlu0 %v881, 96
      %v1074 = vpop.permute.xlu0 %1073
      %1075 = vrot.lane.b32.xlu0 %v882, 96
      %v1076 = vpop.permute.xlu0 %1075
      %1077 = vrot.lane.b32.xlu0 %v883, 96
      %v1078 = vpop.permute.xlu0 %1077
      %1079 = vrot.lane.b32.xlu0 %v884, 96
      %v1080 = vpop.permute.xlu0 %1079
      %1081 = vrot.lane.b32.xlu0 %v885, 96
      %v1082 = vpop.permute.xlu0 %1081
      %1083 = vrot.lane.b32.xlu0 %v886, 96
      %v1084 = vpop.permute.xlu0 %1083
      %1085 = vrot.lane.b32.xlu0 %v887, 96
      %v1086 = vpop.permute.xlu0 %1085
      %1087 = vrot.lane.b32.xlu0 %v888, 96
      %v1088 = vpop.permute.xlu0 %1087
      %1105 = vrot.lane.b32.xlu0 %v889, 112
      %v1106 = vpop.permute.xlu0 %1105
      %1107 = vrot.lane.b32.xlu0 %v890, 112
      %v1108 = vpop.permute.xlu0 %1107
      %1109 = vrot.lane.b32.xlu0 %v891, 112
      %v1110 = vpop.permute.xlu0 %1109
      %1111 = vrot.lane.b32.xlu0 %v892, 112
      %v1112 = vpop.permute.xlu0 %1111
      %1113 = vrot.lane.b32.xlu0 %v893, 112
      %v1114 = vpop.permute.xlu0 %1113
      %1115 = vrot.lane.b32.xlu0 %v894, 112
      %v1116 = vpop.permute.xlu0 %1115
      %1117 = vrot.lane.b32.xlu0 %v895, 112
      %v1118 = vpop.permute.xlu0 %1117
      %1119 = vrot.lane.b32.xlu0 %v896, 112
      %v1120 = vpop.permute.xlu0 %1119
      %v1129 = vsel %vm602, %v832, %v914
      %v1130 = vsel %vm602, %v833, %v916
      %v1131 = vsel %vm602, %v834, %v918
      %v1132 = vsel %vm602, %v835, %v920
      %v1133 = vsel %vm602, %v836, %v922
      %v1134 = vsel %vm602, %v837, %v924
      %v1135 = vsel %vm602, %v838, %v926
      %v1136 = vsel %vm602, %v839, %v928
      %v1137 = vsel %vm620, %v1129, %v946
      %v1138 = vsel %vm620, %v1130, %v948
      %v1139 = vsel %vm620, %v1131, %v950
      %v1140 = vsel %vm620, %v1132, %v952
      %v1141 = vsel %vm620, %v1133, %v954
      %v1142 = vsel %vm620, %v1134, %v956
      %v1143 = vsel %vm620, %v1135, %v958
      %v1144 = vsel %vm620, %v1136, %v960
      %v1145 = vsel %vm638, %v1137, %v978
      %v1146 = vsel %vm638, %v1138, %v980
      %v1147 = vsel %vm638, %v1139, %v982
      %v1148 = vsel %vm638, %v1140, %v984
      %v1149 = vsel %vm638, %v1141, %v986
      %v1150 = vsel %vm638, %v1142, %v988
      %v1151 = vsel %vm638, %v1143, %v990
      %v1152 = vsel %vm638, %v1144, %v992
      %v1153 = vsel %vm656, %v1145, %v1010
      %v1154 = vsel %vm656, %v1146, %v1012
      %v1155 = vsel %vm656, %v1147, %v1014
      %v1156 = vsel %vm656, %v1148, %v1016
      %v1157 = vsel %vm656, %v1149, %v1018
      %v1158 = vsel %vm656, %v1150, %v1020
      %v1159 = vsel %vm656, %v1151, %v1022
      %v1160 = vsel %vm656, %v1152, %v1024
      %vm1161 = vcmask 654336
      %v1162 = vsel %vm1161, %v1153, %v1042
      %v1163 = vsel %vm1161, %v1154, %v1044
      %v1164 = vsel %vm1161, %v1155, %v1046
      %v1165 = vsel %vm1161, %v1156, %v1048
      %v1166 = vsel %vm1161, %v1157, %v1050
      %v1167 = vsel %vm1161, %v1158, %v1052
      %v1168 = vsel %vm1161, %v1159, %v1054
      %v1169 = vsel %vm1161, %v1160, %v1056
      %vm1170 = vcmask 785408
      %v1171 = vsel %vm1170, %v1162, %v1074
      %v1172 = vsel %vm1170, %v1163, %v1076
      %v1173 = vsel %vm1170, %v1164, %v1078
      %v1174 = vsel %vm1170, %v1165, %v1080
      %v1175 = vsel %vm1170, %v1166, %v1082
      %v1176 = vsel %vm1170, %v1167, %v1084
      %v1177 = vsel %vm1170, %v1168, %v1086
      %v1178 = vsel %vm1170, %v1169, %v1088
      %vm1179 = vcmask 916480
      %v1180 = vsel %vm1179, %v1171, %v1106
      %v1181 = vsel %vm1179, %v1172, %v1108
      %v1182 = vsel %vm1179, %v1173, %v1110
      %v1183 = vsel %vm1179, %v1174, %v1112
      %v1184 = vsel %vm1179, %v1175, %v1114
      %v1185 = vsel %vm1179, %v1176, %v1116
      %v1186 = vsel %vm1179, %v1177, %v1118
      %v1187 = vsel %vm1179, %v1178, %v1120
      %v1188 = vpack.c.bf16 %v1181, %v1180
      %v1189 = vpack.c.bf16 %v898, %v897
      %v1190 = vpack.c.bf16 %v1183, %v1182
      %v1191 = vpack.c.bf16 %v900, %v899
      %v1192 = vpack.c.bf16 %v1185, %v1184
      %v1193 = vpack.c.bf16 %v902, %v901
      %v1194 = vpack.c.bf16 %v1187, %v1186
      %v1195 = vpack.c.bf16 %v904, %v903
      %v1196 = vld [vmem:[%s3] sm:$0xf]
      %v1197 = vld [vmem:[%s3 + $0x4] sm:$0xf]
      %v1198 = vld [vmem:[%s3 + $0x8] sm:$0xf]
      %v1199 = vld [vmem:[%s3 + $0xc] sm:$0xf]
      %v1200 = vld [vmem:[%s3 + $0x10] sm:$0xf]
      %v1201 = vld [vmem:[%s3 + $0x14] sm:$0xf]
      %v1202 = vld [vmem:[%s3 + $0x18] sm:$0xf]
      %v1203 = vld [vmem:[%s3 + $0x1c] sm:$0xf]
      %v1204 = vld [vmem:[%s3 + $0x20] sm:$0xf]
      %v1205 = vld [vmem:[%s3 + $0x24] sm:$0xf]
      %v1206 = vld [vmem:[%s3 + $0x28] sm:$0xf]
      %v1207 = vld [vmem:[%s3 + $0x2c] sm:$0xf]
      %v1208 = vld [vmem:[%s3 + $0x30] sm:$0xf]
      %v1209 = vld [vmem:[%s3 + $0x34] sm:$0xf]
      %v1210 = vld [vmem:[%s3 + $0x38] sm:$0xf]
      %v1211 = vld [vmem:[%s3 + $0x3c] sm:$0xf]
      %v1212 = vld [vmem:[%s3 + $0x40] sm:$0xf]
      %v1213 = vld [vmem:[%s3 + $0x44] sm:$0xf]
      %v1214 = vld [vmem:[%s4] sm:$0x1]
      %v1216 = vlaneseq
      %v1217 = vshrl.u32 %v1216, 7
      %v1218 = vsub.s32 0, %v1217
      %v1219 = vrot.slane %v1214, %v1218
      %v1239 = vunpack.c.l.b16 %v1196
      %v1240 = vunpack.c.l.b16 %v1197
      %v1241 = vunpack.c.l.b16 %v1198
      %v1242 = vunpack.c.l.b16 %v1199
      %v1243 = vunpack.c.l.b16 %v1200
      %v1244 = vunpack.c.l.b16 %v1201
      %v1245 = vunpack.c.l.b16 %v1202
      %v1246 = vunpack.c.l.b16 %v1203
      %v1247 = vunpack.c.l.b16 %v1204
      %v1248 = vunpack.c.l.b16 %v1205
      %v1249 = vunpack.c.l.b16 %v1206
      %v1250 = vunpack.c.l.b16 %v1207
      %v1251 = vunpack.c.l.b16 %v1208
      %v1252 = vunpack.c.l.b16 %v1209
      %v1253 = vunpack.c.l.b16 %v1210
      %v1254 = vunpack.c.l.b16 %v1211
      %v1255 = vunpack.c.l.b16 %v1212
      %v1256 = vunpack.c.l.b16 %v1213
      %v1257 = vpack.c.b16 %v1240, %v1239
      %v1258 = vpack.c.b16 %v1242, %v1241
      %v1259 = vpack.c.b16 %v1244, %v1243
      %v1260 = vpack.c.b16 %v1246, %v1245
      %v1261 = vpack.c.b16 %v1248, %v1247
      %v1262 = vpack.c.b16 %v1250, %v1249
      %v1263 = vpack.c.b16 %v1252, %v1251
      %v1264 = vpack.c.b16 %v1254, %v1253
      %v1265 = vpack.c.b16 %v1256, %v1255
      %v1276 = vsel %vm602, %v1189, 0
      %v1279 = vsel %vm602, %v1191, 0
      %v1282 = vsel %vm602, %v1193, 0
      %v1285 = vsel %vm602, %v1195, 0
      %1287 = vmatprep.subr.bf16.mxu0 0
      %1288 = vmatpush1.bf16.msra.mxu0 %v1257
      %1289 = vmatprep.subr.bf16.mxu0 0
      %1290 = vmatpush1.bf16.msra.mxu0 %v1258
      %1291 = vmatprep.subr.bf16.mxu0 0
      %1292 = vmatpush1.bf16.msra.mxu0 %v1259
      %1293 = vmatprep.subr.bf16.mxu0 0
      %1294 = vmatpush1.bf16.msra.mxu0 %v1260
      %1295 = vmatprep.subr.bf16.mxu0 0
      %1296 = vmatpush1.bf16.msra.mxu0 %v1261
      %1297 = vmatprep.subr.bf16.mxu0 0
      %1298 = vmatpush1.bf16.msra.mxu0 %v1262
      %1299 = vmatprep.subr.bf16.mxu0 0
      %1300 = vmatpush1.bf16.msra.mxu0 %v1263
      %1301 = vmatprep.subr.bf16.mxu0 0
      %1302 = vmatpush1.bf16.msra.mxu0 %v1264
      %1303 = vmatprep.subr.bf16.mxu0 0
      %1304 = vmatpush1.bf16.msra.mxu0 %v1265
      %1305 = vmatprep.subr.bf16.mxu0 0
      %1306 = vmatpush1.bf16.msra.mxu0 0
      %1307 = vmatprep.subr.bf16.mxu0 0
      %1308 = vmatpush1.bf16.msra.mxu0 0
      %1309 = vmatprep.subr.bf16.mxu0 0
      %1310 = vmatpush1.bf16.msra.mxu0 0
      %1311 = vmatprep.subr.bf16.mxu0 0
      %1312 = vmatpush1.bf16.msra.mxu0 0
      %1313 = vmatprep.subr.bf16.mxu0 0
      %1314 = vmatpush1.bf16.msra.mxu0 0
      %1315 = vmatprep.subr.bf16.mxu0 0
      %1316 = vmatpush1.bf16.msra.mxu0 0
      %1317 = vmatprep.subr.bf16.mxu0 0
      %1318 = vmatpush1.bf16.msra.mxu0 0
      %1319 = vmatprep.mubr.bf16.mxu0 %v1276
      %1320 = vmatmul.mubr.bf16.gmra.mrb[0].mxu0 %v1188
      %v1321 = vpop.f32.mrb[0].mxu0
      %v1322 = vadd.f32 %v1219, %v1321
      %v1323 = vpop.f32.mrb[0].mxu0
      %v1324 = vpop.f32.mrb[0].mxu0
      %v1325 = vadd.f32 %v1219, %v1324
      %v1326 = vpop.f32.mrb[0].mxu0
      %1327 = vmatprep.mubr.bf16.mxu0 %v1279
      %1328 = vmatmul.mubr.bf16.gmra.mrb[0].mxu0 %v1190
      %v1329 = vpop.f32.mrb[0].mxu0
      %v1330 = vadd.f32 %v1219, %v1329
      %v1331 = vpop.f32.mrb[0].mxu0
      %v1332 = vpop.f32.mrb[0].mxu0
      %v1333 = vadd.f32 %v1219, %v1332
      %v1334 = vpop.f32.mrb[0].mxu0
      %1335 = vmatprep.mubr.bf16.mxu0 %v1282
      %1336 = vmatmul.mubr.bf16.gmra.mrb[0].mxu0 %v1192
      %v1337 = vpop.f32.mrb[0].mxu0
      %v1338 = vadd.f32 %v1219, %v1337
      %v1339 = vpop.f32.mrb[0].mxu0
      %v1340 = vpop.f32.mrb[0].mxu0
      %v1341 = vadd.f32 %v1219, %v1340
      %v1342 = vpop.f32.mrb[0].mxu0
      %1343 = vmatprep.mubr.bf16.mxu0 %v1285
      %1344 = vmatmul.mubr.bf16.gmra.mrb[0].mxu0 %v1194
      %v1345 = vpop.f32.mrb[0].mxu0
      %v1346 = vadd.f32 %v1219, %v1345
      %v1347 = vpop.f32.mrb[0].mxu0
      %v1348 = vpop.f32.mrb[0].mxu0
      %v1349 = vadd.f32 %v1219, %v1348
      %v1350 = vpop.f32.mrb[0].mxu0
      %1351 = vdwg.mxu0
      %v1352 = vmax.f32 %v1322, 0.0
      %v1353 = vmax.f32 %v1325, 0.0
      %v1354 = vmax.f32 %v1330, 0.0
      %v1355 = vmax.f32 %v1333, 0.0
      %v1356 = vmax.f32 %v1338, 0.0
      %v1357 = vmax.f32 %v1341, 0.0
      %v1358 = vmax.f32 %v1346, 0.0
      %v1359 = vmax.f32 %v1349, 0.0
      %1360 = vst.msk [vmem:[%s224] sm:$0xff] %vm602, %v1352
      %1361 = vst.msk [vmem:[%s224 + $0x8] sm:$0xff] %vm602, %v1353
      %1362 = vst.msk [vmem:[%s224 + $0x10] sm:$0xff] %vm602, %v1354
      %1363 = vst.msk [vmem:[%s224 + $0x18] sm:$0xff] %vm602, %v1355
      %1364 = vst.msk [vmem:[%s224 + $0x20] sm:$0xff] %vm602, %v1356
      %1365 = vst.msk [vmem:[%s224 + $0x28] sm:$0xff] %vm602, %v1357
      %1366 = vst.msk [vmem:[%s224 + $0x30] sm:$0xff] %vm602, %v1358
      %1367 = vst.msk [vmem:[%s224 + $0x38] sm:$0xff] %vm602, %v1359
      %p1368 = scmp.lt.s32.totalorder %s16, 1
      %s1369 = scalar_select %p1368, %s16, 1
      %s1370 = smul.addr %s1369, 8
      %s1371 = smul.addr %s1370, 8
      %s1372 = scalar_lea.vmem %s5, %s1371
      // Predicated region
      $region41: #{encoder_blocks_forward.6} parent=39 // pred_check
        %p1373 = pneg %p144
      $region42: #{encoder_blocks_forward.6} parent=39 // pred_check_branch
        %1375 = sbr.rel (%p1373) target = $region44
      $region43: #{encoder_blocks_forward.6} parent=39 // pred_region
        _
      $region44: #{encoder_blocks_forward.6} parent=39 // pred_fallthru
        _
    $region40: #{encoder_blocks_forward.6} parent=5 // pred_fallthru
      _
    %p1376 = scmp.le.s32.totalorder 2, %s11
    // Predicated region
    $region45: #{encoder_blocks_forward.6} parent=5 // pred_check
      %p1377 = pneg %p1376
    $region46: #{encoder_blocks_forward.6} parent=5 // pred_check_branch
      %1379 = sbr.rel (%p1377) target = $region48
    $region47: #{encoder_blocks_forward.6} parent=5 // pred_region
      %s1380 = ssub.s32 %s11, 2
      // Predicated region
      $region49: #{encoder_blocks_forward.6} parent=47 // pred_check
        %p1381 = pneg %p150
      $region50: #{encoder_blocks_forward.6} parent=47 // pred_check_branch
        %1383 = sbr.rel (%p1381) target = $region52
      $region51: #{encoder_blocks_forward.6} parent=47 // pred_region
        %p1384 = scmp.lt.s32.totalorder %s17, 1
        %s1385 = scalar_select %p1384, %s17, 1
        %s1386 = smul.addr %s1385, 8
        %s1387 = smul.addr %s1386, 8
        %s1388 = scalar_lea.vmem %s5, %s1387
      $region52: #{encoder_blocks_forward.6} parent=47 // pred_fallthru
        _
    $region48: #{encoder_blocks_forward.6} parent=5 // pred_fallthru
      _
  $region6: #{encoder_blocks_forward.6} parent=0 // loop_footer
    %s15 = sadd.s32 1, %s11
  $region7: #{encoder_blocks_forward.6} parent=0 // loop_footer_branch
    %10 = sbr.rel target = $region3
  $region8: #{encoder_blocks_forward.6} parent=0 // loop_exit
    _

// kernel: encoder_blocks_forward.4
$region0: #{encoder_blocks_forward.4}
  #allocation0 [shape = 'u32[]', space=smem, size = 0x4, offset = 0x4, fixed_abs, tag = 'smem constant byte address 0x4 - core index']
  #allocation1 [shape = 'u32[144,128]{1,0:T(1,128)}', space=vmem, size = 0x12000, scoped, tag = 'internal scratch']
  #allocation2 [shape = 'f32[1,18,18,4]{3,2,1,0:T(8,128)}', space=vmem, size = 0x36000, scoped, tag = 'scratch operand']
  #allocation3 [shape = 'f32[1,18,18,8]{3,2,1,0:T(8,128)}', space=vmem, size = 0x36000, scoped, tag = 'scratch operand']
  %s0 = inlined_call_operand.vmem [shape: f32[2,16,16,4], index: 0, kind: input, shape index: {}]
  %s1 = inlined_call_operand.vmem [shape: bf16[36,8], index: 1, kind: input, shape index: {}]
  %s2 = inlined_call_operand.vmem [shape: f32[1,8], index: 2, kind: input, shape index: {}]
  %s3 = inlined_call_operand.vmem [shape: bf16[72,8], index: 3, kind: input, shape index: {}]
  %s4 = inlined_call_operand.vmem [shape: f32[1,8], index: 4, kind: input, shape index: {}]
  %s5 = inlined_call_operand.vmem [shape: f32[2,16,16,8], index: 5, kind: output, shape index: {}]
  %s6 = sld [smem:[#allocation0]]
  $region53: #{encoder_blocks_forward.4} parent=0
    _
  %s8 = ssub.s32 1, %s6
  %s9 = scalar_select 0, %s8, %s6
  loop: start=0, step=1, limit=4
  $region2: #{encoder_blocks_forward.4} parent=0 // loop_pre_header
    _
  $region3: #{encoder_blocks_forward.4} parent=0 // loop_header
    %s11 = sphi 0, %s15
    %p12 = scmp.ge.s32.totalorder %s11, 4
    %s21 = sphi 0, %s23
    %s24 = sphi 0, %s21
    %s25 = sphi 0, %s24
    %s41 = sphi 0, %s25
    %s45 = sphi 0, %s45
    %s47 = sphi 0, %s45
    %s48 = sphi 0, %s47
    %s62 = sphi 0, %s48
    %s66 = sphi 0, %s66
    %s68 = sphi 0, %s66
    %s69 = sphi 0, %s68
    %s83 = sphi 0, %s69
    %s87 = sphi 0, %s87
    %s89 = sphi 0, %s87
    %s90 = sphi 0, %s89
    %s104 = sphi 0, %s90
    %s108 = sphi 0, %s108
    %s110 = sphi 0, %s108
    %s111 = sphi 0, %s110
    %s125 = sphi 0, %s111
    %s131 = sphi 0, %s133
    %s134 = sphi 0, %s131
    %s135 = sphi 0, %s134
    %s151 = sphi 0, %s135
  $region4: #{encoder_blocks_forward.4} parent=0 // loop_header_branch
    %14 = sbr.rel (%p12) target = $region8
  $region5: #{encoder_blocks_forward.4} parent=0 // loop_body
    %s16 = ssub.s32 %s11, 1
    %s17 = ssub.s32 %s11, 2
    %s18 = sadd.s32 %s11, 1
    %s19 = ssub.s32 %s11, %s18
    %p20 = scmp.eq.s32.totalorder %s19, 0
    %s22 = sadd.s32 %s21, 1
    %s23 = scalar_select %p20, %s21, %s22
    %p26 = pneg %p20
    %p27 = scmp.eq.s32.totalorder %s11, 1
    %p28 = por %p26, %p27
    %p29 = scmp.ne.s32.totalorder %s21, %s24
    %p30 = scmp.eq.s32.totalorder %s11, 0
    %p31 = por %p29, %p30
    %p32 = scmp.ne.s32.totalorder %s21, %s24
    %p33 = scmp.eq.s32.totalorder %s16, 1
    %p34 = por %p32, %p33
    %p35 = scmp.ne.s32.totalorder %s24, %s25
    %p36 = scmp.eq.s32.totalorder %s16, 0
    %p37 = por %p35, %p36
    %p38 = scmp.ne.s32.totalorder %s24, %s25
    %p39 = scmp.eq.s32.totalorder %s17, 1
    %p40 = por %p38, %p39
    %p42 = scmp.ne.s32.totalorder %s25, %s41
    %p43 = scmp.eq.s32.totalorder %s17, 0
    %p44 = por %p42, %p43
    %s46 = sadd.s32 %s45, 1
    %p49 = scmp.eq.s32.totalorder %s11, 1
    %p50 = scmp.ne.s32.totalorder %s45, %s47
    %p51 = scmp.eq.s32.totalorder %s11, 0
    %p52 = por %p50, %p51
    %p53 = scmp.ne.s32.totalorder %s45, %s47
    %p54 = scmp.eq.s32.totalorder %s16, 1
    %p55 = por %p53, %p54
    %p56 = scmp.ne.s32.totalorder %s47, %s48
    %p57 = scmp.eq.s32.totalorder %s16, 0
    %p58 = por %p56, %p57
    %p59 = scmp.ne.s32.totalorder %s47, %s48
    %p60 = scmp.eq.s32.totalorder %s17, 1
    %p61 = por %p59, %p60
    %p63 = scmp.ne.s32.totalorder %s48, %s62
    %p64 = scmp.eq.s32.totalorder %s17, 0
    %p65 = por %p63, %p64
    %s67 = sadd.s32 %s66, 1
    %p70 = scmp.eq.s32.totalorder %s11, 1
    %p71 = scmp.ne.s32.totalorder %s66, %s68
    %p72 = scmp.eq.s32.totalorder %s11, 0
    %p73 = por %p71, %p72
    %p74 = scmp.ne.s32.totalorder %s66, %s68
    %p75 = scmp.eq.s32.totalorder %s16, 1
    %p76 = por %p74, %p75
    %p77 = scmp.ne.s32.totalorder %s68, %s69
    %p78 = scmp.eq.s32.totalorder %s16, 0
    %p79 = por %p77, %p78
    %p80 = scmp.ne.s32.totalorder %s68, %s69
    %p81 = scmp.eq.s32.totalorder %s17, 1
    %p82 = por %p80, %p81
    %p84 = scmp.ne.s32.totalorder %s69, %s83
    %p85 = scmp.eq.s32.totalorder %s17, 0
    %p86 = por %p84, %p85
    %s88 = sadd.s32 %s87, 1
    %p91 = scmp.eq.s32.totalorder %s11, 1
    %p92 = scmp.ne.s32.totalorder %s87, %s89
    %p93 = scmp.eq.s32.totalorder %s11, 0
    %p94 = por %p92, %p93
    %p95 = scmp.ne.s32.totalorder %s87, %s89
    %p96 = scmp.eq.s32.totalorder %s16, 1
    %p97 = por %p95, %p96
    %p98 = scmp.ne.s32.totalorder %s89, %s90
    %p99 = scmp.eq.s32.totalorder %s16, 0
    %p100 = por %p98, %p99
    %p101 = scmp.ne.s32.totalorder %s89, %s90
    %p102 = scmp.eq.s32.totalorder %s17, 1
    %p103 = por %p101, %p102
    %p105 = scmp.ne.s32.totalorder %s90, %s104
    %p106 = scmp.eq.s32.totalorder %s17, 0
    %p107 = por %p105, %p106
    %s109 = sadd.s32 %s108, 1
    %p112 = scmp.eq.s32.totalorder %s11, 1
    %p113 = scmp.ne.s32.totalorder %s108, %s110
    %p114 = scmp.eq.s32.totalorder %s11, 0
    %p115 = por %p113, %p114
    %p116 = scmp.ne.s32.totalorder %s108, %s110
    %p117 = scmp.eq.s32.totalorder %s16, 1
    %p118 = por %p116, %p117
    %p119 = scmp.ne.s32.totalorder %s110, %s111
    %p120 = scmp.eq.s32.totalorder %s16, 0
    %p121 = por %p119, %p120
    %p122 = scmp.ne.s32.totalorder %s110, %s111
    %p123 = scmp.eq.s32.totalorder %s17, 1
    %p124 = por %p122, %p123
    %p126 = scmp.ne.s32.totalorder %s111, %s125
    %p127 = scmp.eq.s32.totalorder %s17, 0
    %p128 = por %p126, %p127
    %s129 = ssub.s32 %s11, %s18
    %p130 = scmp.eq.s32.totalorder %s129, 0
    %s132 = sadd.s32 %s131, 1
    %s133 = scalar_select %p130, %s131, %s132
    %p136 = pneg %p130
    %p137 = scmp.eq.s32.totalorder %s11, 1
    %p138 = por %p136, %p137
    %p139 = scmp.ne.s32.totalorder %s131, %s134
    %p140 = scmp.eq.s32.totalorder %s11, 0
    %p141 = por %p139, %p140
    %p142 = scmp.ne.s32.totalorder %s131, %s134
    %p143 = scmp.eq.s32.totalorder %s16, 1
    %p144 = por %p142, %p143
    %p145 = scmp.ne.s32.totalorder %s134, %s135
    %p146 = scmp.eq.s32.totalorder %s16, 0
    %p147 = por %p145, %p146
    %p148 = scmp.ne.s32.totalorder %s134, %s135
    %p149 = scmp.eq.s32.totalorder %s17, 1
    %p150 = por %p148, %p149
    %p152 = scmp.ne.s32.totalorder %s135, %s151
    %p153 = scmp.eq.s32.totalorder %s17, 0
    %p154 = por %p152, %p153
    %p155 = scmp.le.s32.totalorder 1, %s11
    %p156 = scmp.lt.s32.totalorder %s11, 3
    %p157 = pnand %p155, %p156
    %p158 = pneg %p157
    // Predicated region
    $region9: #{encoder_blocks_forward.4} parent=5 // pred_check
      _
    $region10: #{encoder_blocks_forward.4} parent=5 // pred_check_branch
      %160 = sbr.rel (%p157) target = $region12
    $region11: #{encoder_blocks_forward.4} parent=5 // pred_region
      %s161 = ssub.s32 %s11, 1
      // Predicated region
      $region13: #{encoder_blocks_forward.4} parent=11 // pred_check
        %p162 = pneg %p58
      $region14: #{encoder_blocks_forward.4} parent=11 // pred_check_branch
        %164 = sbr.rel (%p162) target = $region16
      $region15: #{encoder_blocks_forward.4} parent=11 // pred_region
        _
      $region16: #{encoder_blocks_forward.4} parent=11 // pred_fallthru
        _
      // Predicated region
      $region17: #{encoder_blocks_forward.4} parent=11 // pred_check
        %p165 = pneg %p79
      $region18: #{encoder_blocks_forward.4} parent=11 // pred_check_branch
        %167 = sbr.rel (%p165) target = $region20
      $region19: #{encoder_blocks_forward.4} parent=11 // pred_region
        _
      $region20: #{encoder_blocks_forward.4} parent=11 // pred_fallthru
        _
      // Predicated region
      $region21: #{encoder_blocks_forward.4} parent=11 // pred_check
        %p168 = pneg %p100
      $region22: #{encoder_blocks_forward.4} parent=11 // pred_check_branch
        %170 = sbr.rel (%p168) target = $region24
      $region23: #{encoder_blocks_forward.4} parent=11 // pred_region
        _
      $region24: #{encoder_blocks_forward.4} parent=11 // pred_fallthru
        _
      // Predicated region
      $region25: #{encoder_blocks_forward.4} parent=11 // pred_check
        %p171 = pneg %p121
      $region26: #{encoder_blocks_forward.4} parent=11 // pred_check_branch
        %173 = sbr.rel (%p171) target = $region28
      $region27: #{encoder_blocks_forward.4} parent=11 // pred_region
        _
      $region28: #{encoder_blocks_forward.4} parent=11 // pred_fallthru
        _
    $region12: #{encoder_blocks_forward.4} parent=5 // pred_fallthru
      _
    %p174 = scmp.lt.s32.totalorder %s11, 2
    // Predicated region
    $region29: #{encoder_blocks_forward.4} parent=5 // pred_check
      %p175 = pneg %p174
    $region30: #{encoder_blocks_forward.4} parent=5 // pred_check_branch
      %177 = sbr.rel (%p175) target = $region32
    $region31: #{encoder_blocks_forward.4} parent=5 // pred_region
      // Predicated region
      $region33: #{encoder_blocks_forward.4} parent=31 // pred_check
        %p178 = pneg %p31
      $region34: #{encoder_blocks_forward.4} parent=31 // pred_check_branch
        %180 = sbr.rel (%p178) target = $region36
      $region35: #{encoder_blocks_forward.4} parent=31 // pred_region
        %p181 = scmp.lt.s32.totalorder %s11, 1
        %s182 = scalar_select %p181, %s11, 1
        %s183 = smul.addr %s182, 32
        %s184 = smul.addr %s183, 8
        %s185 = scalar_lea.vmem %s0, %s184
      $region36: #{encoder_blocks_forward.4} parent=31 // pred_fallthru
        _
    $region32: #{encoder_blocks_forward.4} parent=5 // pred_fallthru
      _
    %p186 = scmp.le.s32.totalorder 1, %s11
    %p187 = scmp.lt.s32.totalorder %s11, 3
    %p188 = pnand %p186, %p187
    %p189 = pneg %p188
    // Predicated region
    $region37: #{encoder_blocks_forward.4} parent=5 // pred_check
      _
    $region38: #{encoder_blocks_forward.4} parent=5 // pred_check_branch
      %191 = sbr.rel (%p188) target = $region40
    $region39: #{encoder_blocks_forward.4} parent=5 // pred_region
      %s192 = ssub.s32 %s11, 1
      %p193 = scmp.lt.s32.totalorder %s16, 1
      %s194 = scalar_select %p193, %s16, 1
      %s195 = smul.addr %s194, 32
      %s196 = smul.addr %s195, 8
      %s197 = scalar_lea.vmem %s0, %s196
      %p198 = pneg %p37
      %p199 = pneg %p34
      %p200 = pneg %p58
      %p201 = pneg %p55
      %p202 = pneg %p79
      %p203 = pneg %p76
      %p204 = pneg %p100
      %p205 = pneg %p97
      %p206 = pneg %p121
      %p207 = pneg %p118
      %p208 = pneg %p147
      %p209 = pneg %p144
      %p210 = scmp.lt.s32.totalorder %s16, 1
      %s211 = scalar_select %p210, %s16, 1
      %s212 = smul.addr %s211, 32
      %s213 = smul.addr %s212, 8
      %s214 = scalar_lea.vmem %s5, %s213
      %p215 = scmp.lt.s32.totalorder %s16, 1
      %s216 = scalar_select %p215, %s16, 1
      %s217 = smul.addr %s216, 32
      %s218 = smul.addr %s217, 8
      %s219 = scalar_lea.vmem %s0, %s218
      %p220 = scmp.lt.s32.totalorder %s16, 1
      %s221 = scalar_select %p220, %s16, 1
      %s222 = smul.addr %s221, 32
      %s223 = smul.addr %s222, 8
      %s224 = scalar_lea.vmem %s5, %s223
      %vm226 = vcmask 31744
      %227 = vst.msk [vmem:[#allocation2] sm:$0xff] %vm226, 0.0
      %228 = vst.msk [vmem:[#allocation2 + $0x8] sm:$0xff] %vm226, 0.0
      %vm229 = vcmask 25600
      %230 = vst.msk [vmem:[#allocation2 + $0x10] sm:$0x3] %vm229, 0.0
      %231 = vst.msk [vmem:[#allocation2 + $0x18] sm:$0xff] %vm226, 0.0
      %232 = vst.msk [vmem:[#allocation2 + $0x20] sm:$0xff] %vm226, 0.0
      %233 = vst.msk [vmem:[#allocation2 + $0x28] sm:$0x3] %vm229, 0.0
      %234 = vst.msk [vmem:[#allocation2 + $0x30] sm:$0xff] %vm226, 0.0
      %235 = vst.msk [vmem:[#allocation2 + $0x38] sm:$0xff] %vm226, 0.0
      %236 = vst.msk [vmem:[#allocation2 + $0x40] sm:$0x3] %vm229, 0.0
      %237 = vst.msk [vmem:[#allocation2 + $0x48] sm:$0xff] %vm226, 0.0
      %238 = vst.msk [vmem:[#allocation2 + $0x50] sm:$0xff] %vm226, 0.0
      %239 = vst.msk [vmem:[#allocation2 + $0x58] sm:$0x3] %vm229, 0.0
      %240 = vst.msk [vmem:[#allocation2 + $0x60] sm:$0xff] %vm226, 0.0
      %241 = vst.msk [vmem:[#allocation2 + $0x68] sm:$0xff] %vm226, 0.0
      %242 = vst.msk [vmem:[#allocation2 + $0x70] sm:$0x3] %vm229, 0.0
      %243 = vst.msk [vmem:[#allocation2 + $0x78] sm:$0xff] %vm226, 0.0
      %244 = vst.msk [vmem:[#allocation2 + $0x80] sm:$0xff] %vm226, 0.0
      %245 = vst.msk [vmem:[#allocation2 + $0x88] sm:$0x3] %vm229, 0.0
      %246 = vst.msk [vmem:[#allocation2 + $0x90] sm:$0xff] %vm226, 0.0
      %247 = vst.msk [vmem:[#allocation2 + $0x98] sm:$0xff] %vm226, 0.0
      %248 = vst.msk [vmem:[#allocation2 + $0xa0] sm:$0x3] %vm229, 0.0
      %249 = vst.msk [vmem:[#allocation2 + $0xa8] sm:$0xff] %vm226, 0.0
      %250 = vst.msk [vmem:[#allocation2 + $0xb0] sm:$0xff] %vm226, 0.0
      %251 = vst.msk [vmem:[#allocation2 + $0xb8] sm:$0x3] %vm229, 0.0
      %252 = vst.msk [vmem:[#allocation2 + $0xc0] sm:$0xff] %vm226, 0.0
      %253 = vst.msk [vmem:[#allocation2 + $0xc8] sm:$0xff] %vm226, 0.0
      %254 = vst.msk [vmem:[#allocation2 + $0xd0] sm:$0x3] %vm229, 0.0
      %255 = vst.msk [vmem:[#allocation2 + $0xd8] sm:$0xff] %vm226, 0.0
      %256 = vst.msk [vmem:[#allocation2 + $0xe0] sm:$0xff] %vm226, 0.0
      %257 = vst.msk [vmem:[#allocation2 + $0xe8] sm:$0x3] %vm229, 0.0
      %258 = vst.msk [vmem:[#allocation2 + $0xf0] sm:$0xff] %vm226, 0.0
      %259 = vst.msk [vmem:[#allocation2 + $0xf8] sm:$0xff] %vm226, 0.0
      %260 = vst.msk [vmem:[#allocation2 + $0x100] sm:$0x3] %vm229, 0.0
      %261 = vst.msk [vmem:[#allocation2 + $0x108] sm:$0xff] %vm226, 0.0
      %262 = vst.msk [vmem:[#allocation2 + $0x110] sm:$0xff] %vm226, 0.0
      %263 = vst.msk [vmem:[#allocation2 + $0x118] sm:$0x3] %vm229, 0.0
      %264 = vst.msk [vmem:[#allocation2 + $0x120] sm:$0xff] %vm226, 0.0
      %265 = vst.msk [vmem:[#allocation2 + $0x128] sm:$0xff] %vm226, 0.0
      %266 = vst.msk [vmem:[#allocation2 + $0x130] sm:$0x3] %vm229, 0.0
      %267 = vst.msk [vmem:[#allocation2 + $0x138] sm:$0xff] %vm226, 0.0
      %268 = vst.msk [vmem:[#allocation2 + $0x140] sm:$0xff] %vm226, 0.0
      %269 = vst.msk [vmem:[#allocation2 + $0x148] sm:$0x3] %vm229, 0.0
      %270 = vst.msk [vmem:[#allocation2 + $0x150] sm:$0xff] %vm226, 0.0
      %271 = vst.msk [vmem:[#allocation2 + $0x158] sm:$0xff] %vm226, 0.0
      %272 = vst.msk [vmem:[#allocation2 + $0x160] sm:$0x3] %vm229, 0.0
      %273 = vst.msk [vmem:[#allocation2 + $0x168] sm:$0xff] %vm226, 0.0
      %274 = vst.msk [vmem:[#allocation2 + $0x170] sm:$0xff] %vm226, 0.0
      %275 = vst.msk [vmem:[#allocation2 + $0x178] sm:$0x3] %vm229, 0.0
      %276 = vst.msk [vmem:[#allocation2 + $0x180] sm:$0xff] %vm226, 0.0
      %277 = vst.msk [vmem:[#allocation2 + $0x188] sm:$0xff] %vm226, 0.0
      %278 = vst.msk [vmem:[#allocation2 + $0x190] sm:$0x3] %vm229, 0.0
      %279 = vst.msk [vmem:[#allocation2 + $0x198] sm:$0xff] %vm226, 0.0
      %280 = vst.msk [vmem:[#allocation2 + $0x1a0] sm:$0xff] %vm226, 0.0
      %281 = vst.msk [vmem:[#allocation2 + $0x1a8] sm:$0x3] %vm229, 0.0
      %v282 = vld [vmem:[%s219] sm:$0xff]
      %v283 = vld [vmem:[%s219 + $0x8] sm:$0xff]
      %v284 = vld [vmem:[%s219 + $0x10] sm:$0xff]
      %v285 = vld [vmem:[%s219 + $0x18] sm:$0xff]
      %v286 = vld [vmem:[%s219 + $0x20] sm:$0xff]
      %v287 = vld [vmem:[%s219 + $0x28] sm:$0xff]
      %v288 = vld [vmem:[%s219 + $0x30] sm:$0xff]
      %v289 = vld [vmem:[%s219 + $0x38] sm:$0xff]
      %v290 = vld [vmem:[%s219 + $0x40] sm:$0xff]
      %v291 = vld [vmem:[%s219 + $0x48] sm:$0xff]
      %v292 = vld [vmem:[%s219 + $0x50] sm:$0xff]
      %v293 = vld [vmem:[%s219 + $0x58] sm:$0xff]
      %v294 = vld [vmem:[%s219 + $0x60] sm:$0xff]
      %v295 = vld [vmem:[%s219 + $0x68] sm:$0xff]
      %v296 = vld [vmem:[%s219 + $0x70] sm:$0xff]
      %v297 = vld [vmem:[%s219 + $0x78] sm:$0xff]
      %v298 = vld [vmem:[%s219 + $0x80] sm:$0xff]
      %v299 = vld [vmem:[%s219 + $0x88] sm:$0xff]
      %v300 = vld [vmem:[%s219 + $0x90] sm:$0xff]
      %v301 = vld [vmem:[%s219 + $0x98] sm:$0xff]
      %v302 = vld [vmem:[%s219 + $0xa0] sm:$0xff]
      %v303 = vld [vmem:[%s219 + $0xa8] sm:$0xff]
      %v304 = vld [vmem:[%s219 + $0xb0] sm:$0xff]
      %v305 = vld [vmem:[%s219 + $0xb8] sm:$0xff]
      %v306 = vld [vmem:[%s219 + $0xc0] sm:$0xff]
      %v307 = vld [vmem:[%s219 + $0xc8] sm:$0xff]
      %v308 = vld [vmem:[%s219 + $0xd0] sm:$0xff]
      %v309 = vld [vmem:[%s219 + $0xd8] sm:$0xff]
      %v310 = vld [vmem:[%s219 + $0xe0] sm:$0xff]
      %v311 = vld [vmem:[%s219 + $0xe8] sm:$0xff]
      %v312 = vld [vmem:[%s219 + $0xf0] sm:$0xff]
      %v313 = vld [vmem:[%s219 + $0xf8] sm:$0xff]
      %s314 = scalar_lea.vmem [#allocation2], 24
      %315 = vst.msk [vmem:[%s314 + $0x1] sm:$0xff] %vm226, %v282
      %316 = vst.msk [vmem:[%s314 + $0x9] sm:$0xff] %vm226, %v283
      %317 = vst.msk [vmem:[%s314 + $0x19] sm:$0xff] %vm226, %v284
      %318 = vst.msk [vmem:[%s314 + $0x21] sm:$0xff] %vm226, %v285
      %319 = vst.msk [vmem:[%s314 + $0x31] sm:$0xff] %vm226, %v286
      %320 = vst.msk [vmem:[%s314 + $0x39] sm:$0xff] %vm226, %v287
      %321 = vst.msk [vmem:[%s314 + $0x49] sm:$0xff] %vm226, %v288
      %322 = vst.msk [vmem:[%s314 + $0x51] sm:$0xff] %vm226, %v289
      %323 = vst.msk [vmem:[%s314 + $0x61] sm:$0xff] %vm226, %v290
      %324 = vst.msk [vmem:[%s314 + $0x69] sm:$0xff] %vm226, %v291
      %325 = vst.msk [vmem:[%s314 + $0x79] sm:$0xff] %vm226, %v292
      %326 = vst.msk [vmem:[%s314 + $0x81] sm:$0xff] %vm226, %v293
      %327 = vst.msk [vmem:[%s314 + $0x91] sm:$0xff] %vm226, %v294
      %328 = vst.msk [vmem:[%s314 + $0x99] sm:$0xff] %vm226, %v295
      %329 = vst.msk [vmem:[%s314 + $0xa9] sm:$0xff] %vm226, %v296
      %330 = vst.msk [vmem:[%s314 + $0xb1] sm:$0xff] %vm226, %v297
      %331 = vst.msk [vmem:[%s314 + $0xc1] sm:$0xff] %vm226, %v298
      %332 = vst.msk [vmem:[%s314 + $0xc9] sm:$0xff] %vm226, %v299
      %333 = vst.msk [vmem:[%s314 + $0xd9] sm:$0xff] %vm226, %v300
      %334 = vst.msk [vmem:[%s314 + $0xe1] sm:$0xff] %vm226, %v301
      %335 = vst.msk [vmem:[%s314 + $0xf1] sm:$0xff] %vm226, %v302
      %336 = vst.msk [vmem:[%s314 + $0xf9] sm:$0xff] %vm226, %v303
      %337 = vst.msk [vmem:[%s314 + $0x109] sm:$0xff] %vm226, %v304
      %338 = vst.msk [vmem:[%s314 + $0x111] sm:$0xff] %vm226, %v305
      %339 = vst.msk [vmem:[%s314 + $0x121] sm:$0xff] %vm226, %v306
      %340 = vst.msk [vmem:[%s314 + $0x129] sm:$0xff] %vm226, %v307
      %341 = vst.msk [vmem:[%s314 + $0x139] sm:$0xff] %vm226, %v308
      %342 = vst.msk [vmem:[%s314 + $0x141] sm:$0xff] %vm226, %v309
      %343 = vst.msk [vmem:[%s314 + $0x151] sm:$0xff] %vm226, %v310
      %344 = vst.msk [vmem:[%s314 + $0x159] sm:$0xff] %vm226, %v311
      %345 = vst.msk [vmem:[%s314 + $0x169] sm:$0xff] %vm226, %v312
      %346 = vst.msk [vmem:[%s314 + $0x171] sm:$0xff] %vm226, %v313
      %v347 = vld [vmem:[#allocation2] sm:$0xff]
      %v348 = vld [vmem:[#allocation2 + $0x8] sm:$0xff]
      %v349 = vld [vmem:[#allocation2 + $0x18] sm:$0xff]
      %v350 = vld [vmem:[#allocation2 + $0x20] sm:$0xff]
      %v351 = vld [vmem:[#allocation2 + $0x30] sm:$0xff]
      %v352 = vld [vmem:[#allocation2 + $0x38] sm:$0xff]
      %v353 = vld [vmem:[#allocation2 + $0x48] sm:$0xff]
      %v354 = vld [vmem:[#allocation2 + $0x50] sm:$0xff]
      %v355 = vld [vmem:[#allocation2 + $0x60] sm:$0xff]
      %v356 = vld [vmem:[#allocation2 + $0x68] sm:$0xff]
      %v357 = vld [vmem:[#allocation2 + $0x78] sm:$0xff]
      %v358 = vld [vmem:[#allocation2 + $0x80] sm:$0xff]
      %v359 = vld [vmem:[#allocation2 + $0x90] sm:$0xff]
      %v360 = vld [vmem:[#allocation2 + $0x98] sm:$0xff]
      %v361 = vld [vmem:[#allocation2 + $0xa8] sm:$0xff]
      %v362 = vld [vmem:[#allocation2 + $0xb0] sm:$0xff]
      %v363 = vld [vmem:[#allocation2 + $0xc0] sm:$0xff]
      %v364 = vld [vmem:[#allocation2 + $0xc8] sm:$0xff]
      %v365 = vld [vmem:[#allocation2 + $0xd8] sm:$0xff]
      %v366 = vld [vmem:[#allocation2 + $0xe0] sm:$0xff]
      %v367 = vld [vmem:[#allocation2 + $0xf0] sm:$0xff]
      %v368 = vld [vmem:[#allocation2 + $0xf8] sm:$0xff]
      %v369 = vld [vmem:[#allocation2 + $0x108] sm:$0xff]
      %v370 = vld [vmem:[#allocation2 + $0x110] sm:$0xff]
      %v371 = vld [vmem:[#allocation2 + $0x120] sm:$0xff]
      %v372 = vld [vmem:[#allocation2 + $0x128] sm:$0xff]
      %v373 = vld [vmem:[#allocation2 + $0x138] sm:$0xff]
      %v374 = vld [vmem:[#allocation2 + $0x140] sm:$0xff]
      %v375 = vld [vmem:[#allocation2 + $0x150] sm:$0xff]
      %v376 = vld [vmem:[#allocation2 + $0x158] sm:$0xff]
      %v377 = vld [vmem:[#allocation2 + $0x168] sm:$0xff]
      %v378 = vld [vmem:[#allocation2 + $0x170] sm:$0xff]
      %v379 = vld [vmem:[#allocation2 + $0x1] sm:$0xff]
      %v380 = vld [vmem:[#allocation2 + $0x9] sm:$0xff]
      %v381 = vld [vmem:[#allocation2 + $0x19] sm:$0xff]
      %v382 = vld [vmem:[#allocation2 + $0x21] sm:$0xff]
      %v383 = vld [vmem:[#allocation2 + $0x31] sm:$0xff]
      %v384 = vld [vmem:[#allocation2 + $0x39] sm:$0xff]
      %v385 = vld [vmem:[#allocation2 + $0x49] sm:$0xff]
      %v386 = vld [vmem:[#allocation2 + $0x51] sm:$0xff]
      %v387 = vld [vmem:[#allocation2 + $0x61] sm:$0xff]
      %v388 = vld [vmem:[#allocation2 + $0x69] sm:$0xff]
      %v389 = vld [vmem:[#allocation2 + $0x79] sm:$0xff]
      %v390 = vld [vmem:[#allocation2 + $0x81] sm:$0xff]
      %v391 = vld [vmem:[#allocation2 + $0x91] sm:$0xff]
      %v392 = vld [vmem:[#allocation2 + $0x99] sm:$0xff]
      %v393 = vld [vmem:[#allocation2 + $0xa9] sm:$0xff]
      %v394 = vld [vmem:[#allocation2 + $0xb1] sm:$0xff]
      %v395 = vld [vmem:[#allocation2 + $0xc1] sm:$0xff]
      %v396 = vld [vmem:[#allocation2 + $0xc9] sm:$0xff]
      %v397 = vld [vmem:[#allocation2 + $0xd9] sm:$0xff]
      %v398 = vld [vmem:[#allocation2 + $0xe1] sm:$0xff]
      %v399 = vld [vmem:[#allocation2 + $0xf1] sm:$0xff]
      %v400 = vld [vmem:[#allocation2 + $0xf9] sm:$0xff]
      %v401 = vld [vmem:[#allocation2 + $0x109] sm:$0xff]
      %v402 = vld [vmem:[#allocation2 + $0x111] sm:$0xff]
      %v403 = vld [vmem:[#allocation2 + $0x121] sm:$0xff]
      %v404 = vld [vmem:[#allocation2 + $0x129] sm:$0xff]
      %v405 = vld [vmem:[#allocation2 + $0x139] sm:$0xff]
      %v406 = vld [vmem:[#allocation2 + $0x141] sm:$0xff]
      %v407 = vld [vmem:[#allocation2 + $0x151] sm:$0xff]
      %v408 = vld [vmem:[#allocation2 + $0x159] sm:$0xff]
      %v409 = vld [vmem:[#allocation2 + $0x169] sm:$0xff]
      %v410 = vld [vmem:[#allocation2 + $0x171] sm:$0xff]
      %v411 = vld [vmem:[#allocation2 + $0x2] sm:$0xff]
      %v412 = vld [vmem:[#allocation2 + $0xa] sm:$0xff]
      %v413 = vld [vmem:[#allocation2 + $0x1a] sm:$0xff]
      %v414 = vld [vmem:[#allocation2 + $0x22] sm:$0xff]
      %v415 = vld [vmem:[#allocation2 + $0x32] sm:$0xff]
      %v416 = vld [vmem:[#allocation2 + $0x3a] sm:$0xff]
      %v417 = vld [vmem:[#allocation2 + $0x4a] sm:$0xff]
      %v418 = vld [vmem:[#allocation2 + $0x52] sm:$0xff]
      %v419 = vld [vmem:[#allocation2 + $0x62] sm:$0xff]
      %v420 = vld [vmem:[#allocation2 + $0x6a] sm:$0xff]
      %v421 = vld [vmem:[#allocation2 + $0x7a] sm:$0xff]
      %v422 = vld [vmem:[#allocation2 + $0x82] sm:$0xff]
      %v423 = vld [vmem:[#allocation2 + $0x92] sm:$0xff]
      %v424 = vld [vmem:[#allocation2 + $0x9a] sm:$0xff]
      %v425 = vld [vmem:[#allocation2 + $0xaa] sm:$0xff]
      %v426 = vld [vmem:[#allocation2 + $0xb2] sm:$0xff]
      %v427 = vld [vmem:[#allocation2 + $0xc2] sm:$0xff]
      %v428 = vld [vmem:[#allocation2 + $0xca] sm:$0xff]
      %v429 = vld [vmem:[#allocation2 + $0xda] sm:$0xff]
      %v430 = vld [vmem:[#allocation2 + $0xe2] sm:$0xff]
      %v431 = vld [vmem:[#allocation2 + $0xf2] sm:$0xff]
      %v432 = vld [vmem:[#allocation2 + $0xfa] sm:$0xff]
      %v433 = vld [vmem:[#allocation2 + $0x10a] sm:$0xff]
      %v434 = vld [vmem:[#allocation2 + $0x112] sm:$0xff]
      %v435 = vld [vmem:[#allocation2 + $0x122] sm:$0xff]
      %v436 = vld [vmem:[#allocation2 + $0x12a] sm:$0xff]
      %v437 = vld [vmem:[#allocation2 + $0x13a] sm:$0xff]
      %v438 = vld [vmem:[#allocation2 + $0x142] sm:$0xff]
      %v439 = vld [vmem:[#allocation2 + $0x152] sm:$0xff]
      %v440 = vld [vmem:[#allocation2 + $0x15a] sm:$0xff]
      %v441 = vld [vmem:[#allocation2 + $0x16a] sm:$0xff]
      %v442 = vld [vmem:[#allocation2 + $0x172] sm:$0xff]
      %v443 = vld [vmem:[%s314] sm:$0xff]
      %v444 = vld [vmem:[%s314 + $0x8] sm:$0xff]
      %v445 = vld [vmem:[%s314 + $0x18] sm:$0xff]
      %v446 = vld [vmem:[%s314 + $0x20] sm:$0xff]
      %v447 = vld [vmem:[%s314 + $0x30] sm:$0xff]
      %v448 = vld [vmem:[%s314 + $0x38] sm:$0xff]
      %v449 = vld [vmem:[%s314 + $0x48] sm:$0xff]
      %v450 = vld [vmem:[%s314 + $0x50] sm:$0xff]
      %v451 = vld [vmem:[%s314 + $0x60] sm:$0xff]
      %v452 = vld [vmem:[%s314 + $0x68] sm:$0xff]
      %v453 = vld [vmem:[%s314 + $0x78] sm:$0xff]
      %v454 = vld [vmem:[%s314 + $0x80] sm:$0xff]
      %v455 = vld [vmem:[%s314 + $0x90] sm:$0xff]
      %v456 = vld [vmem:[%s314 + $0x98] sm:$0xff]
      %v457 = vld [vmem:[%s314 + $0xa8] sm:$0xff]
      %v458 = vld [vmem:[%s314 + $0xb0] sm:$0xff]
      %v459 = vld [vmem:[%s314 + $0xc0] sm:$0xff]
      %v460 = vld [vmem:[%s314 + $0xc8] sm:$0xff]
      %v461 = vld [vmem:[%s314 + $0xd8] sm:$0xff]
      %v462 = vld [vmem:[%s314 + $0xe0] sm:$0xff]
      %v463 = vld [vmem:[%s314 + $0xf0] sm:$0xff]
      %v464 = vld [vmem:[%s314 + $0xf8] sm:$0xff]
      %v465 = vld [vmem:[%s314 + $0x108] sm:$0xff]
      %v466 = vld [vmem:[%s314 + $0x110] sm:$0xff]
      %v467 = vld [vmem:[%s314 + $0x120] sm:$0xff]
      %v468 = vld [vmem:[%s314 + $0x128] sm:$0xff]
      %v469 = vld [vmem:[%s314 + $0x138] sm:$0xff]
      %v470 = vld [vmem:[%s314 + $0x140] sm:$0xff]
      %v471 = vld [vmem:[%s314 + $0x150] sm:$0xff]
      %v472 = vld [vmem:[%s314 + $0x158] sm:$0xff]
      %v473 = vld [vmem:[%s314 + $0x168] sm:$0xff]
      %v474 = vld [vmem:[%s314 + $0x170] sm:$0xff]
      %v475 = vld [vmem:[%s314 + $0x1] sm:$0xff]
      %v476 = vld [vmem:[%s314 + $0x9] sm:$0xff]
      %v477 = vld [vmem:[%s314 + $0x19] sm:$0xff]
      %v478 = vld [vmem:[%s314 + $0x21] sm:$0xff]
      %v479 = vld [vmem:[%s314 + $0x31] sm:$0xff]
      %v480 = vld [vmem:[%s314 + $0x39] sm:$0xff]
      %v481 = vld [vmem:[%s314 + $0x49] sm:$0xff]
      %v482 = vld [vmem:[%s314 + $0x51] sm:$0xff]
      %v483 = vld [vmem:[%s314 + $0x61] sm:$0xff]
      %v484 = vld [vmem:[%s314 + $0x69] sm:$0xff]
      %v485 = vld [vmem:[%s314 + $0x79] sm:$0xff]
      %v486 = vld [vmem:[%s314 + $0x81] sm:$0xff]
      %v487 = vld [vmem:[%s314 + $0x91] sm:$0xff]
      %v488 = vld [vmem:[%s314 + $0x99] sm:$0xff]
      %v489 = vld [vmem:[%s314 + $0xa9] sm:$0xff]
      %v490 = vld [vmem:[%s314 + $0xb1] sm:$0xff]
      %v491 = vld [vmem:[%s314 + $0xc1] sm:$0xff]
      %v492 = vld [vmem:[%s314 + $0xc9] sm:$0xff]
      %v493 = vld [vmem:[%s314 + $0xd9] sm:$0xff]
      %v494 = vld [vmem:[%s314 + $0xe1] sm:$0xff]
      %v495 = vld [vmem:[%s314 + $0xf1] sm:$0xff]
      %v496 = vld [vmem:[%s314 + $0xf9] sm:$0xff]
      %v497 = vld [vmem:[%s314 + $0x109] sm:$0xff]
      %v498 = vld [vmem:[%s314 + $0x111] sm:$0xff]
      %v499 = vld [vmem:[%s314 + $0x121] sm:$0xff]
      %v500 = vld [vmem:[%s314 + $0x129] sm:$0xff]
      %v501 = vld [vmem:[%s314 + $0x139] sm:$0xff]
      %v502 = vld [vmem:[%s314 + $0x141] sm:$0xff]
      %v503 = vld [vmem:[%s314 + $0x151] sm:$0xff]
      %v504 = vld [vmem:[%s314 + $0x159] sm:$0xff]
      %v505 = vld [vmem:[%s314 + $0x169] sm:$0xff]
      %v506 = vld [vmem:[%s314 + $0x171] sm:$0xff]
      %v507 = vld [vmem:[%s314 + $0x2] sm:$0xff]
      %v508 = vld [vmem:[%s314 + $0xa] sm:$0xff]
      %v509 = vld [vmem:[%s314 + $0x1a] sm:$0xff]
      %v510 = vld [vmem:[%s314 + $0x22] sm:$0xff]
      %v511 = vld [vmem:[%s314 + $0x32] sm:$0xff]
      %v512 = vld [vmem:[%s314 + $0x3a] sm:$0xff]
      %v513 = vld [vmem:[%s314 + $0x4a] sm:$0xff]
      %v514 = vld [vmem:[%s314 + $0x52] sm:$0xff]
      %v515 = vld [vmem:[%s314 + $0x62] sm:$0xff]
      %v516 = vld [vmem:[%s314 + $0x6a] sm:$0xff]
      %v517 = vld [vmem:[%s314 + $0x7a] sm:$0xff]
      %v518 = vld [vmem:[%s314 + $0x82] sm:$0xff]
      %v519 = vld [vmem:[%s314 + $0x92] sm:$0xff]
      %v520 = vld [vmem:[%s314 + $0x9a] sm:$0xff]
      %v521 = vld [vmem:[%s314 + $0xaa] sm:$0xff]
      %v522 = vld [vmem:[%s314 + $0xb2] sm:$0xff]
      %v523 = vld [vmem:[%s314 + $0xc2] sm:$0xff]
      %v524 = vld [vmem:[%s314 + $0xca] sm:$0xff]
      %v525 = vld [vmem:[%s314 + $0xda] sm:$0xff]
      %v526 = vld [vmem:[%s314 + $0xe2] sm:$0xff]
      %v527 = vld [vmem:[%s314 + $0xf2] sm:$0xff]
      %v528 = vld [vmem:[%s314 + $0xfa] sm:$0xff]
      %v529 = vld [vmem:[%s314 + $0x10a] sm:$0xff]
      %v530 = vld [vmem:[%s314 + $0x112] sm:$0xff]
      %v531 = vld [vmem:[%s314 + $0x122] sm:$0xff]
      %v532 = vld [vmem:[%s314 + $0x12a] sm:$0xff]
      %v533 = vld [vmem:[%s314 + $0x13a] sm:$0xff]
      %v534 = vld [vmem:[%s314 + $0x142] sm:$0xff]
      %v535 = vld [vmem:[%s314 + $0x152] sm:$0xff]
      %v536 = vld [vmem:[%s314 + $0x15a] sm:$0xff]
      %v537 = vld [vmem:[%s314 + $0x16a] sm:$0xff]
      %v538 = vld [vmem:[%s314 + $0x172] sm:$0xff]
      %s539 = scalar_lea.vmem [#allocation2], 48
      %v540 = vld [vmem:[%s539] sm:$0xff]
      %v541 = vld [vmem:[%s539 + $0x8] sm:$0xff]
      %v542 = vld [vmem:[%s539 + $0x18] sm:$0xff]
      %v543 = vld [vmem:[%s539 + $0x20] sm:$0xff]
      %v544 = vld [vmem:[%s539 + $0x30] sm:$0xff]
      %v545 = vld [vmem:[%s539 + $0x38] sm:$0xff]
      %v546 = vld [vmem:[%s539 + $0x48] sm:$0xff]
      %v547 = vld [vmem:[%s539 + $0x50] sm:$0xff]
      %v548 = vld [vmem:[%s539 + $0x60] sm:$0xff]
      %v549 = vld [vmem:[%s539 + $0x68] sm:$0xff]
      %v550 = vld [vmem:[%s539 + $0x78] sm:$0xff]
      %v551 = vld [vmem:[%s539 + $0x80] sm:$0xff]
      %v552 = vld [vmem:[%s539 + $0x90] sm:$0xff]
      %v553 = vld [vmem:[%s539 + $0x98] sm:$0xff]
      %v554 = vld [vmem:[%s539 + $0xa8] sm:$0xff]
      %v555 = vld [vmem:[%s539 + $0xb0] sm:$0xff]
      %v556 = vld [vmem:[%s539 + $0xc0] sm:$0xff]
      %v557 = vld [vmem:[%s539 + $0xc8] sm:$0xff]
      %v558 = vld [vmem:[%s539 + $0xd8] sm:$0xff]
      %v559 = vld [vmem:[%s539 + $0xe0] sm:$0xff]
      %v560 = vld [vmem:[%s539 + $0xf0] sm:$0xff]
      %v561 = vld [vmem:[%s539 + $0xf8] sm:$0xff]
      %v562 = vld [vmem:[%s539 + $0x108] sm:$0xff]
      %v563 = vld [vmem:[%s539 + $0x110] sm:$0xff]
      %v564 = vld [vmem:[%s539 + $0x120] sm:$0xff]
      %v565 = vld [vmem:[%s539 + $0x128] sm:$0xff]
      %v566 = vld [vmem:[%s539 + $0x138] sm:$0xff]
      %v567 = vld [vmem:[%s539 + $0x140] sm:$0xff]
      %v568 = vld [vmem:[%s539 + $0x150] sm:$0xff]
      %v569 = vld [vmem:[%s539 + $0x158] sm:$0xff]
      %v570 = vld [vmem:[%s539 + $0x168] sm:$0xff]
      %v571 = vld [vmem:[%s539 + $0x170] sm:$0xff]
      %v572 = vld [vmem:[%s539 + $0x1] sm:$0xff]
      %v573 = vld [vmem:[%s539 + $0x9] sm:$0xff]
      %v574 = vld [vmem:[%s539 + $0x19] sm:$0xff]
      %v575 = vld [vmem:[%s539 + $0x21] sm:$0xff]
      %v576 = vld [vmem:[%s539 + $0x31] sm:$0xff]
      %v577 = vld [vmem:[%s539 + $0x39] sm:$0xff]
      %v578 = vld [vmem:[%s539 + $0x49] sm:$0xff]
      %v579 = vld [vmem:[%s539 + $0x51] sm:$0xff]
      %v580 = vld [vmem:[%s539 + $0x61] sm:$0xff]
      %v581 = vld [vmem:[%s539 + $0x69] sm:$0xff]
      %v582 = vld [vmem:[%s539 + $0x79] sm:$0xff]
      %v583 = vld [vmem:[%s539 + $0x81] sm:$0xff]
      %v584 = vld [vmem:[%s539 + $0x91] sm:$0xff]
      %v585 = vld [vmem:[%s539 + $0x99] sm:$0xff]
      %v586 = vld [vmem:[%s539 + $0xa9] sm:$0xff]
      %v587 = vld [vmem:[%s539 + $0xb1] sm:$0xff]
      %v588 = vld [vmem:[%s539 + $0xc1] sm:$0xff]
      %v589 = vld [vmem:[%s539 + $0xc9] sm:$0xff]
      %v590 = vld [vmem:[%s539 + $0xd9] sm:$0xff]
      %v591 = vld [vmem:[%s539 + $0xe1] sm:$0xff]
      %v592 = vld [vmem:[%s539 + $0xf1] sm:$0xff]
      %v593 = vld [vmem:[%s539 + $0xf9] sm:$0xff]
      %v594 = vld [vmem:[%s539 + $0x109] sm:$0xff]
      %v595 = vld [vmem:[%s539 + $0x111] sm:$0xff]
      %v596 = vld [vmem:[%s539 + $0x121] sm:$0xff]
      %v597 = vld [vmem:[%s539 + $0x129] sm:$0xff]
      %v598 = vld [vmem:[%s539 + $0x139] sm:$0xff]
      %v599 = vld [vmem:[%s539 + $0x141] sm:$0xff]
      %v600 = vld [vmem:[%s539 + $0x151] sm:$0xff]
      %v601 = vld [vmem:[%s539 + $0x159] sm:$0xff]
      %v602 = vld [vmem:[%s539 + $0x169] sm:$0xff]
      %v603 = vld [vmem:[%s539 + $0x171] sm:$0xff]
      %v604 = vld [vmem:[%s539 + $0x2] sm:$0xff]
      %v605 = vld [vmem:[%s539 + $0xa] sm:$0xff]
      %v606 = vld [vmem:[%s539 + $0x1a] sm:$0xff]
      %v607 = vld [vmem:[%s539 + $0x22] sm:$0xff]
      %v608 = vld [vmem:[%s539 + $0x32] sm:$0xff]
      %v609 = vld [vmem:[%s539 + $0x3a] sm:$0xff]
      %v610 = vld [vmem:[%s539 + $0x4a] sm:$0xff]
      %v611 = vld [vmem:[%s539 + $0x52] sm:$0xff]
      %v612 = vld [vmem:[%s539 + $0x62] sm:$0xff]
      %v613 = vld [vmem:[%s539 + $0x6a] sm:$0xff]
      %v614 = vld [vmem:[%s539 + $0x7a] sm:$0xff]
      %v615 = vld [vmem:[%s539 + $0x82] sm:$0xff]
      %v616 = vld [vmem:[%s539 + $0x92] sm:$0xff]
      %v617 = vld [vmem:[%s539 + $0x9a] sm:$0xff]
      %v618 = vld [vmem:[%s539 + $0xaa] sm:$0xff]
      %v619 = vld [vmem:[%s539 + $0xb2] sm:$0xff]
      %v620 = vld [vmem:[%s539 + $0xc2] sm:$0xff]
      %v621 = vld [vmem:[%s539 + $0xca] sm:$0xff]
      %v622 = vld [vmem:[%s539 + $0xda] sm:$0xff]
      %v623 = vld [vmem:[%s539 + $0xe2] sm:$0xff]
      %v624 = vld [vmem:[%s539 + $0xf2] sm:$0xff]
      %v625 = vld [vmem:[%s539 + $0xfa] sm:$0xff]
      %v626 = vld [vmem:[%s539 + $0x10a] sm:$0xff]
      %v627 = vld [vmem:[%s539 + $0x112] sm:$0xff]
      %v628 = vld [vmem:[%s539 + $0x122] sm:$0xff]
      %v629 = vld [vmem:[%s539 + $0x12a] sm:$0xff]
      %v630 = vld [vmem:[%s539 + $0x13a] sm:$0xff]
      %v631 = vld [vmem:[%s539 + $0x142] sm:$0xff]
      %v632 = vld [vmem:[%s539 + $0x152] sm:$0xff]
      %v633 = vld [vmem:[%s539 + $0x15a] sm:$0xff]
      %v634 = vld [vmem:[%s539 + $0x16a] sm:$0xff]
      %v635 = vld [vmem:[%s539 + $0x172] sm:$0xff]
      %668 = vrot.lane.b32.xlu0 %v379, 4
      %v669 = vpop.permute.xlu0 %668
      %670 = vrot.lane.b32.xlu0 %v380, 4
      %v671 = vpop.permute.xlu0 %670
      %672 = vrot.lane.b32.xlu0 %v381, 4
      %v673 = vpop.permute.xlu0 %672
      %674 = vrot.lane.b32.xlu0 %v382, 4
      %v675 = vpop.permute.xlu0 %674
      %676 = vrot.lane.b32.xlu0 %v383, 4
      %v677 = vpop.permute.xlu0 %676
      %678 = vrot.lane.b32.xlu0 %v384, 4
      %v679 = vpop.permute.xlu0 %678
      %680 = vrot.lane.b32.xlu0 %v385, 4
      %v681 = vpop.permute.xlu0 %680
      %682 = vrot.lane.b32.xlu0 %v386, 4
      %v683 = vpop.permute.xlu0 %682
      %684 = vrot.lane.b32.xlu0 %v387, 4
      %v685 = vpop.permute.xlu0 %684
      %686 = vrot.lane.b32.xlu0 %v388, 4
      %v687 = vpop.permute.xlu0 %686
      %688 = vrot.lane.b32.xlu0 %v389, 4
      %v689 = vpop.permute.xlu0 %688
      %690 = vrot.lane.b32.xlu0 %v390, 4
      %v691 = vpop.permute.xlu0 %690
      %692 = vrot.lane.b32.xlu0 %v391, 4
      %v693 = vpop.permute.xlu0 %692
      %694 = vrot.lane.b32.xlu0 %v392, 4
      %v695 = vpop.permute.xlu0 %694
      %696 = vrot.lane.b32.xlu0 %v393, 4
      %v697 = vpop.permute.xlu0 %696
      %698 = vrot.lane.b32.xlu0 %v394, 4
      %v699 = vpop.permute.xlu0 %698
      %700 = vrot.lane.b32.xlu0 %v395, 4
      %v701 = vpop.permute.xlu0 %700
      %702 = vrot.lane.b32.xlu0 %v396, 4
      %v703 = vpop.permute.xlu0 %702
      %704 = vrot.lane.b32.xlu0 %v397, 4
      %v705 = vpop.permute.xlu0 %704
      %706 = vrot.lane.b32.xlu0 %v398, 4
      %v707 = vpop.permute.xlu0 %706
      %708 = vrot.lane.b32.xlu0 %v399, 4
      %v709 = vpop.permute.xlu0 %708
      %710 = vrot.lane.b32.xlu0 %v400, 4
      %v711 = vpop.permute.xlu0 %710
      %712 = vrot.lane.b32.xlu0 %v401, 4
      %v713 = vpop.permute.xlu0 %712
      %714 = vrot.lane.b32.xlu0 %v402, 4
      %v715 = vpop.permute.xlu0 %714
      %716 = vrot.lane.b32.xlu0 %v403, 4
      %v717 = vpop.permute.xlu0 %716
      %718 = vrot.lane.b32.xlu0 %v404, 4
      %v719 = vpop.permute.xlu0 %718
      %720 = vrot.lane.b32.xlu0 %v405, 4
      %v721 = vpop.permute.xlu0 %720
      %722 = vrot.lane.b32.xlu0 %v406, 4
      %v723 = vpop.permute.xlu0 %722
      %724 = vrot.lane.b32.xlu0 %v407, 4
      %v725 = vpop.permute.xlu0 %724
      %726 = vrot.lane.b32.xlu0 %v408, 4
      %v727 = vpop.permute.xlu0 %726
      %728 = vrot.lane.b32.xlu0 %v409, 4
      %v729 = vpop.permute.xlu0 %728
      %730 = vrot.lane.b32.xlu0 %v410, 4
      %v731 = vpop.permute.xlu0 %730
      %796 = vrot.lane.b32.xlu0 %v411, 8
      %v797 = vpop.permute.xlu0 %796
      %798 = vrot.lane.b32.xlu0 %v412, 8
      %v799 = vpop.permute.xlu0 %798
      %800 = vrot.lane.b32.xlu0 %v413, 8
      %v801 = vpop.permute.xlu0 %800
      %802 = vrot.lane.b32.xlu0 %v414, 8
      %v803 = vpop.permute.xlu0 %802
      %804 = vrot.lane.b32.xlu0 %v415, 8
      %v805 = vpop.permute.xlu0 %804
      %806 = vrot.lane.b32.xlu0 %v416, 8
      %v807 = vpop.permute.xlu0 %806
      %808 = vrot.lane.b32.xlu0 %v417, 8
      %v809 = vpop.permute.xlu0 %808
      %810 = vrot.lane.b32.xlu0 %v418, 8
      %v811 = vpop.permute.xlu0 %810
      %812 = vrot.lane.b32.xlu0 %v419, 8
      %v813 = vpop.permute.xlu0 %812
      %814 = vrot.lane.b32.xlu0 %v420, 8
      %v815 = vpop.permute.xlu0 %814
      %816 = vrot.lane.b32.xlu0 %v421, 8
      %v817 = vpop.permute.xlu0 %816
      %818 = vrot.lane.b32.xlu0 %v422, 8
      %v819 = vpop.permute.xlu0 %818
      %820 = vrot.lane.b32.xlu0 %v423, 8
      %v821 = vpop.permute.xlu0 %820
      %822 = vrot.lane.b32.xlu0 %v424, 8
      %v823 = vpop.permute.xlu0 %822
      %824 = vrot.lane.b32.xlu0 %v425, 8
      %v825 = vpop.permute.xlu0 %824
      %826 = vrot.lane.b32.xlu0 %v426, 8
      %v827 = vpop.permute.xlu0 %826
      %828 = vrot.lane.b32.xlu0 %v427, 8
      %v829 = vpop.permute.xlu0 %828
      %830 = vrot.lane.b32.xlu0 %v428, 8
      %v831 = vpop.permute.xlu0 %830
      %832 = vrot.lane.b32.xlu0 %v429, 8
      %v833 = vpop.permute.xlu0 %832
      %834 = vrot.lane.b32.xlu0 %v430, 8
      %v835 = vpop.permute.xlu0 %834
      %836 = vrot.lane.b32.xlu0 %v431, 8
      %v837 = vpop.permute.xlu0 %836
      %838 = vrot.lane.b32.xlu0 %v432, 8
      %v839 = vpop.permute.xlu0 %838
      %840 = vrot.lane.b32.xlu0 %v433, 8
      %v841 = vpop.permute.xlu0 %840
      %842 = vrot.lane.b32.xlu0 %v434, 8
      %v843 = vpop.permute.xlu0 %842
      %844 = vrot.lane.b32.xlu0 %v435, 8
      %v845 = vpop.permute.xlu0 %844
      %846 = vrot.lane.b32.xlu0 %v436, 8
      %v847 = vpop.permute.xlu0 %846
      %848 = vrot.lane.b32.xlu0 %v437, 8
      %v849 = vpop.permute.xlu0 %848
      %850 = vrot.lane.b32.xlu0 %v438, 8
      %v851 = vpop.permute.xlu0 %850
      %852 = vrot.lane.b32.xlu0 %v439, 8
      %v853 = vpop.permute.xlu0 %852
      %854 = vrot.lane.b32.xlu0 %v440, 8
      %v855 = vpop.permute.xlu0 %854
      %856 = vrot.lane.b32.xlu0 %v441, 8
      %v857 = vpop.permute.xlu0 %856
      %858 = vrot.lane.b32.xlu0 %v442, 8
      %v859 = vpop.permute.xlu0 %858
      %924 = vrot.lane.b32.xlu0 %v443, 12
      %v925 = vpop.permute.xlu0 %924
      %926 = vrot.lane.b32.xlu0 %v444, 12
      %v927 = vpop.permute.xlu0 %926
      %928 = vrot.lane.b32.xlu0 %v445, 12
      %v929 = vpop.permute.xlu0 %928
      %930 = vrot.lane.b32.xlu0 %v446, 12
      %v931 = vpop.permute.xlu0 %930
      %932 = vrot.lane.b32.xlu0 %v447, 12
      %v933 = vpop.permute.xlu0 %932
      %934 = vrot.lane.b32.xlu0 %v448, 12
      %v935 = vpop.permute.xlu0 %934
      %936 = vrot.lane.b32.xlu0 %v449, 12
      %v937 = vpop.permute.xlu0 %936
      %938 = vrot.lane.b32.xlu0 %v450, 12
      %v939 = vpop.permute.xlu0 %938
      %940 = vrot.lane.b32.xlu0 %v451, 12
      %v941 = vpop.permute.xlu0 %940
      %942 = vrot.lane.b32.xlu0 %v452, 12
      %v943 = vpop.permute.xlu0 %942
      %944 = vrot.lane.b32.xlu0 %v453, 12
      %v945 = vpop.permute.xlu0 %944
      %946 = vrot.lane.b32.xlu0 %v454, 12
      %v947 = vpop.permute.xlu0 %946
      %948 = vrot.lane.b32.xlu0 %v455, 12
      %v949 = vpop.permute.xlu0 %948
      %950 = vrot.lane.b32.xlu0 %v456, 12
      %v951 = vpop.permute.xlu0 %950
      %952 = vrot.lane.b32.xlu0 %v457, 12
      %v953 = vpop.permute.xlu0 %952
      %954 = vrot.lane.b32.xlu0 %v458, 12
      %v955 = vpop.permute.xlu0 %954
      %956 = vrot.lane.b32.xlu0 %v459, 12
      %v957 = vpop.permute.xlu0 %956
      %958 = vrot.lane.b32.xlu0 %v460, 12
      %v959 = vpop.permute.xlu0 %958
      %960 = vrot.lane.b32.xlu0 %v461, 12
      %v961 = vpop.permute.xlu0 %960
      %962 = vrot.lane.b32.xlu0 %v462, 12
      %v963 = vpop.permute.xlu0 %962
      %964 = vrot.lane.b32.xlu0 %v463, 12
      %v965 = vpop.permute.xlu0 %964
      %966 = vrot.lane.b32.xlu0 %v464, 12
      %v967 = vpop.permute.xlu0 %966
      %968 = vrot.lane.b32.xlu0 %v465, 12
      %v969 = vpop.permute.xlu0 %968
      %970 = vrot.lane.b32.xlu0 %v466, 12
      %v971 = vpop.permute.xlu0 %970
      %972 = vrot.lane.b32.xlu0 %v467, 12
      %v973 = vpop.permute.xlu0 %972
      %974 = vrot.lane.b32.xlu0 %v468, 12
      %v975 = vpop.permute.xlu0 %974
      %976 = vrot.lane.b32.xlu0 %v469, 12
      %v977 = vpop.permute.xlu0 %976
      %978 = vrot.lane.b32.xlu0 %v470, 12
      %v979 = vpop.permute.xlu0 %978
      %980 = vrot.lane.b32.xlu0 %v471, 12
      %v981 = vpop.permute.xlu0 %980
      %982 = vrot.lane.b32.xlu0 %v472, 12
      %v983 = vpop.permute.xlu0 %982
      %984 = vrot.lane.b32.xlu0 %v473, 12
      %v985 = vpop.permute.xlu0 %984
      %986 = vrot.lane.b32.xlu0 %v474, 12
      %v987 = vpop.permute.xlu0 %986
      %1052 = vrot.lane.b32.xlu0 %v475, 16
      %v1053 = vpop.permute.xlu0 %1052
      %1054 = vrot.lane.b32.xlu0 %v476, 16
      %v1055 = vpop.permute.xlu0 %1054
      %1056 = vrot.lane.b32.xlu0 %v477, 16
      %v1057 = vpop.permute.xlu0 %1056
      %1058 = vrot.lane.b32.xlu0 %v478, 16
      %v1059 = vpop.permute.xlu0 %1058
      %1060 = vrot.lane.b32.xlu0 %v479, 16
      %v1061 = vpop.permute.xlu0 %1060
      %1062 = vrot.lane.b32.xlu0 %v480, 16
      %v1063 = vpop.permute.xlu0 %1062
      %1064 = vrot.lane.b32.xlu0 %v481, 16
      %v1065 = vpop.permute.xlu0 %1064
      %1066 = vrot.lane.b32.xlu0 %v482, 16
      %v1067 = vpop.permute.xlu0 %1066
      %1068 = vrot.lane.b32.xlu0 %v483, 16
      %v1069 = vpop.permute.xlu0 %1068
      %1070 = vrot.lane.b32.xlu0 %v484, 16
      %v1071 = vpop.permute.xlu0 %1070
      %1072 = vrot.lane.b32.xlu0 %v485, 16
      %v1073 = vpop.permute.xlu0 %1072
      %1074 = vrot.lane.b32.xlu0 %v486, 16
      %v1075 = vpop.permute.xlu0 %1074
      %1076 = vrot.lane.b32.xlu0 %v487, 16
      %v1077 = vpop.permute.xlu0 %1076
      %1078 = vrot.lane.b32.xlu0 %v488, 16
      %v1079 = vpop.permute.xlu0 %1078
      %1080 = vrot.lane.b32.xlu0 %v489, 16
      %v1081 = vpop.permute.xlu0 %1080
      %1082 = vrot.lane.b32.xlu0 %v490, 16
      %v1083 = vpop.permute.xlu0 %1082
      %1084 = vrot.lane.b32.xlu0 %v491, 16
      %v1085 = vpop.permute.xlu0 %1084
      %1086 = vrot.lane.b32.xlu0 %v492, 16
      %v1087 = vpop.permute.xlu0 %1086
      %1088 = vrot.lane.b32.xlu0 %v493, 16
      %v1089 = vpop.permute.xlu0 %1088
      %1090 = vrot.lane.b32.xlu0 %v494, 16
      %v1091 = vpop.permute.xlu0 %1090
      %1092 = vrot.lane.b32.xlu0 %v495, 16
      %v1093 = vpop.permute.xlu0 %1092
      %1094 = vrot.lane.b32.xlu0 %v496, 16
      %v1095 = vpop.permute.xlu0 %1094
      %1096 = vrot.lane.b32.xlu0 %v497, 16
      %v1097 = vpop.permute.xlu0 %1096
      %1098 = vrot.lane.b32.xlu0 %v498, 16
      %v1099 = vpop.permute.xlu0 %1098
      %1100 = vrot.lane.b32.xlu0 %v499, 16
      %v1101 = vpop.permute.xlu0 %1100
      %1102 = vrot.lane.b32.xlu0 %v500, 16
      %v1103 = vpop.permute.xlu0 %1102
      %1104 = vrot.lane.b32.xlu0 %v501, 16
      %v1105 = vpop.permute.xlu0 %1104
      %1106 = vrot.lane.b32.xlu0 %v502, 16
      %v1107 = vpop.permute.xlu0 %1106
      %1108 = vrot.lane.b32.xlu0 %v503, 16
      %v1109 = vpop.permute.xlu0 %1108
      %1110 = vrot.lane.b32.xlu0 %v504, 16
      %v1111 = vpop.permute.xlu0 %1110
      %1112 = vrot.lane.b32.xlu0 %v505, 16
      %v1113 = vpop.permute.xlu0 %1112
      %1114 = vrot.lane.b32.xlu0 %v506, 16
      %v1115 = vpop.permute.xlu0 %1114
      %1180 = vrot.lane.b32.xlu0 %v507, 20
      %v1181 = vpop.permute.xlu0 %1180
      %1182 = vrot.lane.b32.xlu0 %v508, 20
      %v1183 = vpop.permute.xlu0 %1182
      %1184 = vrot.lane.b32.xlu0 %v509, 20
      %v1185 = vpop.permute.xlu0 %1184
      %1186 = vrot.lane.b32.xlu0 %v510, 20
      %v1187 = vpop.permute.xlu0 %1186
      %1188 = vrot.lane.b32.xlu0 %v511, 20
      %v1189 = vpop.permute.xlu0 %1188
      %1190 = vrot.lane.b32.xlu0 %v512, 20
      %v1191 = vpop.permute.xlu0 %1190
      %1192 = vrot.lane.b32.xlu0 %v513, 20
      %v1193 = vpop.permute.xlu0 %1192
      %1194 = vrot.lane.b32.xlu0 %v514, 20
      %v1195 = vpop.permute.xlu0 %1194
      %1196 = vrot.lane.b32.xlu0 %v515, 20
      %v1197 = vpop.permute.xlu0 %1196
      %1198 = vrot.lane.b32.xlu0 %v516, 20
      %v1199 = vpop.permute.xlu0 %1198
      %1200 = vrot.lane.b32.xlu0 %v517, 20
      %v1201 = vpop.permute.xlu0 %1200
      %1202 = vrot.lane.b32.xlu0 %v518, 20
      %v1203 = vpop.permute.xlu0 %1202
      %1204 = vrot.lane.b32.xlu0 %v519, 20
      %v1205 = vpop.permute.xlu0 %1204
      %1206 = vrot.lane.b32.xlu0 %v520, 20
      %v1207 = vpop.permute.xlu0 %1206
      %1208 = vrot.lane.b32.xlu0 %v521, 20
      %v1209 = vpop.permute.xlu0 %1208
      %1210 = vrot.lane.b32.xlu0 %v522, 20
      %v1211 = vpop.permute.xlu0 %1210
      %1212 = vrot.lane.b32.xlu0 %v523, 20
      %v1213 = vpop.permute.xlu0 %1212
      %1214 = vrot.lane.b32.xlu0 %v524, 20
      %v1215 = vpop.permute.xlu0 %1214
      %1216 = vrot.lane.b32.xlu0 %v525, 20
      %v1217 = vpop.permute.xlu0 %1216
      %1218 = vrot.lane.b32.xlu0 %v526, 20
      %v1219 = vpop.permute.xlu0 %1218
      %1220 = vrot.lane.b32.xlu0 %v527, 20
      %v1221 = vpop.permute.xlu0 %1220
      %1222 = vrot.lane.b32.xlu0 %v528, 20
      %v1223 = vpop.permute.xlu0 %1222
      %1224 = vrot.lane.b32.xlu0 %v529, 20
      %v1225 = vpop.permute.xlu0 %1224
      %1226 = vrot.lane.b32.xlu0 %v530, 20
      %v1227 = vpop.permute.xlu0 %1226
      %1228 = vrot.lane.b32.xlu0 %v531, 20
      %v1229 = vpop.permute.xlu0 %1228
      %1230 = vrot.lane.b32.xlu0 %v532, 20
      %v1231 = vpop.permute.xlu0 %1230
      %1232 = vrot.lane.b32.xlu0 %v533, 20
      %v1233 = vpop.permute.xlu0 %1232
      %1234 = vrot.lane.b32.xlu0 %v534, 20
      %v1235 = vpop.permute.xlu0 %1234
      %1236 = vrot.lane.b32.xlu0 %v535, 20
      %v1237 = vpop.permute.xlu0 %1236
      %1238 = vrot.lane.b32.xlu0 %v536, 20
      %v1239 = vpop.permute.xlu0 %1238
      %1240 = vrot.lane.b32.xlu0 %v537, 20
      %v1241 = vpop.permute.xlu0 %1240
      %1242 = vrot.lane.b32.xlu0 %v538, 20
      %v1243 = vpop.permute.xlu0 %1242
      %1308 = vrot.lane.b32.xlu0 %v540, 24
      %v1309 = vpop.permute.xlu0 %1308
      %1310 = vrot.lane.b32.xlu0 %v541, 24
      %v1311 = vpop.permute.xlu0 %1310
      %1312 = vrot.lane.b32.xlu0 %v542, 24
      %v1313 = vpop.permute.xlu0 %1312
      %1314 = vrot.lane.b32.xlu0 %v543, 24
      %v1315 = vpop.permute.xlu0 %1314
      %1316 = vrot.lane.b32.xlu0 %v544, 24
      %v1317 = vpop.permute.xlu0 %1316
      %1318 = vrot.lane.b32.xlu0 %v545, 24
      %v1319 = vpop.permute.xlu0 %1318
      %1320 = vrot.lane.b32.xlu0 %v546, 24
      %v1321 = vpop.permute.xlu0 %1320
      %1322 = vrot.lane.b32.xlu0 %v547, 24
      %v1323 = vpop.permute.xlu0 %1322
      %1324 = vrot.lane.b32.xlu0 %v548, 24
      %v1325 = vpop.permute.xlu0 %1324
      %1326 = vrot.lane.b32.xlu0 %v549, 24
      %v1327 = vpop.permute.xlu0 %1326
      %1328 = vrot.lane.b32.xlu0 %v550, 24
      %v1329 = vpop.permute.xlu0 %1328
      %1330 = vrot.lane.b32.xlu0 %v551, 24
      %v1331 = vpop.permute.xlu0 %1330
      %1332 = vrot.lane.b32.xlu0 %v552, 24
      %v1333 = vpop.permute.xlu0 %1332
      %1334 = vrot.lane.b32.xlu0 %v553, 24
      %v1335 = vpop.permute.xlu0 %1334
      %1336 = vrot.lane.b32.xlu0 %v554, 24
      %v1337 = vpop.permute.xlu0 %1336
      %1338 = vrot.lane.b32.xlu0 %v555, 24
      %v1339 = vpop.permute.xlu0 %1338
      %1340 = vrot.lane.b32.xlu0 %v556, 24
      %v1341 = vpop.permute.xlu0 %1340
      %1342 = vrot.lane.b32.xlu0 %v557, 24
      %v1343 = vpop.permute.xlu0 %1342
      %1344 = vrot.lane.b32.xlu0 %v558, 24
      %v1345 = vpop.permute.xlu0 %1344
      %1346 = vrot.lane.b32.xlu0 %v559, 24
      %v1347 = vpop.permute.xlu0 %1346
      %1348 = vrot.lane.b32.xlu0 %v560, 24
      %v1349 = vpop.permute.xlu0 %1348
      %1350 = vrot.lane.b32.xlu0 %v561, 24
      %v1351 = vpop.permute.xlu0 %1350
      %1352 = vrot.lane.b32.xlu0 %v562, 24
      %v1353 = vpop.permute.xlu0 %1352
      %1354 = vrot.lane.b32.xlu0 %v563, 24
      %v1355 = vpop.permute.xlu0 %1354
      %1356 = vrot.lane.b32.xlu0 %v564, 24
      %v1357 = vpop.permute.xlu0 %1356
      %1358 = vrot.lane.b32.xlu0 %v565, 24
      %v1359 = vpop.permute.xlu0 %1358
      %1360 = vrot.lane.b32.xlu0 %v566, 24
      %v1361 = vpop.permute.xlu0 %1360
      %1362 = vrot.lane.b32.xlu0 %v567, 24
      %v1363 = vpop.permute.xlu0 %1362
      %1364 = vrot.lane.b32.xlu0 %v568, 24
      %v1365 = vpop.permute.xlu0 %1364
      %1366 = vrot.lane.b32.xlu0 %v569, 24
      %v1367 = vpop.permute.xlu0 %1366
      %1368 = vrot.lane.b32.xlu0 %v570, 24
      %v1369 = vpop.permute.xlu0 %1368
      %1370 = vrot.lane.b32.xlu0 %v571, 24
      %v1371 = vpop.permute.xlu0 %1370
      %1436 = vrot.lane.b32.xlu0 %v572, 28
      %v1437 = vpop.permute.xlu0 %1436
      %1438 = vrot.lane.b32.xlu0 %v573, 28
      %v1439 = vpop.permute.xlu0 %1438
      %1440 = vrot.lane.b32.xlu0 %v574, 28
      %v1441 = vpop.permute.xlu0 %1440
      %1442 = vrot.lane.b32.xlu0 %v575, 28
      %v1443 = vpop.permute.xlu0 %1442
      %1444 = vrot.lane.b32.xlu0 %v576, 28
      %v1445 = vpop.permute.xlu0 %1444
      %1446 = vrot.lane.b32.xlu0 %v577, 28
      %v1447 = vpop.permute.xlu0 %1446
      %1448 = vrot.lane.b32.xlu0 %v578, 28
      %v1449 = vpop.permute.xlu0 %1448
      %1450 = vrot.lane.b32.xlu0 %v579, 28
      %v1451 = vpop.permute.xlu0 %1450
      %1452 = vrot.lane.b32.xlu0 %v580, 28
      %v1453 = vpop.permute.xlu0 %1452
      %1454 = vrot.lane.b32.xlu0 %v581, 28
      %v1455 = vpop.permute.xlu0 %1454
      %1456 = vrot.lane.b32.xlu0 %v582, 28
      %v1457 = vpop.permute.xlu0 %1456
      %1458 = vrot.lane.b32.xlu0 %v583, 28
      %v1459 = vpop.permute.xlu0 %1458
      %1460 = vrot.lane.b32.xlu0 %v584, 28
      %v1461 = vpop.permute.xlu0 %1460
      %1462 = vrot.lane.b32.xlu0 %v585, 28
      %v1463 = vpop.permute.xlu0 %1462
      %1464 = vrot.lane.b32.xlu0 %v586, 28
      %v1465 = vpop.permute.xlu0 %1464
      %1466 = vrot.lane.b32.xlu0 %v587, 28
      %v1467 = vpop.permute.xlu0 %1466
      %1468 = vrot.lane.b32.xlu0 %v588, 28
      %v1469 = vpop.permute.xlu0 %1468
      %1470 = vrot.lane.b32.xlu0 %v589, 28
      %v1471 = vpop.permute.xlu0 %1470
      %1472 = vrot.lane.b32.xlu0 %v590, 28
      %v1473 = vpop.permute.xlu0 %1472
      %1474 = vrot.lane.b32.xlu0 %v591, 28
      %v1475 = vpop.permute.xlu0 %1474
      %1476 = vrot.lane.b32.xlu0 %v592, 28
      %v1477 = vpop.permute.xlu0 %1476
      %1478 = vrot.lane.b32.xlu0 %v593, 28
      %v1479 = vpop.permute.xlu0 %1478
      %1480 = vrot.lane.b32.xlu0 %v594, 28
      %v1481 = vpop.permute.xlu0 %1480
      %1482 = vrot.lane.b32.xlu0 %v595, 28
      %v1483 = vpop.permute.xlu0 %1482
      %1484 = vrot.lane.b32.xlu0 %v596, 28
      %v1485 = vpop.permute.xlu0 %1484
      %1486 = vrot.lane.b32.xlu0 %v597, 28
      %v1487 = vpop.permute.xlu0 %1486
      %1488 = vrot.lane.b32.xlu0 %v598, 28
      %v1489 = vpop.permute.xlu0 %1488
      %1490 = vrot.lane.b32.xlu0 %v599, 28
      %v1491 = vpop.permute.xlu0 %1490
      %1492 = vrot.lane.b32.xlu0 %v600, 28
      %v1493 = vpop.permute.xlu0 %1492
      %1494 = vrot.lane.b32.xlu0 %v601, 28
      %v1495 = vpop.permute.xlu0 %1494
      %1496 = vrot.lane.b32.xlu0 %v602, 28
      %v1497 = vpop.permute.xlu0 %1496
      %1498 = vrot.lane.b32.xlu0 %v603, 28
      %v1499 = vpop.permute.xlu0 %1498
      %1564 = vrot.lane.b32.xlu0 %v604, 32
      %v1565 = vpop.permute.xlu0 %1564
      %1566 = vrot.lane.b32.xlu0 %v605, 32
      %v1567 = vpop.permute.xlu0 %1566
      %1568 = vrot.lane.b32.xlu0 %v606, 32
      %v1569 = vpop.permute.xlu0 %1568
      %1570 = vrot.lane.b32.xlu0 %v607, 32
      %v1571 = vpop.permute.xlu0 %1570
      %1572 = vrot.lane.b32.xlu0 %v608, 32
      %v1573 = vpop.permute.xlu0 %1572
      %1574 = vrot.lane.b32.xlu0 %v609, 32
      %v1575 = vpop.permute.xlu0 %1574
      %1576 = vrot.lane.b32.xlu0 %v610, 32
      %v1577 = vpop.permute.xlu0 %1576
      %1578 = vrot.lane.b32.xlu0 %v611, 32
      %v1579 = vpop.permute.xlu0 %1578
      %1580 = vrot.lane.b32.xlu0 %v612, 32
      %v1581 = vpop.permute.xlu0 %1580
      %1582 = vrot.lane.b32.xlu0 %v613, 32
      %v1583 = vpop.permute.xlu0 %1582
      %1584 = vrot.lane.b32.xlu0 %v614, 32
      %v1585 = vpop.permute.xlu0 %1584
      %1586 = vrot.lane.b32.xlu0 %v615, 32
      %v1587 = vpop.permute.xlu0 %1586
      %1588 = vrot.lane.b32.xlu0 %v616, 32
      %v1589 = vpop.permute.xlu0 %1588
      %1590 = vrot.lane.b32.xlu0 %v617, 32
      %v1591 = vpop.permute.xlu0 %1590
      %1592 = vrot.lane.b32.xlu0 %v618, 32
      %v1593 = vpop.permute.xlu0 %1592
      %1594 = vrot.lane.b32.xlu0 %v619, 32
      %v1595 = vpop.permute.xlu0 %1594
      %1596 = vrot.lane.b32.xlu0 %v620, 32
      %v1597 = vpop.permute.xlu0 %1596
      %1598 = vrot.lane.b32.xlu0 %v621, 32
      %v1599 = vpop.permute.xlu0 %1598
      %1600 = vrot.lane.b32.xlu0 %v622, 32
      %v1601 = vpop.permute.xlu0 %1600
      %1602 = vrot.lane.b32.xlu0 %v623, 32
      %v1603 = vpop.permute.xlu0 %1602
      %1604 = vrot.lane.b32.xlu0 %v624, 32
      %v1605 = vpop.permute.xlu0 %1604
      %1606 = vrot.lane.b32.xlu0 %v625, 32
      %v1607 = vpop.permute.xlu0 %1606
      %1608 = vrot.lane.b32.xlu0 %v626, 32
      %v1609 = vpop.permute.xlu0 %1608
      %1610 = vrot.lane.b32.xlu0 %v627, 32
      %v1611 = vpop.permute.xlu0 %1610
      %1612 = vrot.lane.b32.xlu0 %v628, 32
      %v1613 = vpop.permute.xlu0 %1612
      %1614 = vrot.lane.b32.xlu0 %v629, 32
      %v1615 = vpop.permute.xlu0 %1614
      %1616 = vrot.lane.b32.xlu0 %v630, 32
      %v1617 = vpop.permute.xlu0 %1616
      %1618 = vrot.lane.b32.xlu0 %v631, 32
      %v1619 = vpop.permute.xlu0 %1618
      %1620 = vrot.lane.b32.xlu0 %v632, 32
      %v1621 = vpop.permute.xlu0 %1620
      %1622 = vrot.lane.b32.xlu0 %v633, 32
      %v1623 = vpop.permute.xlu0 %1622
      %1624 = vrot.lane.b32.xlu0 %v634, 32
      %v1625 = vpop.permute.xlu0 %1624
      %1626 = vrot.lane.b32.xlu0 %v635, 32
      %v1627 = vpop.permute.xlu0 %1626
      %v1660 = vsel %vm226, %v347, %v669
      %v1661 = vsel %vm226, %v348, %v671
      %v1662 = vsel %vm226, %v349, %v673
      %v1663 = vsel %vm226, %v350, %v675
      %v1664 = vsel %vm226, %v351, %v677
      %v1665 = vsel %vm226, %v352, %v679
      %v1666 = vsel %vm226, %v353, %v681
      %v1667 = vsel %vm226, %v354, %v683
      %v1668 = vsel %vm226, %v355, %v685
      %v1669 = vsel %vm226, %v356, %v687
      %v1670 = vsel %vm226, %v357, %v689
      %v1671 = vsel %vm226, %v358, %v691
      %v1672 = vsel %vm226, %v359, %v693
      %v1673 = vsel %vm226, %v360, %v695
      %v1674 = vsel %vm226, %v361, %v697
      %v1675 = vsel %vm226, %v362, %v699
      %v1676 = vsel %vm226, %v363, %v701
      %v1677 = vsel %vm226, %v364, %v703
      %v1678 = vsel %vm226, %v365, %v705
      %v1679 = vsel %vm226, %v366, %v707
      %v1680 = vsel %vm226, %v367, %v709
      %v1681 = vsel %vm226, %v368, %v711
      %v1682 = vsel %vm226, %v369, %v713
      %v1683 = vsel %vm226, %v370, %v715
      %v1684 = vsel %vm226, %v371, %v717
      %v1685 = vsel %vm226, %v372, %v719
      %v1686 = vsel %vm226, %v373, %v721
      %v1687 = vsel %vm226, %v374, %v723
      %v1688 = vsel %vm226, %v375, %v725
      %v1689 = vsel %vm226, %v376, %v727
      %v1690 = vsel %vm226, %v377, %v729
      %v1691 = vsel %vm226, %v378, %v731
      %vm1692 = vcmask 64512
      %v1693 = vsel %vm1692, %v1660, %v797
      %v1694 = vsel %vm1692, %v1661, %v799
      %v1695 = vsel %vm1692, %v1662, %v801
      %v1696 = vsel %vm1692, %v1663, %v803
      %v1697 = vsel %vm1692, %v1664, %v805
      %v1698 = vsel %vm1692, %v1665, %v807
      %v1699 = vsel %vm1692, %v1666, %v809
      %v1700 = vsel %vm1692, %v1667, %v811
      %v1701 = vsel %vm1692, %v1668, %v813
      %v1702 = vsel %vm1692, %v1669, %v815
      %v1703 = vsel %vm1692, %v1670, %v817
      %v1704 = vsel %vm1692, %v1671, %v819
      %v1705 = vsel %vm1692, %v1672, %v821
      %v1706 = vsel %vm1692, %v1673, %v823
      %v1707 = vsel %vm1692, %v1674, %v825
      %v1708 = vsel %vm1692, %v1675, %v827
      %v1709 = vsel %vm1692, %v1676, %v829
      %v1710 = vsel %vm1692, %v1677, %v831
      %v1711 = vsel %vm1692, %v1678, %v833
      %v1712 = vsel %vm1692, %v1679, %v835
      %v1713 = vsel %vm1692, %v1680, %v837
      %v1714 = vsel %vm1692, %v1681, %v839
      %v1715 = vsel %vm1692, %v1682, %v841
      %v1716 = vsel %vm1692, %v1683, %v843
      %v1717 = vsel %vm1692, %v1684, %v845
      %v1718 = vsel %vm1692, %v1685, %v847
      %v1719 = vsel %vm1692, %v1686, %v849
      %v1720 = vsel %vm1692, %v1687, %v851
      %v1721 = vsel %vm1692, %v1688, %v853
      %v1722 = vsel %vm1692, %v1689, %v855
      %v1723 = vsel %vm1692, %v1690, %v857
      %v1724 = vsel %vm1692, %v1691, %v859
      %vm1725 = vcmask 97280
      %v1726 = vsel %vm1725, %v1693, %v925
      %v1727 = vsel %vm1725, %v1694, %v927
      %v1728 = vsel %vm1725, %v1695, %v929
      %v1729 = vsel %vm1725, %v1696, %v931
      %v1730 = vsel %vm1725, %v1697, %v933
      %v1731 = vsel %vm1725, %v1698, %v935
      %v1732 = vsel %vm1725, %v1699, %v937
      %v1733 = vsel %vm1725, %v1700, %v939
      %v1734 = vsel %vm1725, %v1701, %v941
      %v1735 = vsel %vm1725, %v1702, %v943
      %v1736 = vsel %vm1725, %v1703, %v945
      %v1737 = vsel %vm1725, %v1704, %v947
      %v1738 = vsel %vm1725, %v1705, %v949
      %v1739 = vsel %vm1725, %v1706, %v951
      %v1740 = vsel %vm1725, %v1707, %v953
      %v1741 = vsel %vm1725, %v1708, %v955
      %v1742 = vsel %vm1725, %v1709, %v957
      %v1743 = vsel %vm1725, %v1710, %v959
      %v1744 = vsel %vm1725, %v1711, %v961
      %v1745 = vsel %vm1725, %v1712, %v963
      %v1746 = vsel %vm1725, %v1713, %v965
      %v1747 = vsel %vm1725, %v1714, %v967
      %v1748 = vsel %vm1725, %v1715, %v969
      %v1749 = vsel %vm1725, %v1716, %v971
      %v1750 = vsel %vm1725, %v1717, %v973
      %v1751 = vsel %vm1725, %v1718, %v975
      %v1752 = vsel %vm1725, %v1719, %v977
      %v1753 = vsel %vm1725, %v1720, %v979
      %v1754 = vsel %vm1725, %v1721, %v981
      %v1755 = vsel %vm1725, %v1722, %v983
      %v1756 = vsel %vm1725, %v1723, %v985
      %v1757 = vsel %vm1725, %v1724, %v987
      %vm1758 = vcmask 130048
      %v1759 = vsel %vm1758, %v1726, %v1053
      %v1760 = vsel %vm1758, %v1727, %v1055
      %v1761 = vsel %vm1758, %v1728, %v1057
      %v1762 = vsel %vm1758, %v1729, %v1059
      %v1763 = vsel %vm1758, %v1730, %v1061
      %v1764 = vsel %vm1758, %v1731, %v1063
      %v1765 = vsel %vm1758, %v1732, %v1065
      %v1766 = vsel %vm1758, %v1733, %v1067
      %v1767 = vsel %vm1758, %v1734, %v1069
      %v1768 = vsel %vm1758, %v1735, %v1071
      %v1769 = vsel %vm1758, %v1736, %v1073
      %v1770 = vsel %vm1758, %v1737, %v1075
      %v1771 = vsel %vm1758, %v1738, %v1077
      %v1772 = vsel %vm1758, %v1739, %v1079
      %v1773 = vsel %vm1758, %v1740, %v1081
      %v1774 = vsel %vm1758, %v1741, %v1083
      %v1775 = vsel %vm1758, %v1742, %v1085
      %v1776 = vsel %vm1758, %v1743, %v1087
      %v1777 = vsel %vm1758, %v1744, %v1089
      %v1778 = vsel %vm1758, %v1745, %v1091
      %v1779 = vsel %vm1758, %v1746, %v1093
      %v1780 = vsel %vm1758, %v1747, %v1095
      %v1781 = vsel %vm1758, %v1748, %v1097
      %v1782 = vsel %vm1758, %v1749, %v1099
      %v1783 = vsel %vm1758, %v1750, %v1101
      %v1784 = vsel %vm1758, %v1751, %v1103
      %v1785 = vsel %vm1758, %v1752, %v1105
      %v1786 = vsel %vm1758, %v1753, %v1107
      %v1787 = vsel %vm1758, %v1754, %v1109
      %v1788 = vsel %vm1758, %v1755, %v1111
      %v1789 = vsel %vm1758, %v1756, %v1113
      %v1790 = vsel %vm1758, %v1757, %v1115
      %vm1791 = vcmask 162816
      %v1792 = vsel %vm1791, %v1759, %v1181
      %v1793 = vsel %vm1791, %v1760, %v1183
      %v1794 = vsel %vm1791, %v1761, %v1185
      %v1795 = vsel %vm1791, %v1762, %v1187
      %v1796 = vsel %vm1791, %v1763, %v1189
      %v1797 = vsel %vm1791, %v1764, %v1191
      %v1798 = vsel %vm1791, %v1765, %v1193
      %v1799 = vsel %vm1791, %v1766, %v1195
      %v1800 = vsel %vm1791, %v1767, %v1197
      %v1801 = vsel %vm1791, %v1768, %v1199
      %v1802 = vsel %vm1791, %v1769, %v1201
      %v1803 = vsel %vm1791, %v1770, %v1203
      %v1804 = vsel %vm1791, %v1771, %v1205
      %v1805 = vsel %vm1791, %v1772, %v1207
      %v1806 = vsel %vm1791, %v1773, %v1209
      %v1807 = vsel %vm1791, %v1774, %v1211
      %v1808 = vsel %vm1791, %v1775, %v1213
      %v1809 = vsel %vm1791, %v1776, %v1215
      %v1810 = vsel %vm1791, %v1777, %v1217
      %v1811 = vsel %vm1791, %v1778, %v1219
      %v1812 = vsel %vm1791, %v1779, %v1221
      %v1813 = vsel %vm1791, %v1780, %v1223
      %v1814 = vsel %vm1791, %v1781, %v1225
      %v1815 = vsel %vm1791, %v1782, %v1227
      %v1816 = vsel %vm1791, %v1783, %v1229
      %v1817 = vsel %vm1791, %v1784, %v1231
      %v1818 = vsel %vm1791, %v1785, %v1233
      %v1819 = vsel %vm1791, %v1786, %v1235
      %v1820 = vsel %vm1791, %v1787, %v1237
      %v1821 = vsel %vm1791, %v1788, %v1239
      %v1822 = vsel %vm1791, %v1789, %v1241
      %v1823 = vsel %vm1791, %v1790, %v1243
      %vm1824 = vcmask 195584
      %v1825 = vsel %vm1824, %v1792, %v1309
      %v1826 = vsel %vm1824, %v1793, %v1311
      %v1827 = vsel %vm1824, %v1794, %v1313
      %v1828 = vsel %vm1824, %v1795, %v1315
      %v1829 = vsel %vm1824, %v1796, %v1317
      %v1830 = vsel %vm1824, %v1797, %v1319
      %v1831 = vsel %vm1824, %v1798, %v1321
      %v1832 = vsel %vm1824, %v1799, %v1323
      %v1833 = vsel %vm1824, %v1800, %v1325
      %v1834 = vsel %vm1824, %v1801, %v1327
      %v1835 = vsel %vm1824, %v1802, %v1329
      %v1836 = vsel %vm1824, %v1803, %v1331
      %v1837 = vsel %vm1824, %v1804, %v1333
      %v1838 = vsel %vm1824, %v1805, %v1335
      %v1839 = vsel %vm1824, %v1806, %v1337
      %v1840 = vsel %vm1824, %v1807, %v1339
      %v1841 = vsel %vm1824, %v1808, %v1341
      %v1842 = vsel %vm1824, %v1809, %v1343
      %v1843 = vsel %vm1824, %v1810, %v1345
      %v1844 = vsel %vm1824, %v1811, %v1347
      %v1845 = vsel %vm1824, %v1812, %v1349
      %v1846 = vsel %vm1824, %v1813, %v1351
      %v1847 = vsel %vm1824, %v1814, %v1353
      %v1848 = vsel %vm1824, %v1815, %v1355
      %v1849 = vsel %vm1824, %v1816, %v1357
      %v1850 = vsel %vm1824, %v1817, %v1359
      %v1851 = vsel %vm1824, %v1818, %v1361
      %v1852 = vsel %vm1824, %v1819, %v1363
      %v1853 = vsel %vm1824, %v1820, %v1365
      %v1854 = vsel %vm1824, %v1821, %v1367
      %v1855 = vsel %vm1824, %v1822, %v1369
      %v1856 = vsel %vm1824, %v1823, %v1371
      %vm1857 = vcmask 228352
      %v1858 = vsel %vm1857, %v1825, %v1437
      %v1859 = vsel %vm1857, %v1826, %v1439
      %v1860 = vsel %vm1857, %v1827, %v1441
      %v1861 = vsel %vm1857, %v1828, %v1443
      %v1862 = vsel %vm1857, %v1829, %v1445
      %v1863 = vsel %vm1857, %v1830, %v1447
      %v1864 = vsel %vm1857, %v1831, %v1449
      %v1865 = vsel %vm1857, %v1832, %v1451
      %v1866 = vsel %vm1857, %v1833, %v1453
      %v1867 = vsel %vm1857, %v1834, %v1455
      %v1868 = vsel %vm1857, %v1835, %v1457
      %v1869 = vsel %vm1857, %v1836, %v1459
      %v1870 = vsel %vm1857, %v1837, %v1461
      %v1871 = vsel %vm1857, %v1838, %v1463
      %v1872 = vsel %vm1857, %v1839, %v1465
      %v1873 = vsel %vm1857, %v1840, %v1467
      %v1874 = vsel %vm1857, %v1841, %v1469
      %v1875 = vsel %vm1857, %v1842, %v1471
      %v1876 = vsel %vm1857, %v1843, %v1473
      %v1877 = vsel %vm1857, %v1844, %v1475
      %v1878 = vsel %vm1857, %v1845, %v1477
      %v1879 = vsel %vm1857, %v1846, %v1479
      %v1880 = vsel %vm1857, %v1847, %v1481
      %v1881 = vsel %vm1857, %v1848, %v1483
      %v1882 = vsel %vm1857, %v1849, %v1485
      %v1883 = vsel %vm1857, %v1850, %v1487
      %v1884 = vsel %vm1857, %v1851, %v1489
      %v1885 = vsel %vm1857, %v1852, %v1491
      %v1886 = vsel %vm1857, %v1853, %v1493
      %v1887 = vsel %vm1857, %v1854, %v1495
      %v1888 = vsel %vm1857, %v1855, %v1497
      %v1889 = vsel %vm1857, %v1856, %v1499
      %vm1890 = vcmask 261120
      %v1891 = vsel %vm1890, %v1858, %v1565
      %v1892 = vsel %vm1890, %v1859, %v1567
      %v1893 = vsel %vm1890, %v1860, %v1569
      %v1894 = vsel %vm1890, %v1861, %v1571
      %v1895 = vsel %vm1890, %v1862, %v1573
      %v1896 = vsel %vm1890, %v1863, %v1575
      %v1897 = vsel %vm1890, %v1864, %v1577
      %v1898 = vsel %vm1890, %v1865, %v1579
      %v1899 = vsel %vm1890, %v1866, %v1581
      %v1900 = vsel %vm1890, %v1867, %v1583
      %v1901 = vsel %vm1890, %v1868, %v1585
      %v1902 = vsel %vm1890, %v1869, %v1587
      %v1903 = vsel %vm1890, %v1870, %v1589
      %v1904 = vsel %vm1890, %v1871, %v1591
      %v1905 = vsel %vm1890, %v1872, %v1593
      %v1906 = vsel %vm1890, %v1873, %v1595
      %v1907 = vsel %vm1890, %v1874, %v1597
      %v1908 = vsel %vm1890, %v1875, %v1599
      %v1909 = vsel %vm1890, %v1876, %v1601
      %v1910 = vsel %vm1890, %v1877, %v1603
      %v1911 = vsel %vm1890, %v1878, %v1605
      %v1912 = vsel %vm1890, %v1879, %v1607
      %v1913 = vsel %vm1890, %v1880, %v1609
      %v1914 = vsel %vm1890, %v1881, %v1611
      %v1915 = vsel %vm1890, %v1882, %v1613
      %v1916 = vsel %vm1890, %v1883, %v1615
      %v1917 = vsel %vm1890, %v1884, %v1617
      %v1918 = vsel %vm1890, %v1885, %v1619
      %v1919 = vsel %vm1890, %v1886, %v1621
      %v1920 = vsel %vm1890, %v1887, %v1623
      %v1921 = vsel %vm1890, %v1888, %v1625
      %v1922 = vsel %vm1890, %v1889, %v1627
      %v1923 = vpack.c.bf16 %v1892, %v1891
      %v1924 = vpack.c.bf16 %v1894, %v1893
      %v1925 = vpack.c.bf16 %v1896, %v1895
      %v1926 = vpack.c.bf16 %v1898, %v1897
      %v1927 = vpack.c.bf16 %v1900, %v1899
      %v1928 = vpack.c.bf16 %v1902, %v1901
      %v1929 = vpack.c.bf16 %v1904, %v1903
      %v1930 = vpack.c.bf16 %v1906, %v1905
      %v1931 = vpack.c.bf16 %v1908, %v1907
      %v1932 = vpack.c.bf16 %v1910, %v1909
      %v1933 = vpack.c.bf16 %v1912, %v1911
      %v1934 = vpack.c.bf16 %v1914, %v1913
      %v1935 = vpack.c.bf16 %v1916, %v1915
      %v1936 = vpack.c.bf16 %v1918, %v1917
      %v1937 = vpack.c.bf16 %v1920, %v1919
      %v1938 = vpack.c.bf16 %v1922, %v1921
      %v1939 = vld [vmem:[%s1] sm:$0xf]
      %v1940 = vld [vmem:[%s1 + $0x4] sm:$0xf]
      %v1941 = vld [vmem:[%s1 + $0x8] sm:$0xf]
      %v1942 = vld [vmem:[%s1 + $0xc] sm:$0xf]
      %v1943 = vld [vmem:[%s1 + $0x10] sm:$0x3]
      %v1944 = vld [vmem:[%s2] sm:$0x1]
      %v1946 = vlaneseq
      %v1947 = vshrl.u32 %v1946, 7
      %v1948 = vsub.s32 0, %v1947
      %v1949 = vrot.slane %v1944, %v1948
      %v1956 = vunpack.c.l.b16 %v1939
      %v1957 = vunpack.c.l.b16 %v1940
      %v1958 = vunpack.c.l.b16 %v1941
      %v1959 = vunpack.c.l.b16 %v1942
      %v1960 = vunpack.c.l.b16 %v1943
      %v1961 = vpack.c.b16 %v1957, %v1956
      %v1962 = vpack.c.b16 %v1959, %v1958
      %v1963 = vpack.c.b16 %v1960, %v1960
      %vm1966 = vcmask 293888
      %v1968 = vsel %vm1966, %v1923, 0
      %v1971 = vsel %vm1966, %v1924, 0
      %v1974 = vsel %vm1966, %v1925, 0
      %v1977 = vsel %vm1966, %v1926, 0
      %v1980 = vsel %vm1966, %v1927, 0
      %v1983 = vsel %vm1966, %v1928, 0
      %v1986 = vsel %vm1966, %v1929, 0
      %v1989 = vsel %vm1966, %v1930, 0
      %v1992 = vsel %vm1966, %v1931, 0
      %v1995 = vsel %vm1966, %v1932, 0
      %v1998 = vsel %vm1966, %v1933, 0
      %v2001 = vsel %vm1966, %v1934, 0
      %v2004 = vsel %vm1966, %v1935, 0
      %v2007 = vsel %vm1966, %v1936, 0
      %v2010 = vsel %vm1966, %v1937, 0
      %v2013 = vsel %vm1966, %v1938, 0
      %vm2015 = vcmask 1041408
      %v2017 = vsel %vm2015, %v1963, 0
      %2019 = vmatprep.subr.bf16.mxu0 0
      %2020 = vmatpush1.bf16.msra.mxu0 %v1961
      %2021 = vmatprep.subr.bf16.mxu0 0
      %2022 = vmatpush1.bf16.msra.mxu0 %v1962
      %2023 = vmatprep.subr.bf16.mxu0 0
      %2024 = vmatpush1.bf16.msra.mxu0 %v2017
      %2025 = vmatprep.subr.bf16.mxu0 0
      %2026 = vmatpush1.bf16.msra.mxu0 0
      %2027 = vmatprep.subr.bf16.mxu0 0
      %2028 = vmatpush1.bf16.msra.mxu0 0
      %2029 = vmatprep.subr.bf16.mxu0 0
      %2030 = vmatpush1.bf16.msra.mxu0 0
      %2031 = vmatprep.subr.bf16.mxu0 0
      %2032 = vmatpush1.bf16.msra.mxu0 0
      %2033 = vmatprep.subr.bf16.mxu0 0
      %2034 = vmatpush1.bf16.msra.mxu0 0
      %2035 = vmatprep.subr.bf16.mxu0 0
      %2036 = vmatpush1.bf16.msra.mxu0 0
      %2037 = vmatprep.subr.bf16.mxu0 0
      %2038 = vmatpush1.bf16.msra.mxu0 0
      %2039 = vmatprep.subr.bf16.mxu0 0
      %2040 = vmatpush1.bf16.msra.mxu0 0
      %2041 = vmatprep.subr.bf16.mxu0 0
      %2042 = vmatpush1.bf16.msra.mxu0 0
      %2043 = vmatprep.subr.bf16.mxu0 0
      %2044 = vmatpush1.bf16.msra.mxu0 0
      %2045 = vmatprep.subr.bf16.mxu0 0
      %2046 = vmatpush1.bf16.msra.mxu0 0
      %2047 = vmatprep.subr.bf16.mxu0 0
      %2048 = vmatpush1.bf16.msra.mxu0 0
      %2049 = vmatprep.subr.bf16.mxu0 0
      %2050 = vmatpush1.bf16.msra.mxu0 0
      %2051 = vmatprep.mubr.bf16.mxu0 0
      %2052 = vmatmul.mubr.bf16.gmra.mrb[0].mxu0 %v1968
      %v2053 = vpop.f32.mrb[0].mxu0
      %v2054 = vadd.f32 %v1949, %v2053
      %v2055 = vpop.f32.mrb[0].mxu0
      %v2056 = vpop.f32.mrb[0].mxu0
      %v2057 = vadd.f32 %v1949, %v2056
      %v2058 = vpop.f32.mrb[0].mxu0
      %2059 = vmatprep.mubr.bf16.mxu0 0
      %2060 = vmatmul.mubr.bf16.gmra.mrb[0].mxu0 %v1971
      %v2061 = vpop.f32.mrb[0].mxu0
      %v2062 = vadd.f32 %v1949, %v2061
      %v2063 = vpop.f32.mrb[0].mxu0
      %v2064 = vpop.f32.mrb[0].mxu0
      %v2065 = vadd.f32 %v1949, %v2064
      %v2066 = vpop.f32.mrb[0].mxu0
      %2067 = vmatprep.mubr.bf16.mxu0 0
      %2068 = vmatmul.mubr.bf16.gmra.mrb[0].mxu0 %v1974
      %v2069 = vpop.f32.mrb[0].mxu0
      %v2070 = vadd.f32 %v1949, %v2069
      %v2071 = vpop.f32.mrb[0].mxu0
      %v2072 = vpop.f32.mrb[0].mxu0
      %v2073 = vadd.f32 %v1949, %v2072
      %v2074 = vpop.f32.mrb[0].mxu0
      %2075 = vmatprep.mubr.bf16.mxu0 0
      %2076 = vmatmul.mubr.bf16.gmra.mrb[0].mxu0 %v1977
      %v2077 = vpop.f32.mrb[0].mxu0
      %v2078 = vadd.f32 %v1949, %v2077
      %v2079 = vpop.f32.mrb[0].mxu0
      %v2080 = vpop.f32.mrb[0].mxu0
      %v2081 = vadd.f32 %v1949, %v2080
      %v2082 = vpop.f32.mrb[0].mxu0
      %2083 = vmatprep.mubr.bf16.mxu0 0
      %2084 = vmatmul.mubr.bf16.gmra.mrb[0].mxu0 %v1980
      %v2085 = vpop.f32.mrb[0].mxu0
      %v2086 = vadd.f32 %v1949, %v2085
      %v2087 = vpop.f32.mrb[0].mxu0
      %v2088 = vpop.f32.mrb[0].mxu0
      %v2089 = vadd.f32 %v1949, %v2088
      %v2090 = vpop.f32.mrb[0].mxu0
      %2091 = vmatprep.mubr.bf16.mxu0 0
      %2092 = vmatmul.mubr.bf16.gmra.mrb[0].mxu0 %v1983
      %v2093 = vpop.f32.mrb[0].mxu0
      %v2094 = vadd.f32 %v1949, %v2093
      %v2095 = vpop.f32.mrb[0].mxu0
      %v2096 = vpop.f32.mrb[0].mxu0
      %v2097 = vadd.f32 %v1949, %v2096
      %v2098 = vpop.f32.mrb[0].mxu0
      %2099 = vmatprep.mubr.bf16.mxu0 0
      %2100 = vmatmul.mubr.bf16.gmra.mrb[0].mxu0 %v1986
      %v2101 = vpop.f32.mrb[0].mxu0
      %v2102 = vadd.f32 %v1949, %v2101
      %v2103 = vpop.f32.mrb[0].mxu0
      %v2104 = vpop.f32.mrb[0].mxu0
      %v2105 = vadd.f32 %v1949, %v2104
      %v2106 = vpop.f32.mrb[0].mxu0
      %2107 = vmatprep.mubr.bf16.mxu0 0
      %2108 = vmatmul.mubr.bf16.gmra.mrb[0].mxu0 %v1989
      %v2109 = vpop.f32.mrb[0].mxu0
      %v2110 = vadd.f32 %v1949, %v2109
      %v2111 = vpop.f32.mrb[0].mxu0
      %v2112 = vpop.f32.mrb[0].mxu0
      %v2113 = vadd.f32 %v1949, %v2112
      %v2114 = vpop.f32.mrb[0].mxu0
      %2115 = vmatprep.mubr.bf16.mxu0 0
      %2116 = vmatmul.mubr.bf16.gmra.mrb[0].mxu0 %v1992
      %v2117 = vpop.f32.mrb[0].mxu0
      %v2118 = vadd.f32 %v1949, %v2117
      %v2119 = vpop.f32.mrb[0].mxu0
      %v2120 = vpop.f32.mrb[0].mxu0
      %v2121 = vadd.f32 %v1949, %v2120
      %v2122 = vpop.f32.mrb[0].mxu0
      %2123 = vmatprep.mubr.bf16.mxu0 0
      %2124 = vmatmul.mubr.bf16.gmra.mrb[0].mxu0 %v1995
      %v2125 = vpop.f32.mrb[0].mxu0
      %v2126 = vadd.f32 %v1949, %v2125
      %v2127 = vpop.f32.mrb[0].mxu0
      %v2128 = vpop.f32.mrb[0].mxu0
      %v2129 = vadd.f32 %v1949, %v2128
      %v2130 = vpop.f32.mrb[0].mxu0
      %2131 = vmatprep.mubr.bf16.mxu0 0
      %2132 = vmatmul.mubr.bf16.gmra.mrb[0].mxu0 %v1998
      %v2133 = vpop.f32.mrb[0].mxu0
      %v2134 = vadd.f32 %v1949, %v2133
      %v2135 = vpop.f32.mrb[0].mxu0
      %v2136 = vpop.f32.mrb[0].mxu0
      %v2137 = vadd.f32 %v1949, %v2136
      %v2138 = vpop.f32.mrb[0].mxu0
      %2139 = vmatprep.mubr.bf16.mxu0 0
      %2140 = vmatmul.mubr.bf16.gmra.mrb[0].mxu0 %v2001
      %v2141 = vpop.f32.mrb[0].mxu0
      %v2142 = vadd.f32 %v1949, %v2141
      %v2143 = vpop.f32.mrb[0].mxu0
      %v2144 = vpop.f32.mrb[0].mxu0
      %v2145 = vadd.f32 %v1949, %v2144
      %v2146 = vpop.f32.mrb[0].mxu0
      %2147 = vmatprep.mubr.bf16.mxu0 0
      %2148 = vmatmul.mubr.bf16.gmra.mrb[0].mxu0 %v2004
      %v2149 = vpop.f32.mrb[0].mxu0
      %v2150 = vadd.f32 %v1949, %v2149
      %v2151 = vpop.f32.mrb[0].mxu0
      %v2152 = vpop.f32.mrb[0].mxu0
      %v2153 = vadd.f32 %v1949, %v2152
      %v2154 = vpop.f32.mrb[0].mxu0
      %2155 = vmatprep.mubr.bf16.mxu0 0
      %2156 = vmatmul.mubr.bf16.gmra.mrb[0].mxu0 %v2007
      %v2157 = vpop.f32.mrb[0].mxu0
      %v2158 = vadd.f32 %v1949, %v2157
      %v2159 = vpop.f32.mrb[0].mxu0
      %v2160 = vpop.f32.mrb[0].mxu0
      %v2161 = vadd.f32 %v1949, %v2160
      %v2162 = vpop.f32.mrb[0].mxu0
      %2163 = vmatprep.mubr.bf16.mxu0 0
      %2164 = vmatmul.mubr.bf16.gmra.mrb[0].mxu0 %v2010
      %v2165 = vpop.f32.mrb[0].mxu0
      %v2166 = vadd.f32 %v1949, %v2165
      %v2167 = vpop.f32.mrb[0].mxu0
      %v2168 = vpop.f32.mrb[0].mxu0
      %v2169 = vadd.f32 %v1949, %v2168
      %v2170 = vpop.f32.mrb[0].mxu0
      %2171 = vmatprep.mubr.bf16.mxu0 0
      %2172 = vmatmul.mubr.bf16.gmra.mrb[0].mxu0 %v2013
      %v2173 = vpop.f32.mrb[0].mxu0
      %v2174 = vadd.f32 %v1949, %v2173
      %v2175 = vpop.f32.mrb[0].mxu0
      %v2176 = vpop.f32.mrb[0].mxu0
      %v2177 = vadd.f32 %v1949, %v2176
      %v2178 = vpop.f32.mrb[0].mxu0
      %2179 = vdwg.mxu0
      %v2180 = vmax.f32 %v2054, 0.0
      %v2181 = vmax.f32 %v2057, 0.0
      %v2182 = vmax.f32 %v2062, 0.0
      %v2183 = vmax.f32 %v2065, 0.0
      %v2184 = vmax.f32 %v2070, 0.0
      %v2185 = vmax.f32 %v2073, 0.0
      %v2186 = vmax.f32 %v2078, 0.0
      %v2187 = vmax.f32 %v2081, 0.0
      %v2188 = vmax.f32 %v2086, 0.0
      %v2189 = vmax.f32 %v2089, 0.0
      %v2190 = vmax.f32 %v2094, 0.0
      %v2191 = vmax.f32 %v2097, 0.0
      %v2192 = vmax.f32 %v2102, 0.0
      %v2193 = vmax.f32 %v2105, 0.0
      %v2194 = vmax.f32 %v2110, 0.0
      %v2195 = vmax.f32 %v2113, 0.0
      %v2196 = vmax.f32 %v2118, 0.0
      %v2197 = vmax.f32 %v2121, 0.0
      %v2198 = vmax.f32 %v2126, 0.0
      %v2199 = vmax.f32 %v2129, 0.0
      %v2200 = vmax.f32 %v2134, 0.0
      %v2201 = vmax.f32 %v2137, 0.0
      %v2202 = vmax.f32 %v2142, 0.0
      %v2203 = vmax.f32 %v2145, 0.0
      %v2204 = vmax.f32 %v2150, 0.0
      %v2205 = vmax.f32 %v2153, 0.0
      %v2206 = vmax.f32 %v2158, 0.0
      %v2207 = vmax.f32 %v2161, 0.0
      %v2208 = vmax.f32 %v2166, 0.0
      %v2209 = vmax.f32 %v2169, 0.0
      %v2210 = vmax.f32 %v2174, 0.0
      %v2211 = vmax.f32 %v2177, 0.0
      %2212 = vst.msk [vmem:[#allocation3] sm:$0xff] %vm1692, 0.0
      %2213 = vst.msk [vmem:[#allocation3 + $0x8] sm:$0xff] %vm1692, 0.0
      %vm2214 = vcmask 58368
      %2215 = vst.msk [vmem:[#allocation3 + $0x10] sm:$0x3] %vm2214, 0.0
      %2216 = vst.msk [vmem:[#allocation3 + $0x18] sm:$0xff] %vm1692, 0.0
      %2217 = vst.msk [vmem:[#allocation3 + $0x20] sm:$0xff] %vm1692, 0.0
      %2218 = vst.msk [vmem:[#allocation3 + $0x28] sm:$0x3] %vm2214, 0.0
      %2219 = vst.msk [vmem:[#allocation3 + $0x30] sm:$0xff] %vm1692, 0.0
      %2220 = vst.msk [vmem:[#allocation3 + $0x38] sm:$0xff] %vm1692, 0.0
      %2221 = vst.msk [vmem:[#allocation3 + $0x40] sm:$0x3] %vm2214, 0.0
      %2222 = vst.msk [vmem:[#allocation3 + $0x48] sm:$0xff] %vm1692, 0.0
      %2223 = vst.msk [vmem:[#allocation3 + $0x50] sm:$0xff] %vm1692, 0.0
      %2224 = vst.msk [vmem:[#allocation3 + $0x58] sm:$0x3] %vm2214, 0.0
      %2225 = vst.msk [vmem:[#allocation3 + $0x60] sm:$0xff] %vm1692, 0.0
      %2226 = vst.msk [vmem:[#allocation3 + $0x68] sm:$0xff] %vm1692, 0.0
      %2227 = vst.msk [vmem:[#allocation3 + $0x70] sm:$0x3] %vm2214, 0.0
      %2228 = vst.msk [vmem:[#allocation3 + $0x78] sm:$0xff] %vm1692, 0.0
      %2229 = vst.msk [vmem:[#allocation3 + $0x80] sm:$0xff] %vm1692, 0.0
      %2230 = vst.msk [vmem:[#allocation3 + $0x88] sm:$0x3] %vm2214, 0.0
      %2231 = vst.msk [vmem:[#allocation3 + $0x90] sm:$0xff] %vm1692, 0.0
      %2232 = vst.msk [vmem:[#allocation3 + $0x98] sm:$0xff] %vm1692, 0.0
      %2233 = vst.msk [vmem:[#allocation3 + $0xa0] sm:$0x3] %vm2214, 0.0
      %2234 = vst.msk [vmem:[#allocation3 + $0xa8] sm:$0xff] %vm1692, 0.0
      %2235 = vst.msk [vmem:[#allocation3 + $0xb0] sm:$0xff] %vm1692, 0.0
      %2236 = vst.msk [vmem:[#allocation3 + $0xb8] sm:$0x3] %vm2214, 0.0
      %2237 = vst.msk [vmem:[#allocation3 + $0xc0] sm:$0xff] %vm1692, 0.0
      %2238 = vst.msk [vmem:[#allocation3 + $0xc8] sm:$0xff] %vm1692, 0.0
      %2239 = vst.msk [vmem:[#allocation3 + $0xd0] sm:$0x3] %vm2214, 0.0
      %2240 = vst.msk [vmem:[#allocation3 + $0xd8] sm:$0xff] %vm1692, 0.0
      %2241 = vst.msk [vmem:[#allocation3 + $0xe0] sm:$0xff] %vm1692, 0.0
      %2242 = vst.msk [vmem:[#allocation3 + $0xe8] sm:$0x3] %vm2214, 0.0
      %2243 = vst.msk [vmem:[#allocation3 + $0xf0] sm:$0xff] %vm1692, 0.0
      %2244 = vst.msk [vmem:[#allocation3 + $0xf8] sm:$0xff] %vm1692, 0.0
      %2245 = vst.msk [vmem:[#allocation3 + $0x100] sm:$0x3] %vm2214, 0.0
      %2246 = vst.msk [vmem:[#allocation3 + $0x108] sm:$0xff] %vm1692, 0.0
      %2247 = vst.msk [vmem:[#allocation3 + $0x110] sm:$0xff] %vm1692, 0.0
      %2248 = vst.msk [vmem:[#allocation3 + $0x118] sm:$0x3] %vm2214, 0.0
      %2249 = vst.msk [vmem:[#allocation3 + $0x120] sm:$0xff] %vm1692, 0.0
      %2250 = vst.msk [vmem:[#allocation3 + $0x128] sm:$0xff] %vm1692, 0.0
      %2251 = vst.msk [vmem:[#allocation3 + $0x130] sm:$0x3] %vm2214, 0.0
      %2252 = vst.msk [vmem:[#allocation3 + $0x138] sm:$0xff] %vm1692, 0.0
      %2253 = vst.msk [vmem:[#allocation3 + $0x140] sm:$0xff] %vm1692, 0.0
      %2254 = vst.msk [vmem:[#allocation3 + $0x148] sm:$0x3] %vm2214, 0.0
      %2255 = vst.msk [vmem:[#allocation3 + $0x150] sm:$0xff] %vm1692, 0.0
      %2256 = vst.msk [vmem:[#allocation3 + $0x158] sm:$0xff] %vm1692, 0.0
      %2257 = vst.msk [vmem:[#allocation3 + $0x160] sm:$0x3] %vm2214, 0.0
      %2258 = vst.msk [vmem:[#allocation3 + $0x168] sm:$0xff] %vm1692, 0.0
      %2259 = vst.msk [vmem:[#allocation3 + $0x170] sm:$0xff] %vm1692, 0.0
      %2260 = vst.msk [vmem:[#allocation3 + $0x178] sm:$0x3] %vm2214, 0.0
      %2261 = vst.msk [vmem:[#allocation3 + $0x180] sm:$0xff] %vm1692, 0.0
      %2262 = vst.msk [vmem:[#allocation3 + $0x188] sm:$0xff] %vm1692, 0.0
      %2263 = vst.msk [vmem:[#allocation3 + $0x190] sm:$0x3] %vm2214, 0.0
      %2264 = vst.msk [vmem:[#allocation3 + $0x198] sm:$0xff] %vm1692, 0.0
      %2265 = vst.msk [vmem:[#allocation3 + $0x1a0] sm:$0xff] %vm1692, 0.0
      %2266 = vst.msk [vmem:[#allocation3 + $0x1a8] sm:$0x3] %vm2214, 0.0
      %s2267 = scalar_lea.vmem [#allocation3], 24
      %2268 = vst.msk [vmem:[%s2267 + $0x1] sm:$0xff] %vm1692, %v2180
      %2269 = vst.msk [vmem:[%s2267 + $0x9] sm:$0xff] %vm1692, %v2181
      %2270 = vst.msk [vmem:[%s2267 + $0x19] sm:$0xff] %vm1692, %v2182
      %2271 = vst.msk [vmem:[%s2267 + $0x21] sm:$0xff] %vm1692, %v2183
      %2272 = vst.msk [vmem:[%s2267 + $0x31] sm:$0xff] %vm1692, %v2184
      %2273 = vst.msk [vmem:[%s2267 + $0x39] sm:$0xff] %vm1692, %v2185
      %2274 = vst.msk [vmem:[%s2267 + $0x49] sm:$0xff] %vm1692, %v2186
      %2275 = vst.msk [vmem:[%s2267 + $0x51] sm:$0xff] %vm1692, %v2187
      %2276 = vst.msk [vmem:[%s2267 + $0x61] sm:$0xff] %vm1692, %v2188
      %2277 = vst.msk [vmem:[%s2267 + $0x69] sm:$0xff] %vm1692, %v2189
      %2278 = vst.msk [vmem:[%s2267 + $0x79] sm:$0xff] %vm1692, %v2190
      %2279 = vst.msk [vmem:[%s2267 + $0x81] sm:$0xff] %vm1692, %v2191
      %2280 = vst.msk [vmem:[%s2267 + $0x91] sm:$0xff] %vm1692, %v2192
      %2281 = vst.msk [vmem:[%s2267 + $0x99] sm:$0xff] %vm1692, %v2193
      %2282 = vst.msk [vmem:[%s2267 + $0xa9] sm:$0xff] %vm1692, %v2194
      %2283 = vst.msk [vmem:[%s2267 + $0xb1] sm:$0xff] %vm1692, %v2195
      %2284 = vst.msk [vmem:[%s2267 + $0xc1] sm:$0xff] %vm1692, %v2196
      %2285 = vst.msk [vmem:[%s2267 + $0xc9] sm:$0xff] %vm1692, %v2197
      %2286 = vst.msk [vmem:[%s2267 + $0xd9] sm:$0xff] %vm1692, %v2198
      %2287 = vst.msk [vmem:[%s2267 + $0xe1] sm:$0xff] %vm1692, %v2199
      %2288 = vst.msk [vmem:[%s2267 + $0xf1] sm:$0xff] %vm1692, %v2200
      %2289 = vst.msk [vmem:[%s2267 + $0xf9] sm:$0xff] %vm1692, %v2201
      %2290 = vst.msk [vmem:[%s2267 + $0x109] sm:$0xff] %vm1692, %v2202
      %2291 = vst.msk [vmem:[%s2267 + $0x111] sm:$0xff] %vm1692, %v2203
      %2292 = vst.msk [vmem:[%s2267 + $0x121] sm:$0xff] %vm1692, %v2204
      %2293 = vst.msk [vmem:[%s2267 + $0x129] sm:$0xff] %vm1692, %v2205
      %2294 = vst.msk [vmem:[%s2267 + $0x139] sm:$0xff] %vm1692, %v2206
      %2295 = vst.msk [vmem:[%s2267 + $0x141] sm:$0xff] %vm1692, %v2207
      %2296 = vst.msk [vmem:[%s2267 + $0x151] sm:$0xff] %vm1692, %v2208
      %2297 = vst.msk [vmem:[%s2267 + $0x159] sm:$0xff] %vm1692, %v2209
      %2298 = vst.msk [vmem:[%s2267 + $0x169] sm:$0xff] %vm1692, %v2210
      %2299 = vst.msk [vmem:[%s2267 + $0x171] sm:$0xff] %vm1692, %v2211
      %v2300 = vld [vmem:[#allocation3] sm:$0xff]
      %v2301 = vld [vmem:[#allocation3 + $0x8] sm:$0xff]
      %v2302 = vld [vmem:[#allocation3 + $0x18] sm:$0xff]
      %v2303 = vld [vmem:[#allocation3 + $0x20] sm:$0xff]
      %v2304 = vld [vmem:[#allocation3 + $0x30] sm:$0xff]
      %v2305 = vld [vmem:[#allocation3 + $0x38] sm:$0xff]
      %v2306 = vld [vmem:[#allocation3 + $0x48] sm:$0xff]
      %v2307 = vld [vmem:[#allocation3 + $0x50] sm:$0xff]
      %v2308 = vld [vmem:[#allocation3 + $0x60] sm:$0xff]
      %v2309 = vld [vmem:[#allocation3 + $0x68] sm:$0xff]
      %v2310 = vld [vmem:[#allocation3 + $0x78] sm:$0xff]
      %v2311 = vld [vmem:[#allocation3 + $0x80] sm:$0xff]
      %v2312 = vld [vmem:[#allocation3 + $0x90] sm:$0xff]
      %v2313 = vld [vmem:[#allocation3 + $0x98] sm:$0xff]
      %v2314 = vld [vmem:[#allocation3 + $0xa8] sm:$0xff]
      %v2315 = vld [vmem:[#allocation3 + $0xb0] sm:$0xff]
      %v2316 = vld [vmem:[#allocation3 + $0xc0] sm:$0xff]
      %v2317 = vld [vmem:[#allocation3 + $0xc8] sm:$0xff]
      %v2318 = vld [vmem:[#allocation3 + $0xd8] sm:$0xff]
      %v2319 = vld [vmem:[#allocation3 + $0xe0] sm:$0xff]
      %v2320 = vld [vmem:[#allocation3 + $0xf0] sm:$0xff]
      %v2321 = vld [vmem:[#allocation3 + $0xf8] sm:$0xff]
      %v2322 = vld [vmem:[#allocation3 + $0x108] sm:$0xff]
      %v2323 = vld [vmem:[#allocation3 + $0x110] sm:$0xff]
      %v2324 = vld [vmem:[#allocation3 + $0x120] sm:$0xff]
      %v2325 = vld [vmem:[#allocation3 + $0x128] sm:$0xff]
      %v2326 = vld [vmem:[#allocation3 + $0x138] sm:$0xff]
      %v2327 = vld [vmem:[#allocation3 + $0x140] sm:$0xff]
      %v2328 = vld [vmem:[#allocation3 + $0x150] sm:$0xff]
      %v2329 = vld [vmem:[#allocation3 + $0x158] sm:$0xff]
      %v2330 = vld [vmem:[#allocation3 + $0x168] sm:$0xff]
      %v2331 = vld [vmem:[#allocation3 + $0x170] sm:$0xff]
      %v2332 = vld [vmem:[#allocation3 + $0x1] sm:$0xff]
      %v2333 = vld [vmem:[#allocation3 + $0x9] sm:$0xff]
      %v2334 = vld [vmem:[#allocation3 + $0x19] sm:$0xff]
      %v2335 = vld [vmem:[#allocation3 + $0x21] sm:$0xff]
      %v2336 = vld [vmem:[#allocation3 + $0x31] sm:$0xff]
      %v2337 = vld [vmem:[#allocation3 + $0x39] sm:$0xff]
      %v2338 = vld [vmem:[#allocation3 + $0x49] sm:$0xff]
      %v2339 = vld [vmem:[#allocation3 + $0x51] sm:$0xff]
      %v2340 = vld [vmem:[#allocation3 + $0x61] sm:$0xff]
      %v2341 = vld [vmem:[#allocation3 + $0x69] sm:$0xff]
      %v2342 = vld [vmem:[#allocation3 + $0x79] sm:$0xff]
      %v2343 = vld [vmem:[#allocation3 + $0x81] sm:$0xff]
      %v2344 = vld [vmem:[#allocation3 + $0x91] sm:$0xff]
      %v2345 = vld [vmem:[#allocation3 + $0x99] sm:$0xff]
      %v2346 = vld [vmem:[#allocation3 + $0xa9] sm:$0xff]
      %v2347 = vld [vmem:[#allocation3 + $0xb1] sm:$0xff]
      %v2348 = vld [vmem:[#allocation3 + $0xc1] sm:$0xff]
      %v2349 = vld [vmem:[#allocation3 + $0xc9] sm:$0xff]
      %v2350 = vld [vmem:[#allocation3 + $0xd9] sm:$0xff]
      %v2351 = vld [vmem:[#allocation3 + $0xe1] sm:$0xff]
      %v2352 = vld [vmem:[#allocation3 + $0xf1] sm:$0xff]
      %v2353 = vld [vmem:[#allocation3 + $0xf9] sm:$0xff]
      %v2354 = vld [vmem:[#allocation3 + $0x109] sm:$0xff]
      %v2355 = vld [vmem:[#allocation3 + $0x111] sm:$0xff]
      %v2356 = vld [vmem:[#allocation3 + $0x121] sm:$0xff]
      %v2357 = vld [vmem:[#allocation3 + $0x129] sm:$0xff]
      %v2358 = vld [vmem:[#allocation3 + $0x139] sm:$0xff]
      %v2359 = vld [vmem:[#allocation3 + $0x141] sm:$0xff]
      %v2360 = vld [vmem:[#allocation3 + $0x151] sm:$0xff]
      %v2361 = vld [vmem:[#allocation3 + $0x159] sm:$0xff]
      %v2362 = vld [vmem:[#allocation3 + $0x169] sm:$0xff]
      %v2363 = vld [vmem:[#allocation3 + $0x171] sm:$0xff]
      %v2364 = vld [vmem:[#allocation3 + $0x2] sm:$0xff]
      %v2365 = vld [vmem:[#allocation3 + $0xa] sm:$0xff]
      %v2366 = vld [vmem:[#allocation3 + $0x1a] sm:$0xff]
      %v2367 = vld [vmem:[#allocation3 + $0x22] sm:$0xff]
      %v2368 = vld [vmem:[#allocation3 + $0x32] sm:$0xff]
      %v2369 = vld [vmem:[#allocation3 + $0x3a] sm:$0xff]
      %v2370 = vld [vmem:[#allocation3 + $0x4a] sm:$0xff]
      %v2371 = vld [vmem:[#allocation3 + $0x52] sm:$0xff]
      %v2372 = vld [vmem:[#allocation3 + $0x62] sm:$0xff]
      %v2373 = vld [vmem:[#allocation3 + $0x6a] sm:$0xff]
      %v2374 = vld [vmem:[#allocation3 + $0x7a] sm:$0xff]
      %v2375 = vld [vmem:[#allocation3 + $0x82] sm:$0xff]
      %v2376 = vld [vmem:[#allocation3 + $0x92] sm:$0xff]
      %v2377 = vld [vmem:[#allocation3 + $0x9a] sm:$0xff]
      %v2378 = vld [vmem:[#allocation3 + $0xaa] sm:$0xff]
      %v2379 = vld [vmem:[#allocation3 + $0xb2] sm:$0xff]
      %v2380 = vld [vmem:[#allocation3 + $0xc2] sm:$0xff]
      %v2381 = vld [vmem:[#allocation3 + $0xca] sm:$0xff]
      %v2382 = vld [vmem:[#allocation3 + $0xda] sm:$0xff]
      %v2383 = vld [vmem:[#allocation3 + $0xe2] sm:$0xff]
      %v2384 = vld [vmem:[#allocation3 + $0xf2] sm:$0xff]
      %v2385 = vld [vmem:[#allocation3 + $0xfa] sm:$0xff]
      %v2386 = vld [vmem:[#allocation3 + $0x10a] sm:$0xff]
      %v2387 = vld [vmem:[#allocation3 + $0x112] sm:$0xff]
      %v2388 = vld [vmem:[#allocation3 + $0x122] sm:$0xff]
      %v2389 = vld [vmem:[#allocation3 + $0x12a] sm:$0xff]
      %v2390 = vld [vmem:[#allocation3 + $0x13a] sm:$0xff]
      %v2391 = vld [vmem:[#allocation3 + $0x142] sm:$0xff]
      %v2392 = vld [vmem:[#allocation3 + $0x152] sm:$0xff]
      %v2393 = vld [vmem:[#allocation3 + $0x15a] sm:$0xff]
      %v2394 = vld [vmem:[#allocation3 + $0x16a] sm:$0xff]
      %v2395 = vld [vmem:[#allocation3 + $0x172] sm:$0xff]
      %v2396 = vld [vmem:[%s2267] sm:$0xff]
      %v2397 = vld [vmem:[%s2267 + $0x8] sm:$0xff]
      %v2398 = vld [vmem:[%s2267 + $0x18] sm:$0xff]
      %v2399 = vld [vmem:[%s2267 + $0x20] sm:$0xff]
      %v2400 = vld [vmem:[%s2267 + $0x30] sm:$0xff]
      %v2401 = vld [vmem:[%s2267 + $0x38] sm:$0xff]
      %v2402 = vld [vmem:[%s2267 + $0x48] sm:$0xff]
      %v2403 = vld [vmem:[%s2267 + $0x50] sm:$0xff]
      %v2404 = vld [vmem:[%s2267 + $0x60] sm:$0xff]
      %v2405 = vld [vmem:[%s2267 + $0x68] sm:$0xff]
      %v2406 = vld [vmem:[%s2267 + $0x78] sm:$0xff]
      %v2407 = vld [vmem:[%s2267 + $0x80] sm:$0xff]
      %v2408 = vld [vmem:[%s2267 + $0x90] sm:$0xff]
      %v2409 = vld [vmem:[%s2267 + $0x98] sm:$0xff]
      %v2410 = vld [vmem:[%s2267 + $0xa8] sm:$0xff]
      %v2411 = vld [vmem:[%s2267 + $0xb0] sm:$0xff]
      %v2412 = vld [vmem:[%s2267 + $0xc0] sm:$0xff]
      %v2413 = vld [vmem:[%s2267 + $0xc8] sm:$0xff]
      %v2414 = vld [vmem:[%s2267 + $0xd8] sm:$0xff]
      %v2415 = vld [vmem:[%s2267 + $0xe0] sm:$0xff]
      %v2416 = vld [vmem:[%s2267 + $0xf0] sm:$0xff]
      %v2417 = vld [vmem:[%s2267 + $0xf8] sm:$0xff]
      %v2418 = vld [vmem:[%s2267 + $0x108] sm:$0xff]
      %v2419 = vld [vmem:[%s2267 + $0x110] sm:$0xff]
      %v2420 = vld [vmem:[%s2267 + $0x120] sm:$0xff]
      %v2421 = vld [vmem:[%s2267 + $0x128] sm:$0xff]
      %v2422 = vld [vmem:[%s2267 + $0x138] sm:$0xff]
      %v2423 = vld [vmem:[%s2267 + $0x140] sm:$0xff]
      %v2424 = vld [vmem:[%s2267 + $0x150] sm:$0xff]
      %v2425 = vld [vmem:[%s2267 + $0x158] sm:$0xff]
      %v2426 = vld [vmem:[%s2267 + $0x168] sm:$0xff]
      %v2427 = vld [vmem:[%s2267 + $0x170] sm:$0xff]
      %v2428 = vld [vmem:[%s2267 + $0x1] sm:$0xff]
      %v2429 = vld [vmem:[%s2267 + $0x9] sm:$0xff]
      %v2430 = vld [vmem:[%s2267 + $0x19] sm:$0xff]
      %v2431 = vld [vmem:[%s2267 + $0x21] sm:$0xff]
      %v2432 = vld [vmem:[%s2267 + $0x31] sm:$0xff]
      %v2433 = vld [vmem:[%s2267 + $0x39] sm:$0xff]
      %v2434 = vld [vmem:[%s2267 + $0x49] sm:$0xff]
      %v2435 = vld [vmem:[%s2267 + $0x51] sm:$0xff]
      %v2436 = vld [vmem:[%s2267 + $0x61] sm:$0xff]
      %v2437 = vld [vmem:[%s2267 + $0x69] sm:$0xff]
      %v2438 = vld [vmem:[%s2267 + $0x79] sm:$0xff]
      %v2439 = vld [vmem:[%s2267 + $0x81] sm:$0xff]
      %v2440 = vld [vmem:[%s2267 + $0x91] sm:$0xff]
      %v2441 = vld [vmem:[%s2267 + $0x99] sm:$0xff]
      %v2442 = vld [vmem:[%s2267 + $0xa9] sm:$0xff]
      %v2443 = vld [vmem:[%s2267 + $0xb1] sm:$0xff]
      %v2444 = vld [vmem:[%s2267 + $0xc1] sm:$0xff]
      %v2445 = vld [vmem:[%s2267 + $0xc9] sm:$0xff]
      %v2446 = vld [vmem:[%s2267 + $0xd9] sm:$0xff]
      %v2447 = vld [vmem:[%s2267 + $0xe1] sm:$0xff]
      %v2448 = vld [vmem:[%s2267 + $0xf1] sm:$0xff]
      %v2449 = vld [vmem:[%s2267 + $0xf9] sm:$0xff]
      %v2450 = vld [vmem:[%s2267 + $0x109] sm:$0xff]
      %v2451 = vld [vmem:[%s2267 + $0x111] sm:$0xff]
      %v2452 = vld [vmem:[%s2267 + $0x121] sm:$0xff]
      %v2453 = vld [vmem:[%s2267 + $0x129] sm:$0xff]
      %v2454 = vld [vmem:[%s2267 + $0x139] sm:$0xff]
      %v2455 = vld [vmem:[%s2267 + $0x141] sm:$0xff]
      %v2456 = vld [vmem:[%s2267 + $0x151] sm:$0xff]
      %v2457 = vld [vmem:[%s2267 + $0x159] sm:$0xff]
      %v2458 = vld [vmem:[%s2267 + $0x169] sm:$0xff]
      %v2459 = vld [vmem:[%s2267 + $0x171] sm:$0xff]
      %v2460 = vld [vmem:[%s2267 + $0x2] sm:$0xff]
      %v2461 = vld [vmem:[%s2267 + $0xa] sm:$0xff]
      %v2462 = vld [vmem:[%s2267 + $0x1a] sm:$0xff]
      %v2463 = vld [vmem:[%s2267 + $0x22] sm:$0xff]
      %v2464 = vld [vmem:[%s2267 + $0x32] sm:$0xff]
      %v2465 = vld [vmem:[%s2267 + $0x3a] sm:$0xff]
      %v2466 = vld [vmem:[%s2267 + $0x4a] sm:$0xff]
      %v2467 = vld [vmem:[%s2267 + $0x52] sm:$0xff]
      %v2468 = vld [vmem:[%s2267 + $0x62] sm:$0xff]
      %v2469 = vld [vmem:[%s2267 + $0x6a] sm:$0xff]
      %v2470 = vld [vmem:[%s2267 + $0x7a] sm:$0xff]
      %v2471 = vld [vmem:[%s2267 + $0x82] sm:$0xff]
      %v2472 = vld [vmem:[%s2267 + $0x92] sm:$0xff]
      %v2473 = vld [vmem:[%s2267 + $0x9a] sm:$0xff]
      %v2474 = vld [vmem:[%s2267 + $0xaa] sm:$0xff]
      %v2475 = vld [vmem:[%s2267 + $0xb2] sm:$0xff]
      %v2476 = vld [vmem:[%s2267 + $0xc2] sm:$0xff]
      %v2477 = vld [vmem:[%s2267 + $0xca] sm:$0xff]
      %v2478 = vld [vmem:[%s2267 + $0xda] sm:$0xff]
      %v2479 = vld [vmem:[%s2267 + $0xe2] sm:$0xff]
      %v2480 = vld [vmem:[%s2267 + $0xf2] sm:$0xff]
      %v2481 = vld [vmem:[%s2267 + $0xfa] sm:$0xff]
      %v2482 = vld [vmem:[%s2267 + $0x10a] sm:$0xff]
      %v2483 = vld [vmem:[%s2267 + $0x112] sm:$0xff]
      %v2484 = vld [vmem:[%s2267 + $0x122] sm:$0xff]
      %v2485 = vld [vmem:[%s2267 + $0x12a] sm:$0xff]
      %v2486 = vld [vmem:[%s2267 + $0x13a] sm:$0xff]
      %v2487 = vld [vmem:[%s2267 + $0x142] sm:$0xff]
      %v2488 = vld [vmem:[%s2267 + $0x152] sm:$0xff]
      %v2489 = vld [vmem:[%s2267 + $0x15a] sm:$0xff]
      %v2490 = vld [vmem:[%s2267 + $0x16a] sm:$0xff]
      %v2491 = vld [vmem:[%s2267 + $0x172] sm:$0xff]
      %s2492 = scalar_lea.vmem [#allocation3], 48
      %v2493 = vld [vmem:[%s2492] sm:$0xff]
      %v2494 = vld [vmem:[%s2492 + $0x8] sm:$0xff]
      %v2495 = vld [vmem:[%s2492 + $0x18] sm:$0xff]
      %v2496 = vld [vmem:[%s2492 + $0x20] sm:$0xff]
      %v2497 = vld [vmem:[%s2492 + $0x30] sm:$0xff]
      %v2498 = vld [vmem:[%s2492 + $0x38] sm:$0xff]
      %v2499 = vld [vmem:[%s2492 + $0x48] sm:$0xff]
      %v2500 = vld [vmem:[%s2492 + $0x50] sm:$0xff]
      %v2501 = vld [vmem:[%s2492 + $0x60] sm:$0xff]
      %v2502 = vld [vmem:[%s2492 + $0x68] sm:$0xff]
      %v2503 = vld [vmem:[%s2492 + $0x78] sm:$0xff]
      %v2504 = vld [vmem:[%s2492 + $0x80] sm:$0xff]
      %v2505 = vld [vmem:[%s2492 + $0x90] sm:$0xff]
      %v2506 = vld [vmem:[%s2492 + $0x98] sm:$0xff]
      %v2507 = vld [vmem:[%s2492 + $0xa8] sm:$0xff]
      %v2508 = vld [vmem:[%s2492 + $0xb0] sm:$0xff]
      %v2509 = vld [vmem:[%s2492 + $0xc0] sm:$0xff]
      %v2510 = vld [vmem:[%s2492 + $0xc8] sm:$0xff]
      %v2511 = vld [vmem:[%s2492 + $0xd8] sm:$0xff]
      %v2512 = vld [vmem:[%s2492 + $0xe0] sm:$0xff]
      %v2513 = vld [vmem:[%s2492 + $0xf0] sm:$0xff]
      %v2514 = vld [vmem:[%s2492 + $0xf8] sm:$0xff]
      %v2515 = vld [vmem:[%s2492 + $0x108] sm:$0xff]
      %v2516 = vld [vmem:[%s2492 + $0x110] sm:$0xff]
      %v2517 = vld [vmem:[%s2492 + $0x120] sm:$0xff]
      %v2518 = vld [vmem:[%s2492 + $0x128] sm:$0xff]
      %v2519 = vld [vmem:[%s2492 + $0x138] sm:$0xff]
      %v2520 = vld [vmem:[%s2492 + $0x140] sm:$0xff]
      %v2521 = vld [vmem:[%s2492 + $0x150] sm:$0xff]
      %v2522 = vld [vmem:[%s2492 + $0x158] sm:$0xff]
      %v2523 = vld [vmem:[%s2492 + $0x168] sm:$0xff]
      %v2524 = vld [vmem:[%s2492 + $0x170] sm:$0xff]
      %v2525 = vld [vmem:[%s2492 + $0x1] sm:$0xff]
      %v2526 = vld [vmem:[%s2492 + $0x9] sm:$0xff]
      %v2527 = vld [vmem:[%s2492 + $0x19] sm:$0xff]
      %v2528 = vld [vmem:[%s2492 + $0x21] sm:$0xff]
      %v2529 = vld [vmem:[%s2492 + $0x31] sm:$0xff]
      %v2530 = vld [vmem:[%s2492 + $0x39] sm:$0xff]
      %v2531 = vld [vmem:[%s2492 + $0x49] sm:$0xff]
      %v2532 = vld [vmem:[%s2492 + $0x51] sm:$0xff]
      %v2533 = vld [vmem:[%s2492 + $0x61] sm:$0xff]
      %v2534 = vld [vmem:[%s2492 + $0x69] sm:$0xff]
      %v2535 = vld [vmem:[%s2492 + $0x79] sm:$0xff]
      %v2536 = vld [vmem:[%s2492 + $0x81] sm:$0xff]
      %v2537 = vld [vmem:[%s2492 + $0x91] sm:$0xff]
      %v2538 = vld [vmem:[%s2492 + $0x99] sm:$0xff]
      %v2539 = vld [vmem:[%s2492 + $0xa9] sm:$0xff]
      %v2540 = vld [vmem:[%s2492 + $0xb1] sm:$0xff]
      %v2541 = vld [vmem:[%s2492 + $0xc1] sm:$0xff]
      %v2542 = vld [vmem:[%s2492 + $0xc9] sm:$0xff]
      %v2543 = vld [vmem:[%s2492 + $0xd9] sm:$0xff]
      %v2544 = vld [vmem:[%s2492 + $0xe1] sm:$0xff]
      %v2545 = vld [vmem:[%s2492 + $0xf1] sm:$0xff]
      %v2546 = vld [vmem:[%s2492 + $0xf9] sm:$0xff]
      %v2547 = vld [vmem:[%s2492 + $0x109] sm:$0xff]
      %v2548 = vld [vmem:[%s2492 + $0x111] sm:$0xff]
      %v2549 = vld [vmem:[%s2492 + $0x121] sm:$0xff]
      %v2550 = vld [vmem:[%s2492 + $0x129] sm:$0xff]
      %v2551 = vld [vmem:[%s2492 + $0x139] sm:$0xff]
      %v2552 = vld [vmem:[%s2492 + $0x141] sm:$0xff]
      %v2553 = vld [vmem:[%s2492 + $0x151] sm:$0xff]
      %v2554 = vld [vmem:[%s2492 + $0x159] sm:$0xff]
      %v2555 = vld [vmem:[%s2492 + $0x169] sm:$0xff]
      %v2556 = vld [vmem:[%s2492 + $0x171] sm:$0xff]
      %v2557 = vld [vmem:[%s2492 + $0x2] sm:$0xff]
      %v2558 = vld [vmem:[%s2492 + $0xa] sm:$0xff]
      %v2559 = vld [vmem:[%s2492 + $0x1a] sm:$0xff]
      %v2560 = vld [vmem:[%s2492 + $0x22] sm:$0xff]
      %v2561 = vld [vmem:[%s2492 + $0x32] sm:$0xff]
      %v2562 = vld [vmem:[%s2492 + $0x3a] sm:$0xff]
      %v2563 = vld [vmem:[%s2492 + $0x4a] sm:$0xff]
      %v2564 = vld [vmem:[%s2492 + $0x52] sm:$0xff]
      %v2565 = vld [vmem:[%s2492 + $0x62] sm:$0xff]
      %v2566 = vld [vmem:[%s2492 + $0x6a] sm:$0xff]
      %v2567 = vld [vmem:[%s2492 + $0x7a] sm:$0xff]
      %v2568 = vld [vmem:[%s2492 + $0x82] sm:$0xff]
      %v2569 = vld [vmem:[%s2492 + $0x92] sm:$0xff]
      %v2570 = vld [vmem:[%s2492 + $0x9a] sm:$0xff]
      %v2571 = vld [vmem:[%s2492 + $0xaa] sm:$0xff]
      %v2572 = vld [vmem:[%s2492 + $0xb2] sm:$0xff]
      %v2573 = vld [vmem:[%s2492 + $0xc2] sm:$0xff]
      %v2574 = vld [vmem:[%s2492 + $0xca] sm:$0xff]
      %v2575 = vld [vmem:[%s2492 + $0xda] sm:$0xff]
      %v2576 = vld [vmem:[%s2492 + $0xe2] sm:$0xff]
      %v2577 = vld [vmem:[%s2492 + $0xf2] sm:$0xff]
      %v2578 = vld [vmem:[%s2492 + $0xfa] sm:$0xff]
      %v2579 = vld [vmem:[%s2492 + $0x10a] sm:$0xff]
      %v2580 = vld [vmem:[%s2492 + $0x112] sm:$0xff]
      %v2581 = vld [vmem:[%s2492 + $0x122] sm:$0xff]
      %v2582 = vld [vmem:[%s2492 + $0x12a] sm:$0xff]
      %v2583 = vld [vmem:[%s2492 + $0x13a] sm:$0xff]
      %v2584 = vld [vmem:[%s2492 + $0x142] sm:$0xff]
      %v2585 = vld [vmem:[%s2492 + $0x152] sm:$0xff]
      %v2586 = vld [vmem:[%s2492 + $0x15a] sm:$0xff]
      %v2587 = vld [vmem:[%s2492 + $0x16a] sm:$0xff]
      %v2588 = vld [vmem:[%s2492 + $0x172] sm:$0xff]
      %2621 = vrot.lane.b32.xlu0 %v2332, 8
      %v2622 = vpop.permute.xlu0 %2621
      %2623 = vrot.lane.b32.xlu0 %v2333, 8
      %v2624 = vpop.permute.xlu0 %2623
      %2625 = vrot.lane.b32.xlu0 %v2334, 8
      %v2626 = vpop.permute.xlu0 %2625
      %2627 = vrot.lane.b32.xlu0 %v2335, 8
      %v2628 = vpop.permute.xlu0 %2627
      %2629 = vrot.lane.b32.xlu0 %v2336, 8
      %v2630 = vpop.permute.xlu0 %2629
      %2631 = vrot.lane.b32.xlu0 %v2337, 8
      %v2632 = vpop.permute.xlu0 %2631
      %2633 = vrot.lane.b32.xlu0 %v2338, 8
      %v2634 = vpop.permute.xlu0 %2633
      %2635 = vrot.lane.b32.xlu0 %v2339, 8
      %v2636 = vpop.permute.xlu0 %2635
      %2637 = vrot.lane.b32.xlu0 %v2340, 8
      %v2638 = vpop.permute.xlu0 %2637
      %2639 = vrot.lane.b32.xlu0 %v2341, 8
      %v2640 = vpop.permute.xlu0 %2639
      %2641 = vrot.lane.b32.xlu0 %v2342, 8
      %v2642 = vpop.permute.xlu0 %2641
      %2643 = vrot.lane.b32.xlu0 %v2343, 8
      %v2644 = vpop.permute.xlu0 %2643
      %2645 = vrot.lane.b32.xlu0 %v2344, 8
      %v2646 = vpop.permute.xlu0 %2645
      %2647 = vrot.lane.b32.xlu0 %v2345, 8
      %v2648 = vpop.permute.xlu0 %2647
      %2649 = vrot.lane.b32.xlu0 %v2346, 8
      %v2650 = vpop.permute.xlu0 %2649
      %2651 = vrot.lane.b32.xlu0 %v2347, 8
      %v2652 = vpop.permute.xlu0 %2651
      %2653 = vrot.lane.b32.xlu0 %v2348, 8
      %v2654 = vpop.permute.xlu0 %2653
      %2655 = vrot.lane.b32.xlu0 %v2349, 8
      %v2656 = vpop.permute.xlu0 %2655
      %2657 = vrot.lane.b32.xlu0 %v2350, 8
      %v2658 = vpop.permute.xlu0 %2657
      %2659 = vrot.lane.b32.xlu0 %v2351, 8
      %v2660 = vpop.permute.xlu0 %2659
      %2661 = vrot.lane.b32.xlu0 %v2352, 8
      %v2662 = vpop.permute.xlu0 %2661
      %2663 = vrot.lane.b32.xlu0 %v2353, 8
      %v2664 = vpop.permute.xlu0 %2663
      %2665 = vrot.lane.b32.xlu0 %v2354, 8
      %v2666 = vpop.permute.xlu0 %2665
      %2667 = vrot.lane.b32.xlu0 %v2355, 8
      %v2668 = vpop.permute.xlu0 %2667
      %2669 = vrot.lane.b32.xlu0 %v2356, 8
      %v2670 = vpop.permute.xlu0 %2669
      %2671 = vrot.lane.b32.xlu0 %v2357, 8
      %v2672 = vpop.permute.xlu0 %2671
      %2673 = vrot.lane.b32.xlu0 %v2358, 8
      %v2674 = vpop.permute.xlu0 %2673
      %2675 = vrot.lane.b32.xlu0 %v2359, 8
      %v2676 = vpop.permute.xlu0 %2675
      %2677 = vrot.lane.b32.xlu0 %v2360, 8
      %v2678 = vpop.permute.xlu0 %2677
      %2679 = vrot.lane.b32.xlu0 %v2361, 8
      %v2680 = vpop.permute.xlu0 %2679
      %2681 = vrot.lane.b32.xlu0 %v2362, 8
      %v2682 = vpop.permute.xlu0 %2681
      %2683 = vrot.lane.b32.xlu0 %v2363, 8
      %v2684 = vpop.permute.xlu0 %2683
      %2749 = vrot.lane.b32.xlu0 %v2364, 16
      %v2750 = vpop.permute.xlu0 %2749
      %2751 = vrot.lane.b32.xlu0 %v2365, 16
      %v2752 = vpop.permute.xlu0 %2751
      %2753 = vrot.lane.b32.xlu0 %v2366, 16
      %v2754 = vpop.permute.xlu0 %2753
      %2755 = vrot.lane.b32.xlu0 %v2367, 16
      %v2756 = vpop.permute.xlu0 %2755
      %2757 = vrot.lane.b32.xlu0 %v2368, 16
      %v2758 = vpop.permute.xlu0 %2757
      %2759 = vrot.lane.b32.xlu0 %v2369, 16
      %v2760 = vpop.permute.xlu0 %2759
      %2761 = vrot.lane.b32.xlu0 %v2370, 16
      %v2762 = vpop.permute.xlu0 %2761
      %2763 = vrot.lane.b32.xlu0 %v2371, 16
      %v2764 = vpop.permute.xlu0 %2763
      %2765 = vrot.lane.b32.xlu0 %v2372, 16
      %v2766 = vpop.permute.xlu0 %2765
      %2767 = vrot.lane.b32.xlu0 %v2373, 16
      %v2768 = vpop.permute.xlu0 %2767
      %2769 = vrot.lane.b32.xlu0 %v2374, 16
      %v2770 = vpop.permute.xlu0 %2769
      %2771 = vrot.lane.b32.xlu0 %v2375, 16
      %v2772 = vpop.permute.xlu0 %2771
      %2773 = vrot.lane.b32.xlu0 %v2376, 16
      %v2774 = vpop.permute.xlu0 %2773
      %2775 = vrot.lane.b32.xlu0 %v2377, 16
      %v2776 = vpop.permute.xlu0 %2775
      %2777 = vrot.lane.b32.xlu0 %v2378, 16
      %v2778 = vpop.permute.xlu0 %2777
      %2779 = vrot.lane.b32.xlu0 %v2379, 16
      %v2780 = vpop.permute.xlu0 %2779
      %2781 = vrot.lane.b32.xlu0 %v2380, 16
      %v2782 = vpop.permute.xlu0 %2781
      %2783 = vrot.lane.b32.xlu0 %v2381, 16
      %v2784 = vpop.permute.xlu0 %2783
      %2785 = vrot.lane.b32.xlu0 %v2382, 16
      %v2786 = vpop.permute.xlu0 %2785
      %2787 = vrot.lane.b32.xlu0 %v2383, 16
      %v2788 = vpop.permute.xlu0 %2787
      %2789 = vrot.lane.b32.xlu0 %v2384, 16
      %v2790 = vpop.permute.xlu0 %2789
      %2791 = vrot.lane.b32.xlu0 %v2385, 16
      %v2792 = vpop.permute.xlu0 %2791
      %2793 = vrot.lane.b32.xlu0 %v2386, 16
      %v2794 = vpop.permute.xlu0 %2793
      %2795 = vrot.lane.b32.xlu0 %v2387, 16
      %v2796 = vpop.permute.xlu0 %2795
      %2797 = vrot.lane.b32.xlu0 %v2388, 16
      %v2798 = vpop.permute.xlu0 %2797
      %2799 = vrot.lane.b32.xlu0 %v2389, 16
      %v2800 = vpop.permute.xlu0 %2799
      %2801 = vrot.lane.b32.xlu0 %v2390, 16
      %v2802 = vpop.permute.xlu0 %2801
      %2803 = vrot.lane.b32.xlu0 %v2391, 16
      %v2804 = vpop.permute.xlu0 %2803
      %2805 = vrot.lane.b32.xlu0 %v2392, 16
      %v2806 = vpop.permute.xlu0 %2805
      %2807 = vrot.lane.b32.xlu0 %v2393, 16
      %v2808 = vpop.permute.xlu0 %2807
      %2809 = vrot.lane.b32.xlu0 %v2394, 16
      %v2810 = vpop.permute.xlu0 %2809
      %2811 = vrot.lane.b32.xlu0 %v2395, 16
      %v2812 = vpop.permute.xlu0 %2811
      %2877 = vrot.lane.b32.xlu0 %v2396, 24
      %v2878 = vpop.permute.xlu0 %2877
      %2879 = vrot.lane.b32.xlu0 %v2397, 24
      %v2880 = vpop.permute.xlu0 %2879
      %2881 = vrot.lane.b32.xlu0 %v2398, 24
      %v2882 = vpop.permute.xlu0 %2881
      %2883 = vrot.lane.b32.xlu0 %v2399, 24
      %v2884 = vpop.permute.xlu0 %2883
      %2885 = vrot.lane.b32.xlu0 %v2400, 24
      %v2886 = vpop.permute.xlu0 %2885
      %2887 = vrot.lane.b32.xlu0 %v2401, 24
      %v2888 = vpop.permute.xlu0 %2887
      %2889 = vrot.lane.b32.xlu0 %v2402, 24
      %v2890 = vpop.permute.xlu0 %2889
      %2891 = vrot.lane.b32.xlu0 %v2403, 24
      %v2892 = vpop.permute.xlu0 %2891
      %2893 = vrot.lane.b32.xlu0 %v2404, 24
      %v2894 = vpop.permute.xlu0 %2893
      %2895 = vrot.lane.b32.xlu0 %v2405, 24
      %v2896 = vpop.permute.xlu0 %2895
      %2897 = vrot.lane.b32.xlu0 %v2406, 24
      %v2898 = vpop.permute.xlu0 %2897
      %2899 = vrot.lane.b32.xlu0 %v2407, 24
      %v2900 = vpop.permute.xlu0 %2899
      %2901 = vrot.lane.b32.xlu0 %v2408, 24
      %v2902 = vpop.permute.xlu0 %2901
      %2903 = vrot.lane.b32.xlu0 %v2409, 24
      %v2904 = vpop.permute.xlu0 %2903
      %2905 = vrot.lane.b32.xlu0 %v2410, 24
      %v2906 = vpop.permute.xlu0 %2905
      %2907 = vrot.lane.b32.xlu0 %v2411, 24
      %v2908 = vpop.permute.xlu0 %2907
      %2909 = vrot.lane.b32.xlu0 %v2412, 24
      %v2910 = vpop.permute.xlu0 %2909
      %2911 = vrot.lane.b32.xlu0 %v2413, 24
      %v2912 = vpop.permute.xlu0 %2911
      %2913 = vrot.lane.b32.xlu0 %v2414, 24
      %v2914 = vpop.permute.xlu0 %2913
      %2915 = vrot.lane.b32.xlu0 %v2415, 24
      %v2916 = vpop.permute.xlu0 %2915
      %2917 = vrot.lane.b32.xlu0 %v2416, 24
      %v2918 = vpop.permute.xlu0 %2917
      %2919 = vrot.lane.b32.xlu0 %v2417, 24
      %v2920 = vpop.permute.xlu0 %2919
      %2921 = vrot.lane.b32.xlu0 %v2418, 24
      %v2922 = vpop.permute.xlu0 %2921
      %2923 = vrot.lane.b32.xlu0 %v2419, 24
      %v2924 = vpop.permute.xlu0 %2923
      %2925 = vrot.lane.b32.xlu0 %v2420, 24
      %v2926 = vpop.permute.xlu0 %2925
      %2927 = vrot.lane.b32.xlu0 %v2421, 24
      %v2928 = vpop.permute.xlu0 %2927
      %2929 = vrot.lane.b32.xlu0 %v2422, 24
      %v2930 = vpop.permute.xlu0 %2929
      %2931 = vrot.lane.b32.xlu0 %v2423, 24
      %v2932 = vpop.permute.xlu0 %2931
      %2933 = vrot.lane.b32.xlu0 %v2424, 24
      %v2934 = vpop.permute.xlu0 %2933
      %2935 = vrot.lane.b32.xlu0 %v2425, 24
      %v2936 = vpop.permute.xlu0 %2935
      %2937 = vrot.lane.b32.xlu0 %v2426, 24
      %v2938 = vpop.permute.xlu0 %2937
      %2939 = vrot.lane.b32.xlu0 %v2427, 24
      %v2940 = vpop.permute.xlu0 %2939
      %3005 = vrot.lane.b32.xlu0 %v2428, 32
      %v3006 = vpop.permute.xlu0 %3005
      %3007 = vrot.lane.b32.xlu0 %v2429, 32
      %v3008 = vpop.permute.xlu0 %3007
      %3009 = vrot.lane.b32.xlu0 %v2430, 32
      %v3010 = vpop.permute.xlu0 %3009
      %3011 = vrot.lane.b32.xlu0 %v2431, 32
      %v3012 = vpop.permute.xlu0 %3011
      %3013 = vrot.lane.b32.xlu0 %v2432, 32
      %v3014 = vpop.permute.xlu0 %3013
      %3015 = vrot.lane.b32.xlu0 %v2433, 32
      %v3016 = vpop.permute.xlu0 %3015
      %3017 = vrot.lane.b32.xlu0 %v2434, 32
      %v3018 = vpop.permute.xlu0 %3017
      %3019 = vrot.lane.b32.xlu0 %v2435, 32
      %v3020 = vpop.permute.xlu0 %3019
      %3021 = vrot.lane.b32.xlu0 %v2436, 32
      %v3022 = vpop.permute.xlu0 %3021
      %3023 = vrot.lane.b32.xlu0 %v2437, 32
      %v3024 = vpop.permute.xlu0 %3023
      %3025 = vrot.lane.b32.xlu0 %v2438, 32
      %v3026 = vpop.permute.xlu0 %3025
      %3027 = vrot.lane.b32.xlu0 %v2439, 32
      %v3028 = vpop.permute.xlu0 %3027
      %3029 = vrot.lane.b32.xlu0 %v2440, 32
      %v3030 = vpop.permute.xlu0 %3029
      %3031 = vrot.lane.b32.xlu0 %v2441, 32
      %v3032 = vpop.permute.xlu0 %3031
      %3033 = vrot.lane.b32.xlu0 %v2442, 32
      %v3034 = vpop.permute.xlu0 %3033
      %3035 = vrot.lane.b32.xlu0 %v2443, 32
      %v3036 = vpop.permute.xlu0 %3035
      %3037 = vrot.lane.b32.xlu0 %v2444, 32
      %v3038 = vpop.permute.xlu0 %3037
      %3039 = vrot.lane.b32.xlu0 %v2445, 32
      %v3040 = vpop.permute.xlu0 %3039
      %3041 = vrot.lane.b32.xlu0 %v2446, 32
      %v3042 = vpop.permute.xlu0 %3041
      %3043 = vrot.lane.b32.xlu0 %v2447, 32
      %v3044 = vpop.permute.xlu0 %3043
      %3045 = vrot.lane.b32.xlu0 %v2448, 32
      %v3046 = vpop.permute.xlu0 %3045
      %3047 = vrot.lane.b32.xlu0 %v2449, 32
      %v3048 = vpop.permute.xlu0 %3047
      %3049 = vrot.lane.b32.xlu0 %v2450, 32
      %v3050 = vpop.permute.xlu0 %3049
      %3051 = vrot.lane.b32.xlu0 %v2451, 32
      %v3052 = vpop.permute.xlu0 %3051
      %3053 = vrot.lane.b32.xlu0 %v2452, 32
      %v3054 = vpop.permute.xlu0 %3053
      %3055 = vrot.lane.b32.xlu0 %v2453, 32
      %v3056 = vpop.permute.xlu0 %3055
      %3057 = vrot.lane.b32.xlu0 %v2454, 32
      %v3058 = vpop.permute.xlu0 %3057
      %3059 = vrot.lane.b32.xlu0 %v2455, 32
      %v3060 = vpop.permute.xlu0 %3059
      %3061 = vrot.lane.b32.xlu0 %v2456, 32
      %v3062 = vpop.permute.xlu0 %3061
      %3063 = vrot.lane.b32.xlu0 %v2457, 32
      %v3064 = vpop.permute.xlu0 %3063
      %3065 = vrot.lane.b32.xlu0 %v2458, 32
      %v3066 = vpop.permute.xlu0 %3065
      %3067 = vrot.lane.b32.xlu0 %v2459, 32
      %v3068 = vpop.permute.xlu0 %3067
      %3133 = vrot.lane.b32.xlu0 %v2460, 40
      %v3134 = vpop.permute.xlu0 %3133
      %3135 = vrot.lane.b32.xlu0 %v2461, 40
      %v3136 = vpop.permute.xlu0 %3135
      %3137 = vrot.lane.b32.xlu0 %v2462, 40
      %v3138 = vpop.permute.xlu0 %3137
      %3139 = vrot.lane.b32.xlu0 %v2463, 40
      %v3140 = vpop.permute.xlu0 %3139
      %3141 = vrot.lane.b32.xlu0 %v2464, 40
      %v3142 = vpop.permute.xlu0 %3141
      %3143 = vrot.lane.b32.xlu0 %v2465, 40
      %v3144 = vpop.permute.xlu0 %3143
      %3145 = vrot.lane.b32.xlu0 %v2466, 40
      %v3146 = vpop.permute.xlu0 %3145
      %3147 = vrot.lane.b32.xlu0 %v2467, 40
      %v3148 = vpop.permute.xlu0 %3147
      %3149 = vrot.lane.b32.xlu0 %v2468, 40
      %v3150 = vpop.permute.xlu0 %3149
      %3151 = vrot.lane.b32.xlu0 %v2469, 40
      %v3152 = vpop.permute.xlu0 %3151
      %3153 = vrot.lane.b32.xlu0 %v2470, 40
      %v3154 = vpop.permute.xlu0 %3153
      %3155 = vrot.lane.b32.xlu0 %v2471, 40
      %v3156 = vpop.permute.xlu0 %3155
      %3157 = vrot.lane.b32.xlu0 %v2472, 40
      %v3158 = vpop.permute.xlu0 %3157
      %3159 = vrot.lane.b32.xlu0 %v2473, 40
      %v3160 = vpop.permute.xlu0 %3159
      %3161 = vrot.lane.b32.xlu0 %v2474, 40
      %v3162 = vpop.permute.xlu0 %3161
      %3163 = vrot.lane.b32.xlu0 %v2475, 40
      %v3164 = vpop.permute.xlu0 %3163
      %3165 = vrot.lane.b32.xlu0 %v2476, 40
      %v3166 = vpop.permute.xlu0 %3165
      %3167 = vrot.lane.b32.xlu0 %v2477, 40
      %v3168 = vpop.permute.xlu0 %3167
      %3169 = vrot.lane.b32.xlu0 %v2478, 40
      %v3170 = vpop.permute.xlu0 %3169
      %3171 = vrot.lane.b32.xlu0 %v2479, 40
      %v3172 = vpop.permute.xlu0 %3171
      %3173 = vrot.lane.b32.xlu0 %v2480, 40
      %v3174 = vpop.permute.xlu0 %3173
      %3175 = vrot.lane.b32.xlu0 %v2481, 40
      %v3176 = vpop.permute.xlu0 %3175
      %3177 = vrot.lane.b32.xlu0 %v2482, 40
      %v3178 = vpop.permute.xlu0 %3177
      %3179 = vrot.lane.b32.xlu0 %v2483, 40
      %v3180 = vpop.permute.xlu0 %3179
      %3181 = vrot.lane.b32.xlu0 %v2484, 40
      %v3182 = vpop.permute.xlu0 %3181
      %3183 = vrot.lane.b32.xlu0 %v2485, 40
      %v3184 = vpop.permute.xlu0 %3183
      %3185 = vrot.lane.b32.xlu0 %v2486, 40
      %v3186 = vpop.permute.xlu0 %3185
      %3187 = vrot.lane.b32.xlu0 %v2487, 40
      %v3188 = vpop.permute.xlu0 %3187
      %3189 = vrot.lane.b32.xlu0 %v2488, 40
      %v3190 = vpop.permute.xlu0 %3189
      %3191 = vrot.lane.b32.xlu0 %v2489, 40
      %v3192 = vpop.permute.xlu0 %3191
      %3193 = vrot.lane.b32.xlu0 %v2490, 40
      %v3194 = vpop.permute.xlu0 %3193
      %3195 = vrot.lane.b32.xlu0 %v2491, 40
      %v3196 = vpop.permute.xlu0 %3195
      %3261 = vrot.lane.b32.xlu0 %v2493, 48
      %v3262 = vpop.permute.xlu0 %3261
      %3263 = vrot.lane.b32.xlu0 %v2494, 48
      %v3264 = vpop.permute.xlu0 %3263
      %3265 = vrot.lane.b32.xlu0 %v2495, 48
      %v3266 = vpop.permute.xlu0 %3265
      %3267 = vrot.lane.b32.xlu0 %v2496, 48
      %v3268 = vpop.permute.xlu0 %3267
      %3269 = vrot.lane.b32.xlu0 %v2497, 48
      %v3270 = vpop.permute.xlu0 %3269
      %3271 = vrot.lane.b32.xlu0 %v2498, 48
      %v3272 = vpop.permute.xlu0 %3271
      %3273 = vrot.lane.b32.xlu0 %v2499, 48
      %v3274 = vpop.permute.xlu0 %3273
      %3275 = vrot.lane.b32.xlu0 %v2500, 48
      %v3276 = vpop.permute.xlu0 %3275
      %3277 = vrot.lane.b32.xlu0 %v2501, 48
      %v3278 = vpop.permute.xlu0 %3277
      %3279 = vrot.lane.b32.xlu0 %v2502, 48
      %v3280 = vpop.permute.xlu0 %3279
      %3281 = vrot.lane.b32.xlu0 %v2503, 48
      %v3282 = vpop.permute.xlu0 %3281
      %3283 = vrot.lane.b32.xlu0 %v2504, 48
      %v3284 = vpop.permute.xlu0 %3283
      %3285 = vrot.lane.b32.xlu0 %v2505, 48
      %v3286 = vpop.permute.xlu0 %3285
      %3287 = vrot.lane.b32.xlu0 %v2506, 48
      %v3288 = vpop.permute.xlu0 %3287
      %3289 = vrot.lane.b32.xlu0 %v2507, 48
      %v3290 = vpop.permute.xlu0 %3289
      %3291 = vrot.lane.b32.xlu0 %v2508, 48
      %v3292 = vpop.permute.xlu0 %3291
      %3293 = vrot.lane.b32.xlu0 %v2509, 48
      %v3294 = vpop.permute.xlu0 %3293
      %3295 = vrot.lane.b32.xlu0 %v2510, 48
      %v3296 = vpop.permute.xlu0 %3295
      %3297 = vrot.lane.b32.xlu0 %v2511, 48
      %v3298 = vpop.permute.xlu0 %3297
      %3299 = vrot.lane.b32.xlu0 %v2512, 48
      %v3300 = vpop.permute.xlu0 %3299
      %3301 = vrot.lane.b32.xlu0 %v2513, 48
      %v3302 = vpop.permute.xlu0 %3301
      %3303 = vrot.lane.b32.xlu0 %v2514, 48
      %v3304 = vpop.permute.xlu0 %3303
      %3305 = vrot.lane.b32.xlu0 %v2515, 48
      %v3306 = vpop.permute.xlu0 %3305
      %3307 = vrot.lane.b32.xlu0 %v2516, 48
      %v3308 = vpop.permute.xlu0 %3307
      %3309 = vrot.lane.b32.xlu0 %v2517, 48
      %v3310 = vpop.permute.xlu0 %3309
      %3311 = vrot.lane.b32.xlu0 %v2518, 48
      %v3312 = vpop.permute.xlu0 %3311
      %3313 = vrot.lane.b32.xlu0 %v2519, 48
      %v3314 = vpop.permute.xlu0 %3313
      %3315 = vrot.lane.b32.xlu0 %v2520, 48
      %v3316 = vpop.permute.xlu0 %3315
      %3317 = vrot.lane.b32.xlu0 %v2521, 48
      %v3318 = vpop.permute.xlu0 %3317
      %3319 = vrot.lane.b32.xlu0 %v2522, 48
      %v3320 = vpop.permute.xlu0 %3319
      %3321 = vrot.lane.b32.xlu0 %v2523, 48
      %v3322 = vpop.permute.xlu0 %3321
      %3323 = vrot.lane.b32.xlu0 %v2524, 48
      %v3324 = vpop.permute.xlu0 %3323
      %3389 = vrot.lane.b32.xlu0 %v2525, 56
      %v3390 = vpop.permute.xlu0 %3389
      %3391 = vrot.lane.b32.xlu0 %v2526, 56
      %v3392 = vpop.permute.xlu0 %3391
      %3393 = vrot.lane.b32.xlu0 %v2527, 56
      %v3394 = vpop.permute.xlu0 %3393
      %3395 = vrot.lane.b32.xlu0 %v2528, 56
      %v3396 = vpop.permute.xlu0 %3395
      %3397 = vrot.lane.b32.xlu0 %v2529, 56
      %v3398 = vpop.permute.xlu0 %3397
      %3399 = vrot.lane.b32.xlu0 %v2530, 56
      %v3400 = vpop.permute.xlu0 %3399
      %3401 = vrot.lane.b32.xlu0 %v2531, 56
      %v3402 = vpop.permute.xlu0 %3401
      %3403 = vrot.lane.b32.xlu0 %v2532, 56
      %v3404 = vpop.permute.xlu0 %3403
      %3405 = vrot.lane.b32.xlu0 %v2533, 56
      %v3406 = vpop.permute.xlu0 %3405
      %3407 = vrot.lane.b32.xlu0 %v2534, 56
      %v3408 = vpop.permute.xlu0 %3407
      %3409 = vrot.lane.b32.xlu0 %v2535, 56
      %v3410 = vpop.permute.xlu0 %3409
      %3411 = vrot.lane.b32.xlu0 %v2536, 56
      %v3412 = vpop.permute.xlu0 %3411
      %3413 = vrot.lane.b32.xlu0 %v2537, 56
      %v3414 = vpop.permute.xlu0 %3413
      %3415 = vrot.lane.b32.xlu0 %v2538, 56
      %v3416 = vpop.permute.xlu0 %3415
      %3417 = vrot.lane.b32.xlu0 %v2539, 56
      %v3418 = vpop.permute.xlu0 %3417
      %3419 = vrot.lane.b32.xlu0 %v2540, 56
      %v3420 = vpop.permute.xlu0 %3419
      %3421 = vrot.lane.b32.xlu0 %v2541, 56
      %v3422 = vpop.permute.xlu0 %3421
      %3423 = vrot.lane.b32.xlu0 %v2542, 56
      %v3424 = vpop.permute.xlu0 %3423
      %3425 = vrot.lane.b32.xlu0 %v2543, 56
      %v3426 = vpop.permute.xlu0 %3425
      %3427 = vrot.lane.b32.xlu0 %v2544, 56
      %v3428 = vpop.permute.xlu0 %3427
      %3429 = vrot.lane.b32.xlu0 %v2545, 56
      %v3430 = vpop.permute.xlu0 %3429
      %3431 = vrot.lane.b32.xlu0 %v2546, 56
      %v3432 = vpop.permute.xlu0 %3431
      %3433 = vrot.lane.b32.xlu0 %v2547, 56
      %v3434 = vpop.permute.xlu0 %3433
      %3435 = vrot.lane.b32.xlu0 %v2548, 56
      %v3436 = vpop.permute.xlu0 %3435
      %3437 = vrot.lane.b32.xlu0 %v2549, 56
      %v3438 = vpop.permute.xlu0 %3437
      %3439 = vrot.lane.b32.xlu0 %v2550, 56
      %v3440 = vpop.permute.xlu0 %3439
      %3441 = vrot.lane.b32.xlu0 %v2551, 56
      %v3442 = vpop.permute.xlu0 %3441
      %3443 = vrot.lane.b32.xlu0 %v2552, 56
      %v3444 = vpop.permute.xlu0 %3443
      %3445 = vrot.lane.b32.xlu0 %v2553, 56
      %v3446 = vpop.permute.xlu0 %3445
      %3447 = vrot.lane.b32.xlu0 %v2554, 56
      %v3448 = vpop.permute.xlu0 %3447
      %3449 = vrot.lane.b32.xlu0 %v2555, 56
      %v3450 = vpop.permute.xlu0 %3449
      %3451 = vrot.lane.b32.xlu0 %v2556, 56
      %v3452 = vpop.permute.xlu0 %3451
      %3517 = vrot.lane.b32.xlu0 %v2557, 64
      %v3518 = vpop.permute.xlu0 %3517
      %3519 = vrot.lane.b32.xlu0 %v2558, 64
      %v3520 = vpop.permute.xlu0 %3519
      %3521 = vrot.lane.b32.xlu0 %v2559, 64
      %v3522 = vpop.permute.xlu0 %3521
      %3523 = vrot.lane.b32.xlu0 %v2560, 64
      %v3524 = vpop.permute.xlu0 %3523
      %3525 = vrot.lane.b32.xlu0 %v2561, 64
      %v3526 = vpop.permute.xlu0 %3525
      %3527 = vrot.lane.b32.xlu0 %v2562, 64
      %v3528 = vpop.permute.xlu0 %3527
      %3529 = vrot.lane.b32.xlu0 %v2563, 64
      %v3530 = vpop.permute.xlu0 %3529
      %3531 = vrot.lane.b32.xlu0 %v2564, 64
      %v3532 = vpop.permute.xlu0 %3531
      %3533 = vrot.lane.b32.xlu0 %v2565, 64
      %v3534 = vpop.permute.xlu0 %3533
      %3535 = vrot.lane.b32.xlu0 %v2566, 64
      %v3536 = vpop.permute.xlu0 %3535
      %3537 = vrot.lane.b32.xlu0 %v2567, 64
      %v3538 = vpop.permute.xlu0 %3537
      %3539 = vrot.lane.b32.xlu0 %v2568, 64
      %v3540 = vpop.permute.xlu0 %3539
      %3541 = vrot.lane.b32.xlu0 %v2569, 64
      %v3542 = vpop.permute.xlu0 %3541
      %3543 = vrot.lane.b32.xlu0 %v2570, 64
      %v3544 = vpop.permute.xlu0 %3543
      %3545 = vrot.lane.b32.xlu0 %v2571, 64
      %v3546 = vpop.permute.xlu0 %3545
      %3547 = vrot.lane.b32.xlu0 %v2572, 64
      %v3548 = vpop.permute.xlu0 %3547
      %3549 = vrot.lane.b32.xlu0 %v2573, 64
      %v3550 = vpop.permute.xlu0 %3549
      %3551 = vrot.lane.b32.xlu0 %v2574, 64
      %v3552 = vpop.permute.xlu0 %3551
      %3553 = vrot.lane.b32.xlu0 %v2575, 64
      %v3554 = vpop.permute.xlu0 %3553
      %3555 = vrot.lane.b32.xlu0 %v2576, 64
      %v3556 = vpop.permute.xlu0 %3555
      %3557 = vrot.lane.b32.xlu0 %v2577, 64
      %v3558 = vpop.permute.xlu0 %3557
      %3559 = vrot.lane.b32.xlu0 %v2578, 64
      %v3560 = vpop.permute.xlu0 %3559
      %3561 = vrot.lane.b32.xlu0 %v2579, 64
      %v3562 = vpop.permute.xlu0 %3561
      %3563 = vrot.lane.b32.xlu0 %v2580, 64
      %v3564 = vpop.permute.xlu0 %3563
      %3565 = vrot.lane.b32.xlu0 %v2581, 64
      %v3566 = vpop.permute.xlu0 %3565
      %3567 = vrot.lane.b32.xlu0 %v2582, 64
      %v3568 = vpop.permute.xlu0 %3567
      %3569 = vrot.lane.b32.xlu0 %v2583, 64
      %v3570 = vpop.permute.xlu0 %3569
      %3571 = vrot.lane.b32.xlu0 %v2584, 64
      %v3572 = vpop.permute.xlu0 %3571
      %3573 = vrot.lane.b32.xlu0 %v2585, 64
      %v3574 = vpop.permute.xlu0 %3573
      %3575 = vrot.lane.b32.xlu0 %v2586, 64
      %v3576 = vpop.permute.xlu0 %3575
      %3577 = vrot.lane.b32.xlu0 %v2587, 64
      %v3578 = vpop.permute.xlu0 %3577
      %3579 = vrot.lane.b32.xlu0 %v2588, 64
      %v3580 = vpop.permute.xlu0 %3579
      %v3613 = vsel %vm1692, %v2300, %v2622
      %v3614 = vsel %vm1692, %v2301, %v2624
      %v3615 = vsel %vm1692, %v2302, %v2626
      %v3616 = vsel %vm1692, %v2303, %v2628
      %v3617 = vsel %vm1692, %v2304, %v2630
      %v3618 = vsel %vm1692, %v2305, %v2632
      %v3619 = vsel %vm1692, %v2306, %v2634
      %v3620 = vsel %vm1692, %v2307, %v2636
      %v3621 = vsel %vm1692, %v2308, %v2638
      %v3622 = vsel %vm1692, %v2309, %v2640
      %v3623 = vsel %vm1692, %v2310, %v2642
      %v3624 = vsel %vm1692, %v2311, %v2644
      %v3625 = vsel %vm1692, %v2312, %v2646
      %v3626 = vsel %vm1692, %v2313, %v2648
      %v3627 = vsel %vm1692, %v2314, %v2650
      %v3628 = vsel %vm1692, %v2315, %v2652
      %v3629 = vsel %vm1692, %v2316, %v2654
      %v3630 = vsel %vm1692, %v2317, %v2656
      %v3631 = vsel %vm1692, %v2318, %v2658
      %v3632 = vsel %vm1692, %v2319, %v2660
      %v3633 = vsel %vm1692, %v2320, %v2662
      %v3634 = vsel %vm1692, %v2321, %v2664
      %v3635 = vsel %vm1692, %v2322, %v2666
      %v3636 = vsel %vm1692, %v2323, %v2668
      %v3637 = vsel %vm1692, %v2324, %v2670
      %v3638 = vsel %vm1692, %v2325, %v2672
      %v3639 = vsel %vm1692, %v2326, %v2674
      %v3640 = vsel %vm1692, %v2327, %v2676
      %v3641 = vsel %vm1692, %v2328, %v2678
      %v3642 = vsel %vm1692, %v2329, %v2680
      %v3643 = vsel %vm1692, %v2330, %v2682
      %v3644 = vsel %vm1692, %v2331, %v2684
      %v3645 = vsel %vm1758, %v3613, %v2750
      %v3646 = vsel %vm1758, %v3614, %v2752
      %v3647 = vsel %vm1758, %v3615, %v2754
      %v3648 = vsel %vm1758, %v3616, %v2756
      %v3649 = vsel %vm1758, %v3617, %v2758
      %v3650 = vsel %vm1758, %v3618, %v2760
      %v3651 = vsel %vm1758, %v3619, %v2762
      %v3652 = vsel %vm1758, %v3620, %v2764
      %v3653 = vsel %vm1758, %v3621, %v2766
      %v3654 = vsel %vm1758, %v3622, %v2768
      %v3655 = vsel %vm1758, %v3623, %v2770
      %v3656 = vsel %vm1758, %v3624, %v2772
      %v3657 = vsel %vm1758, %v3625, %v2774
      %v3658 = vsel %vm1758, %v3626, %v2776
      %v3659 = vsel %vm1758, %v3627, %v2778
      %v3660 = vsel %vm1758, %v3628, %v2780
      %v3661 = vsel %vm1758, %v3629, %v2782
      %v3662 = vsel %vm1758, %v3630, %v2784
      %v3663 = vsel %vm1758, %v3631, %v2786
      %v3664 = vsel %vm1758, %v3632, %v2788
      %v3665 = vsel %vm1758, %v3633, %v2790
      %v3666 = vsel %vm1758, %v3634, %v2792
      %v3667 = vsel %vm1758, %v3635, %v2794
      %v3668 = vsel %vm1758, %v3636, %v2796
      %v3669 = vsel %vm1758, %v3637, %v2798
      %v3670 = vsel %vm1758, %v3638, %v2800
      %v3671 = vsel %vm1758, %v3639, %v2802
      %v3672 = vsel %vm1758, %v3640, %v2804
      %v3673 = vsel %vm1758, %v3641, %v2806
      %v3674 = vsel %vm1758, %v3642, %v2808
      %v3675 = vsel %vm1758, %v3643, %v2810
      %v3676 = vsel %vm1758, %v3644, %v2812
      %v3677 = vsel %vm1824, %v3645, %v2878
      %v3678 = vsel %vm1824, %v3646, %v2880
      %v3679 = vsel %vm1824, %v3647, %v2882
      %v3680 = vsel %vm1824, %v3648, %v2884
      %v3681 = vsel %vm1824, %v3649, %v2886
      %v3682 = vsel %vm1824, %v3650, %v2888
      %v3683 = vsel %vm1824, %v3651, %v2890
      %v3684 = vsel %vm1824, %v3652, %v2892
      %v3685 = vsel %vm1824, %v3653, %v2894
      %v3686 = vsel %vm1824, %v3654, %v2896
      %v3687 = vsel %vm1824, %v3655, %v2898
      %v3688 = vsel %vm1824, %v3656, %v2900
      %v3689 = vsel %vm1824, %v3657, %v2902
      %v3690 = vsel %vm1824, %v3658, %v2904
      %v3691 = vsel %vm1824, %v3659, %v2906
      %v3692 = vsel %vm1824, %v3660, %v2908
      %v3693 = vsel %vm1824, %v3661, %v2910
      %v3694 = vsel %vm1824, %v3662, %v2912
      %v3695 = vsel %vm1824, %v3663, %v2914
      %v3696 = vsel %vm1824, %v3664, %v2916
      %v3697 = vsel %vm1824, %v3665, %v2918
      %v3698 = vsel %vm1824, %v3666, %v2920
      %v3699 = vsel %vm1824, %v3667, %v2922
      %v3700 = vsel %vm1824, %v3668, %v2924
      %v3701 = vsel %vm1824, %v3669, %v2926
      %v3702 = vsel %vm1824, %v3670, %v2928
      %v3703 = vsel %vm1824, %v3671, %v2930
      %v3704 = vsel %vm1824, %v3672, %v2932
      %v3705 = vsel %vm1824, %v3673, %v2934
      %v3706 = vsel %vm1824, %v3674, %v2936
      %v3707 = vsel %vm1824, %v3675, %v2938
      %v3708 = vsel %vm1824, %v3676, %v2940
      %v3709 = vsel %vm1890, %v3677, %v3006
      %v3710 = vsel %vm1890, %v3678, %v3008
      %v3711 = vsel %vm1890, %v3679, %v3010
      %v3712 = vsel %vm1890, %v3680, %v3012
      %v3713 = vsel %vm1890, %v3681, %v3014
      %v3714 = vsel %vm1890, %v3682, %v3016
      %v3715 = vsel %vm1890, %v3683, %v3018
      %v3716 = vsel %vm1890, %v3684, %v3020
      %v3717 = vsel %vm1890, %v3685, %v3022
      %v3718 = vsel %vm1890, %v3686, %v3024
      %v3719 = vsel %vm1890, %v3687, %v3026
      %v3720 = vsel %vm1890, %v3688, %v3028
      %v3721 = vsel %vm1890, %v3689, %v3030
      %v3722 = vsel %vm1890, %v3690, %v3032
      %v3723 = vsel %vm1890, %v3691, %v3034
      %v3724 = vsel %vm1890, %v3692, %v3036
      %v3725 = vsel %vm1890, %v3693, %v3038
      %v3726 = vsel %vm1890, %v3694, %v3040
      %v3727 = vsel %vm1890, %v3695, %v3042
      %v3728 = vsel %vm1890, %v3696, %v3044
      %v3729 = vsel %vm1890, %v3697, %v3046
      %v3730 = vsel %vm1890, %v3698, %v3048
      %v3731 = vsel %vm1890, %v3699, %v3050
      %v3732 = vsel %vm1890, %v3700, %v3052
      %v3733 = vsel %vm1890, %v3701, %v3054
      %v3734 = vsel %vm1890, %v3702, %v3056
      %v3735 = vsel %vm1890, %v3703, %v3058
      %v3736 = vsel %vm1890, %v3704, %v3060
      %v3737 = vsel %vm1890, %v3705, %v3062
      %v3738 = vsel %vm1890, %v3706, %v3064
      %v3739 = vsel %vm1890, %v3707, %v3066
      %v3740 = vsel %vm1890, %v3708, %v3068
      %vm3741 = vcmask 326656
      %v3742 = vsel %vm3741, %v3709, %v3134
      %v3743 = vsel %vm3741, %v3710, %v3136
      %v3744 = vsel %vm3741, %v3711, %v3138
      %v3745 = vsel %vm3741, %v3712, %v3140
      %v3746 = vsel %vm3741, %v3713, %v3142
      %v3747 = vsel %vm3741, %v3714, %v3144
      %v3748 = vsel %vm3741, %v3715, %v3146
      %v3749 = vsel %vm3741, %v3716, %v3148
      %v3750 = vsel %vm3741, %v3717, %v3150
      %v3751 = vsel %vm3741, %v3718, %v3152
      %v3752 = vsel %vm3741, %v3719, %v3154
      %v3753 = vsel %vm3741, %v3720, %v3156
      %v3754 = vsel %vm3741, %v3721, %v3158
      %v3755 = vsel %vm3741, %v3722, %v3160
      %v3756 = vsel %vm3741, %v3723, %v3162
      %v3757 = vsel %vm3741, %v3724, %v3164
      %v3758 = vsel %vm3741, %v3725, %v3166
      %v3759 = vsel %vm3741, %v3726, %v3168
      %v3760 = vsel %vm3741, %v3727, %v3170
      %v3761 = vsel %vm3741, %v3728, %v3172
      %v3762 = vsel %vm3741, %v3729, %v3174
      %v3763 = vsel %vm3741, %v3730, %v3176
      %v3764 = vsel %vm3741, %v3731, %v3178
      %v3765 = vsel %vm3741, %v3732, %v3180
      %v3766 = vsel %vm3741, %v3733, %v3182
      %v3767 = vsel %vm3741, %v3734, %v3184
      %v3768 = vsel %vm3741, %v3735, %v3186
      %v3769 = vsel %vm3741, %v3736, %v3188
      %v3770 = vsel %vm3741, %v3737, %v3190
      %v3771 = vsel %vm3741, %v3738, %v3192
      %v3772 = vsel %vm3741, %v3739, %v3194
      %v3773 = vsel %vm3741, %v3740, %v3196
      %vm3774 = vcmask 392192
      %v3775 = vsel %vm3774, %v3742, %v3262
      %v3776 = vsel %vm3774, %v3743, %v3264
      %v3777 = vsel %vm3774, %v3744, %v3266
      %v3778 = vsel %vm3774, %v3745, %v3268
      %v3779 = vsel %vm3774, %v3746, %v3270
      %v3780 = vsel %vm3774, %v3747, %v3272
      %v3781 = vsel %vm3774, %v3748, %v3274
      %v3782 = vsel %vm3774, %v3749, %v3276
      %v3783 = vsel %vm3774, %v3750, %v3278
      %v3784 = vsel %vm3774, %v3751, %v3280
      %v3785 = vsel %vm3774, %v3752, %v3282
      %v3786 = vsel %vm3774, %v3753, %v3284
      %v3787 = vsel %vm3774, %v3754, %v3286
      %v3788 = vsel %vm3774, %v3755, %v3288
      %v3789 = vsel %vm3774, %v3756, %v3290
      %v3790 = vsel %vm3774, %v3757, %v3292
      %v3791 = vsel %vm3774, %v3758, %v3294
      %v3792 = vsel %vm3774, %v3759, %v3296
      %v3793 = vsel %vm3774, %v3760, %v3298
      %v3794 = vsel %vm3774, %v3761, %v3300
      %v3795 = vsel %vm3774, %v3762, %v3302
      %v3796 = vsel %vm3774, %v3763, %v3304
      %v3797 = vsel %vm3774, %v3764, %v3306
      %v3798 = vsel %vm3774, %v3765, %v3308
      %v3799 = vsel %vm3774, %v3766, %v3310
      %v3800 = vsel %vm3774, %v3767, %v3312
      %v3801 = vsel %vm3774, %v3768, %v3314
      %v3802 = vsel %vm3774, %v3769, %v3316
      %v3803 = vsel %vm3774, %v3770, %v3318
      %v3804 = vsel %vm3774, %v3771, %v3320
      %v3805 = vsel %vm3774, %v3772, %v3322
      %v3806 = vsel %vm3774, %v3773, %v3324
      %vm3807 = vcmask 457728
      %v3808 = vsel %vm3807, %v3775, %v3390
      %v3809 = vsel %vm3807, %v3776, %v3392
      %v3810 = vsel %vm3807, %v3777, %v3394
      %v3811 = vsel %vm3807, %v3778, %v3396
      %v3812 = vsel %vm3807, %v3779, %v3398
      %v3813 = vsel %vm3807, %v3780, %v3400
      %v3814 = vsel %vm3807, %v3781, %v3402
      %v3815 = vsel %vm3807, %v3782, %v3404
      %v3816 = vsel %vm3807, %v3783, %v3406
      %v3817 = vsel %vm3807, %v3784, %v3408
      %v3818 = vsel %vm3807, %v3785, %v3410
      %v3819 = vsel %vm3807, %v3786, %v3412
      %v3820 = vsel %vm3807, %v3787, %v3414
      %v3821 = vsel %vm3807, %v3788, %v3416
      %v3822 = vsel %vm3807, %v3789, %v3418
      %v3823 = vsel %vm3807, %v3790, %v3420
      %v3824 = vsel %vm3807, %v3791, %v3422
      %v3825 = vsel %vm3807, %v3792, %v3424
      %v3826 = vsel %vm3807, %v3793, %v3426
      %v3827 = vsel %vm3807, %v3794, %v3428
      %v3828 = vsel %vm3807, %v3795, %v3430
      %v3829 = vsel %vm3807, %v3796, %v3432
      %v3830 = vsel %vm3807, %v3797, %v3434
      %v3831 = vsel %vm3807, %v3798, %v3436
      %v3832 = vsel %vm3807, %v3799, %v3438
      %v3833 = vsel %vm3807, %v3800, %v3440
      %v3834 = vsel %vm3807, %v3801, %v3442
      %v3835 = vsel %vm3807, %v3802, %v3444
      %v3836 = vsel %vm3807, %v3803, %v3446
      %v3837 = vsel %vm3807, %v3804, %v3448
      %v3838 = vsel %vm3807, %v3805, %v3450
      %v3839 = vsel %vm3807, %v3806, %v3452
      %vm3840 = vcmask 523264
      %v3841 = vsel %vm3840, %v3808, %v3518
      %v3842 = vsel %vm3840, %v3809, %v3520
      %v3843 = vsel %vm3840, %v3810, %v3522
      %v3844 = vsel %vm3840, %v3811, %v3524
      %v3845 = vsel %vm3840, %v3812, %v3526
      %v3846 = vsel %vm3840, %v3813, %v3528
      %v3847 = vsel %vm3840, %v3814, %v3530
      %v3848 = vsel %vm3840, %v3815, %v3532
      %v3849 = vsel %vm3840, %v3816, %v3534
      %v3850 = vsel %vm3840, %v3817, %v3536
      %v3851 = vsel %vm3840, %v3818, %v3538
      %v3852 = vsel %vm3840, %v3819, %v3540
      %v3853 = vsel %vm3840, %v3820, %v3542
      %v3854 = vsel %vm3840, %v3821, %v3544
      %v3855 = vsel %vm3840, %v3822, %v3546
      %v3856 = vsel %vm3840, %v3823, %v3548
      %v3857 = vsel %vm3840, %v3824, %v3550
      %v3858 = vsel %vm3840, %v3825, %v3552
      %v3859 = vsel %vm3840, %v3826, %v3554
      %v3860 = vsel %vm3840, %v3827, %v3556
      %v3861 = vsel %vm3840, %v3828, %v3558
      %v3862 = vsel %vm3840, %v3829, %v3560
      %v3863 = vsel %vm3840, %v3830, %v3562
      %v3864 = vsel %vm3840, %v3831, %v3564
      %v3865 = vsel %vm3840, %v3832, %v3566
      %v3866 = vsel %vm3840, %v3833, %v3568
      %v3867 = vsel %vm3840, %v3834, %v3570
      %v3868 = vsel %vm3840, %v3835, %v3572
      %v3869 = vsel %vm3840, %v3836, %v3574
      %v3870 = vsel %vm3840, %v3837, %v3576
      %v3871 = vsel %vm3840, %v3838, %v3578
      %v3872 = vsel %vm3840, %v3839, %v3580
      %v3873 = vpack.c.bf16 %v3842, %v3841
      %v3874 = vpack.c.bf16 %v3844, %v3843
      %v3875 = vpack.c.bf16 %v3846, %v3845
      %v3876 = vpack.c.bf16 %v3848, %v3847
      %v3877 = vpack.c.bf16 %v3850, %v3849
      %v3878 = vpack.c.bf16 %v3852, %v3851
      %v3879 = vpack.c.bf16 %v3854, %v3853
      %v3880 = vpack.c.bf16 %v3856, %v3855
      %v3881 = vpack.c.bf16 %v3858, %v3857
      %v3882 = vpack.c.bf16 %v3860, %v3859
      %v3883 = vpack.c.bf16 %v3862, %v3861
      %v3884 = vpack.c.bf16 %v3864, %v3863
      %v3885 = vpack.c.bf16 %v3866, %v3865
      %v3886 = vpack.c.bf16 %v3868, %v3867
      %v3887 = vpack.c.bf16 %v3870, %v3869
      %v3888 = vpack.c.bf16 %v3872, %v3871
      %v3889 = vld [vmem:[%s3] sm:$0xf]
      %v3890 = vld [vmem:[%s3 + $0x4] sm:$0xf]
      %v3891 = vld [vmem:[%s3 + $0x8] sm:$0xf]
      %v3892 = vld [vmem:[%s3 + $0xc] sm:$0xf]
      %v3893 = vld [vmem:[%s3 + $0x10] sm:$0xf]
      %v3894 = vld [vmem:[%s3 + $0x14] sm:$0xf]
      %v3895 = vld [vmem:[%s3 + $0x18] sm:$0xf]
      %v3896 = vld [vmem:[%s3 + $0x1c] sm:$0xf]
      %v3897 = vld [vmem:[%s3 + $0x20] sm:$0xf]
      %v3898 = vld [vmem:[%s4] sm:$0x1]
      %v3900 = vlaneseq
      %v3901 = vshrl.u32 %v3900, 7
      %v3902 = vsub.s32 0, %v3901
      %v3903 = vrot.slane %v3898, %v3902
      %v3914 = vunpack.c.l.b16 %v3889
      %v3915 = vunpack.c.l.b16 %v3890
      %v3916 = vunpack.c.l.b16 %v3891
      %v3917 = vunpack.c.l.b16 %v3892
      %v3918 = vunpack.c.l.b16 %v3893
      %v3919 = vunpack.c.l.b16 %v3894
      %v3920 = vunpack.c.l.b16 %v3895
      %v3921 = vunpack.c.l.b16 %v3896
      %v3922 = vunpack.c.l.b16 %v3897
      %v3923 = vpack.c.b16 %v3915, %v3914
      %v3924 = vpack.c.b16 %v3917, %v3916
      %v3925 = vpack.c.b16 %v3919, %v3918
      %v3926 = vpack.c.b16 %v3921, %v3920
      %v3927 = vpack.c.b16 %v3922, %v3922
      %vm3932 = vcmask 588800
      %v3934 = vsel %vm3932, %v3873, 0
      %v3937 = vsel %vm3932, %v3874, 0
      %v3940 = vsel %vm3932, %v3875, 0
      %v3943 = vsel %vm3932, %v3876, 0
      %v3946 = vsel %vm3932, %v3877, 0
      %v3949 = vsel %vm3932, %v3878, 0
      %v3952 = vsel %vm3932, %v3879, 0
      %v3955 = vsel %vm3932, %v3880, 0
      %v3958 = vsel %vm3932, %v3881, 0
      %v3961 = vsel %vm3932, %v3882, 0
      %v3964 = vsel %vm3932, %v3883, 0
      %v3967 = vsel %vm3932, %v3884, 0
      %v3970 = vsel %vm3932, %v3885, 0
      %v3973 = vsel %vm3932, %v3886, 0
      %v3976 = vsel %vm3932, %v3887, 0
      %v3979 = vsel %vm3932, %v3888, 0
      %vm3981 = vcmask 1043456
      %v3983 = vsel %vm3981, %v3927, 0
      %3985 = vmatprep.subr.bf16.mxu0 0
      %3986 = vmatpush1.bf16.msra.mxu0 %v3923
      %3987 = vmatprep.subr.bf16.mxu0 0
      %3988 = vmatpush1.bf16.msra.mxu0 %v3924
      %3989 = vmatprep.subr.bf16.mxu0 0
      %3990 = vmatpush1.bf16.msra.mxu0 %v3925
      %3991 = vmatprep.subr.bf16.mxu0 0
      %3992 = vmatpush1.bf16.msra.mxu0 %v3926
      %3993 = vmatprep.subr.bf16.mxu0 0
      %3994 = vmatpush1.bf16.msra.mxu0 %v3983
      %3995 = vmatprep.subr.bf16.mxu0 0
      %3996 = vmatpush1.bf16.msra.mxu0 0
      %3997 = vmatprep.subr.bf16.mxu0 0
      %3998 = vmatpush1.bf16.msra.mxu0 0
      %3999 = vmatprep.subr.bf16.mxu0 0
      %4000 = vmatpush1.bf16.msra.mxu0 0
      %4001 = vmatprep.subr.bf16.mxu0 0
      %4002 = vmatpush1.bf16.msra.mxu0 0
      %4003 = vmatprep.subr.bf16.mxu0 0
      %4004 = vmatpush1.bf16.msra.mxu0 0
      %4005 = vmatprep.subr.bf16.mxu0 0
      %4006 = vmatpush1.bf16.msra.mxu0 0
      %4007 = vmatprep.subr.bf16.mxu0 0
      %4008 = vmatpush1.bf16.msra.mxu0 0
      %4009 = vmatprep.subr.bf16.mxu0 0
      %4010 = vmatpush1.bf16.msra.mxu0 0
      %4011 = vmatprep.subr.bf16.mxu0 0
      %4012 = vmatpush1.bf16.msra.mxu0 0
      %4013 = vmatprep.subr.bf16.mxu0 0
      %4014 = vmatpush1.bf16.msra.mxu0 0
      %4015 = vmatprep.subr.bf16.mxu0 0
      %4016 = vmatpush1.bf16.msra.mxu0 0
      %4017 = vmatprep.mubr.bf16.mxu0 0
      %4018 = vmatmul.mubr.bf16.gmra.mrb[0].mxu0 %v3934
      %v4019 = vpop.f32.mrb[0].mxu0
      %v4020 = vadd.f32 %v3903, %v4019
      %v4021 = vpop.f32.mrb[0].mxu0
      %v4022 = vpop.f32.mrb[0].mxu0
      %v4023 = vadd.f32 %v3903, %v4022
      %v4024 = vpop.f32.mrb[0].mxu0
      %4025 = vmatprep.mubr.bf16.mxu0 0
      %4026 = vmatmul.mubr.bf16.gmra.mrb[0].mxu0 %v3937
      %v4027 = vpop.f32.mrb[0].mxu0
      %v4028 = vadd.f32 %v3903, %v4027
      %v4029 = vpop.f32.mrb[0].mxu0
      %v4030 = vpop.f32.mrb[0].mxu0
      %v4031 = vadd.f32 %v3903, %v4030
      %v4032 = vpop.f32.mrb[0].mxu0
      %4033 = vmatprep.mubr.bf16.mxu0 0
      %4034 = vmatmul.mubr.bf16.gmra.mrb[0].mxu0 %v3940
      %v4035 = vpop.f32.mrb[0].mxu0
      %v4036 = vadd.f32 %v3903, %v4035
      %v4037 = vpop.f32.mrb[0].mxu0
      %v4038 = vpop.f32.mrb[0].mxu0
      %v4039 = vadd.f32 %v3903, %v4038
      %v4040 = vpop.f32.mrb[0].mxu0
      %4041 = vmatprep.mubr.bf16.mxu0 0
      %4042 = vmatmul.mubr.bf16.gmra.mrb[0].mxu0 %v3943
      %v4043 = vpop.f32.mrb[0].mxu0
      %v4044 = vadd.f32 %v3903, %v4043
      %v4045 = vpop.f32.mrb[0].mxu0
      %v4046 = vpop.f32.mrb[0].mxu0
      %v4047 = vadd.f32 %v3903, %v4046
      %v4048 = vpop.f32.mrb[0].mxu0
      %4049 = vmatprep.mubr.bf16.mxu0 0
      %4050 = vmatmul.mubr.bf16.gmra.mrb[0].mxu0 %v3946
      %v4051 = vpop.f32.mrb[0].mxu0
      %v4052 = vadd.f32 %v3903, %v4051
      %v4053 = vpop.f32.mrb[0].mxu0
      %v4054 = vpop.f32.mrb[0].mxu0
      %v4055 = vadd.f32 %v3903, %v4054
      %v4056 = vpop.f32.mrb[0].mxu0
      %4057 = vmatprep.mubr.bf16.mxu0 0
      %4058 = vmatmul.mubr.bf16.gmra.mrb[0].mxu0 %v3949
      %v4059 = vpop.f32.mrb[0].mxu0
      %v4060 = vadd.f32 %v3903, %v4059
      %v4061 = vpop.f32.mrb[0].mxu0
      %v4062 = vpop.f32.mrb[0].mxu0
      %v4063 = vadd.f32 %v3903, %v4062
      %v4064 = vpop.f32.mrb[0].mxu0
      %4065 = vmatprep.mubr.bf16.mxu0 0
      %4066 = vmatmul.mubr.bf16.gmra.mrb[0].mxu0 %v3952
      %v4067 = vpop.f32.mrb[0].mxu0
      %v4068 = vadd.f32 %v3903, %v4067
      %v4069 = vpop.f32.mrb[0].mxu0
      %v4070 = vpop.f32.mrb[0].mxu0
      %v4071 = vadd.f32 %v3903, %v4070
      %v4072 = vpop.f32.mrb[0].mxu0
      %4073 = vmatprep.mubr.bf16.mxu0 0
      %4074 = vmatmul.mubr.bf16.gmra.mrb[0].mxu0 %v3955
      %v4075 = vpop.f32.mrb[0].mxu0
      %v4076 = vadd.f32 %v3903, %v4075
      %v4077 = vpop.f32.mrb[0].mxu0
      %v4078 = vpop.f32.mrb[0].mxu0
      %v4079 = vadd.f32 %v3903, %v4078
      %v4080 = vpop.f32.mrb[0].mxu0
      %4081 = vmatprep.mubr.bf16.mxu0 0
      %4082 = vmatmul.mubr.bf16.gmra.mrb[0].mxu0 %v3958
      %v4083 = vpop.f32.mrb[0].mxu0
      %v4084 = vadd.f32 %v3903, %v4083
      %v4085 = vpop.f32.mrb[0].mxu0
      %v4086 = vpop.f32.mrb[0].mxu0
      %v4087 = vadd.f32 %v3903, %v4086
      %v4088 = vpop.f32.mrb[0].mxu0
      %4089 = vmatprep.mubr.bf16.mxu0 0
      %4090 = vmatmul.mubr.bf16.gmra.mrb[0].mxu0 %v3961
      %v4091 = vpop.f32.mrb[0].mxu0
      %v4092 = vadd.f32 %v3903, %v4091
      %v4093 = vpop.f32.mrb[0].mxu0
      %v4094 = vpop.f32.mrb[0].mxu0
      %v4095 = vadd.f32 %v3903, %v4094
      %v4096 = vpop.f32.mrb[0].mxu0
      %4097 = vmatprep.mubr.bf16.mxu0 0
      %4098 = vmatmul.mubr.bf16.gmra.mrb[0].mxu0 %v3964
      %v4099 = vpop.f32.mrb[0].mxu0
      %v4100 = vadd.f32 %v3903, %v4099
      %v4101 = vpop.f32.mrb[0].mxu0
      %v4102 = vpop.f32.mrb[0].mxu0
      %v4103 = vadd.f32 %v3903, %v4102
      %v4104 = vpop.f32.mrb[0].mxu0
      %4105 = vmatprep.mubr.bf16.mxu0 0
      %4106 = vmatmul.mubr.bf16.gmra.mrb[0].mxu0 %v3967
      %v4107 = vpop.f32.mrb[0].mxu0
      %v4108 = vadd.f32 %v3903, %v4107
      %v4109 = vpop.f32.mrb[0].mxu0
      %v4110 = vpop.f32.mrb[0].mxu0
      %v4111 = vadd.f32 %v3903, %v4110
      %v4112 = vpop.f32.mrb[0].mxu0
      %4113 = vmatprep.mubr.bf16.mxu0 0
      %4114 = vmatmul.mubr.bf16.gmra.mrb[0].mxu0 %v3970
      %v4115 = vpop.f32.mrb[0].mxu0
      %v4116 = vadd.f32 %v3903, %v4115
      %v4117 = vpop.f32.mrb[0].mxu0
      %v4118 = vpop.f32.mrb[0].mxu0
      %v4119 = vadd.f32 %v3903, %v4118
      %v4120 = vpop.f32.mrb[0].mxu0
      %4121 = vmatprep.mubr.bf16.mxu0 0
      %4122 = vmatmul.mubr.bf16.gmra.mrb[0].mxu0 %v3973
      %v4123 = vpop.f32.mrb[0].mxu0
      %v4124 = vadd.f32 %v3903, %v4123
      %v4125 = vpop.f32.mrb[0].mxu0
      %v4126 = vpop.f32.mrb[0].mxu0
      %v4127 = vadd.f32 %v3903, %v4126
      %v4128 = vpop.f32.mrb[0].mxu0
      %4129 = vmatprep.mubr.bf16.mxu0 0
      %4130 = vmatmul.mubr.bf16.gmra.mrb[0].mxu0 %v3976
      %v4131 = vpop.f32.mrb[0].mxu0
      %v4132 = vadd.f32 %v3903, %v4131
      %v4133 = vpop.f32.mrb[0].mxu0
      %v4134 = vpop.f32.mrb[0].mxu0
      %v4135 = vadd.f32 %v3903, %v4134
      %v4136 = vpop.f32.mrb[0].mxu0
      %4137 = vmatprep.mubr.bf16.mxu0 0
      %4138 = vmatmul.mubr.bf16.gmra.mrb[0].mxu0 %v3979
      %v4139 = vpop.f32.mrb[0].mxu0
      %v4140 = vadd.f32 %v3903, %v4139
      %v4141 = vpop.f32.mrb[0].mxu0
      %v4142 = vpop.f32.mrb[0].mxu0
      %v4143 = vadd.f32 %v3903, %v4142
      %v4144 = vpop.f32.mrb[0].mxu0
      %4145 = vdwg.mxu0
      %v4146 = vmax.f32 %v4020, 0.0
      %v4147 = vmax.f32 %v4023, 0.0
      %v4148 = vmax.f32 %v4028, 0.0
      %v4149 = vmax.f32 %v4031, 0.0
      %v4150 = vmax.f32 %v4036, 0.0
      %v4151 = vmax.f32 %v4039, 0.0
      %v4152 = vmax.f32 %v4044, 0.0
      %v4153 = vmax.f32 %v4047, 0.0
      %v4154 = vmax.f32 %v4052, 0.0
      %v4155 = vmax.f32 %v4055, 0.0
      %v4156 = vmax.f32 %v4060, 0.0
      %v4157 = vmax.f32 %v4063, 0.0
      %v4158 = vmax.f32 %v4068, 0.0
      %v4159 = vmax.f32 %v4071, 0.0
      %v4160 = vmax.f32 %v4076, 0.0
      %v4161 = vmax.f32 %v4079, 0.0
      %v4162 = vmax.f32 %v4084, 0.0
      %v4163 = vmax.f32 %v4087, 0.0
      %v4164 = vmax.f32 %v4092, 0.0
      %v4165 = vmax.f32 %v4095, 0.0
      %v4166 = vmax.f32 %v4100, 0.0
      %v4167 = vmax.f32 %v4103, 0.0
      %v4168 = vmax.f32 %v4108, 0.0
      %v4169 = vmax.f32 %v4111, 0.0
      %v4170 = vmax.f32 %v4116, 0.0
      %v4171 = vmax.f32 %v4119, 0.0
      %v4172 = vmax.f32 %v4124, 0.0
      %v4173 = vmax.f32 %v4127, 0.0
      %v4174 = vmax.f32 %v4132, 0.0
      %v4175 = vmax.f32 %v4135, 0.0
      %v4176 = vmax.f32 %v4140, 0.0
      %v4177 = vmax.f32 %v4143, 0.0
      %4178 = vst.msk [vmem:[%s224] sm:$0xff] %vm1692, %v4146
      %4179 = vst.msk [vmem:[%s224 + $0x8] sm:$0xff] %vm1692, %v4147
      %4180 = vst.msk [vmem:[%s224 + $0x10] sm:$0xff] %vm1692, %v4148
      %4181 = vst.msk [vmem:[%s224 + $0x18] sm:$0xff] %vm1692, %v4149
      %4182 = vst.msk [vmem:[%s224 + $0x20] sm:$0xff] %vm1692, %v4150
      %4183 = vst.msk [vmem:[%s224 + $0x28] sm:$0xff] %vm1692, %v4151
      %4184 = vst.msk [vmem:[%s224 + $0x30] sm:$0xff] %vm1692, %v4152
      %4185 = vst.msk [vmem:[%s224 + $0x38] sm:$0xff] %vm1692, %v4153
      %4186 = vst.msk [vmem:[%s224 + $0x40] sm:$0xff] %vm1692, %v4154
      %4187 = vst.msk [vmem:[%s224 + $0x48] sm:$0xff] %vm1692, %v4155
      %4188 = vst.msk [vmem:[%s224 + $0x50] sm:$0xff] %vm1692, %v4156
      %4189 = vst.msk [vmem:[%s224 + $0x58] sm:$0xff] %vm1692, %v4157
      %4190 = vst.msk [vmem:[%s224 + $0x60] sm:$0xff] %vm1692, %v4158
      %4191 = vst.msk [vmem:[%s224 + $0x68] sm:$0xff] %vm1692, %v4159
      %4192 = vst.msk [vmem:[%s224 + $0x70] sm:$0xff] %vm1692, %v4160
      %4193 = vst.msk [vmem:[%s224 + $0x78] sm:$0xff] %vm1692, %v4161
      %4194 = vst.msk [vmem:[%s224 + $0x80] sm:$0xff] %vm1692, %v4162
      %4195 = vst.msk [vmem:[%s224 + $0x88] sm:$0xff] %vm1692, %v4163
      %4196 = vst.msk [vmem:[%s224 + $0x90] sm:$0xff] %vm1692, %v4164
      %4197 = vst.msk [vmem:[%s224 + $0x98] sm:$0xff] %vm1692, %v4165
      %4198 = vst.msk [vmem:[%s224 + $0xa0] sm:$0xff] %vm1692, %v4166
      %4199 = vst.msk [vmem:[%s224 + $0xa8] sm:$0xff] %vm1692, %v4167
      %4200 = vst.msk [vmem:[%s224 + $0xb0] sm:$0xff] %vm1692, %v4168
      %4201 = vst.msk [vmem:[%s224 + $0xb8] sm:$0xff] %vm1692, %v4169
      %4202 = vst.msk [vmem:[%s224 + $0xc0] sm:$0xff] %vm1692, %v4170
      %4203 = vst.msk [vmem:[%s224 + $0xc8] sm:$0xff] %vm1692, %v4171
      %4204 = vst.msk [vmem:[%s224 + $0xd0] sm:$0xff] %vm1692, %v4172
      %4205 = vst.msk [vmem:[%s224 + $0xd8] sm:$0xff] %vm1692, %v4173
      %4206 = vst.msk [vmem:[%s224 + $0xe0] sm:$0xff] %vm1692, %v4174
      %4207 = vst.msk [vmem:[%s224 + $0xe8] sm:$0xff] %vm1692, %v4175
      %4208 = vst.msk [vmem:[%s224 + $0xf0] sm:$0xff] %vm1692, %v4176
      %4209 = vst.msk [vmem:[%s224 + $0xf8] sm:$0xff] %vm1692, %v4177
      %p4210 = scmp.lt.s32.totalorder %s16, 1
      %s4211 = scalar_select %p4210, %s16, 1
      %s4212 = smul.addr %s4211, 32
      %s4213 = smul.addr %s4212, 8
      %s4214 = scalar_lea.vmem %s5, %s4213
      // Predicated region
      $region41: #{encoder_blocks_forward.4} parent=39 // pred_check
        %p4215 = pneg %p144
      $region42: #{encoder_blocks_forward.4} parent=39 // pred_check_branch
        %4217 = sbr.rel (%p4215) target = $region44
      $region43: #{encoder_blocks_forward.4} parent=39 // pred_region
        _
      $region44: #{encoder_blocks_forward.4} parent=39 // pred_fallthru
        _
    $region40: #{encoder_blocks_forward.4} parent=5 // pred_fallthru
      _
    %p4218 = scmp.le.s32.totalorder 2, %s11
    // Predicated region
    $region45: #{encoder_blocks_forward.4} parent=5 // pred_check
      %p4219 = pneg %p4218
    $region46: #{encoder_blocks_forward.4} parent=5 // pred_check_branch
      %4221 = sbr.rel (%p4219) target = $region48
    $region47: #{encoder_blocks_forward.4} parent=5 // pred_region
      %s4222 = ssub.s32 %s11, 2
      // Predicated region
      $region49: #{encoder_blocks_forward.4} parent=47 // pred_check
        %p4223 = pneg %p150
      $region50: #{encoder_blocks_forward.4} parent=47 // pred_check_branch
        %4225 = sbr.rel (%p4223) target = $region52
      $region51: #{encoder_blocks_forward.4} parent=47 // pred_region
        %p4226 = scmp.lt.s32.totalorder %s17, 1
        %s4227 = scalar_select %p4226, %s17, 1
        %s4228 = smul.addr %s4227, 32
        %s4229 = smul.addr %s4228, 8
        %s4230 = scalar_lea.vmem %s5, %s4229
      $region52: #{encoder_blocks_forward.4} parent=47 // pred_fallthru
        _
    $region48: #{encoder_blocks_forward.4} parent=5 // pred_fallthru
      _
  $region6: #{encoder_blocks_forward.4} parent=0 // loop_footer
    %s15 = sadd.s32 1, %s11
  $region7: #{encoder_blocks_forward.4} parent=0 // loop_footer_branch
    %10 = sbr.rel target = $region3
  $region8: #{encoder_blocks_forward.4} parent=0 // loop_exit
    _

</llo_original>
